<compile_context>
chip_gen: v6e
topology: v6e:2x2x1
jax: 0.10.0
libtpu: 0.0.40
codegen_flags: <defaults>
</compile_context>

<pallas_src>
import functools

import jax
import jax.numpy as jnp
from jax import lax
from jax.experimental import pallas as pl
from jax.experimental.pallas import tpu as pltpu


def _round_up(x, m):
    return ((x + m - 1) // m) * m


# ----------------------------------------------------------------------------
# 1) Encoder: GRU recurrence + merged q_mu/q_logvar + reparam + per-row KL
#    (PyTorch gate order r, z, n ; h' = (1-z)*n + z*h)
# ----------------------------------------------------------------------------
def _encoder_kernel(oh_ref, emb_ref, wih_ref, bih_ref, whh_ref, bhh_ref,
                    c_ref, qw_ref, qb_ref, eps_ref, z_ref, kl_ref,
                    *, T, H, d_z):
    # Per-vocab input-projection table (replaces the old bulk projection
    # launch); b_ih baked in.  Tiny (Vp,E)@(E,3H) matmul, once per block.
    table = (jnp.dot(emb_ref[...], wih_ref[...],
                     preferred_element_type=jnp.float32)
             + bih_ref[...]).astype(jnp.bfloat16)                  # (Vp, 3H)
    whh = whh_ref[...]                                             # bf16
    bhh = bhh_ref[...]                                             # f32
    bb = eps_ref.shape[0]

    def step(t, h):
        oh = oh_ref[t]                                             # (bb, Vp) bf16
        gx = jnp.dot(oh, table, preferred_element_type=jnp.float32)
        gh = jnp.dot(h.astype(jnp.bfloat16), whh,
                     preferred_element_type=jnp.float32) + bhh
        ru = jax.nn.sigmoid(gx[:, 0:2 * H] + gh[:, 0:2 * H])       # fused r,z
        r = ru[:, 0:H]
        u = ru[:, H:2 * H]
        n = jnp.tanh(gx[:, 2 * H:3 * H] + r * gh[:, 2 * H:3 * H])
        return (1.0 - u) * n + u * h

    h = lax.fori_loop(0, T, step, jnp.zeros((bb, H), jnp.float32))

    # merged q_mu/q_logvar head: single dot on [h | c_pad] (both 128-lane tiles)
    hc = jnp.concatenate([h, c_ref[...]], axis=1).astype(jnp.bfloat16)
    stats = (jnp.dot(hc, qw_ref[...], preferred_element_type=jnp.float32)
             + qb_ref[...])                                        # (bb, 2*d_z)
    mu = stats[:, 0:d_z]
    lv = stats[:, d_z:2 * d_z]
    z_ref[...] = mu + jnp.exp(0.5 * lv) * eps_ref[...]
    kl_ref[...] = 0.5 * jnp.sum(jnp.exp(lv) + mu * mu - 1.0 - lv,
                                axis=1, keepdims=True)             # (bb, 1)


def encoder_forward(oh, emb_pad, w_ih, b_ih, w_hh, b_hh, c_pad, q_w, q_b, eps,
                    *, block_b):
    T, B, Vp = oh.shape
    E = emb_pad.shape[1]
    H = w_hh.shape[0]
    d_z = q_w.shape[1] // 2
    Cp = c_pad.shape[1]
    nb = B // block_b
    full = lambda b: (0, 0)
    z, kl_rows = pl.pallas_call(
        functools.partial(_encoder_kernel, T=T, H=H, d_z=d_z),
        out_shape=(jax.ShapeDtypeStruct((B, d_z), jnp.float32),
                   jax.ShapeDtypeStruct((B, 1), jnp.float32)),
        grid=(nb,),
        in_specs=[
            pl.BlockSpec((T, block_b, Vp), lambda b: (0, b, 0)),   # one-hots
            pl.BlockSpec((Vp, E), full),                           # emb (padded)
            pl.BlockSpec((E, 3 * H), full),                        # W_ih
            pl.BlockSpec((1, 3 * H), full),                        # b_ih
            pl.BlockSpec((H, 3 * H), full),                        # W_hh
            pl.BlockSpec((1, 3 * H), full),                        # b_hh
            pl.BlockSpec((block_b, Cp), lambda b: (b, 0)),         # c (padded)
            pl.BlockSpec((H + Cp, 2 * d_z), full),                 # [q_w_h|q_w_c]
            pl.BlockSpec((1, 2 * d_z), full),                      # q_b
            pl.BlockSpec((block_b, d_z), lambda b: (b, 0)),        # eps
        ],
        out_specs=(pl.BlockSpec((block_b, d_z), lambda b: (b, 0)),
                   pl.BlockSpec((block_b, 1), lambda b: (b, 0))),
        compiler_params=pltpu.CompilerParams(
            dimension_semantics=("parallel",),
            vmem_limit_bytes=32 * 1024 * 1024),
    )(oh, emb_pad, w_ih, b_ih, w_hh, b_hh, c_pad, q_w, q_b, eps)
    return z, kl_rows


# ----------------------------------------------------------------------------
# 2) Decoder: (decoder_lat | zc gate term) + GRU + decoder_fc + masked CE
# ----------------------------------------------------------------------------
def _decoder_kernel(oh_ref, emb_ref, wih_ref, bih_ref, zc_ref, wpre_ref,
                    bpre_ref, whh_ref, bhh_ref, fcw_ref, fcb_ref,
                    tot_ref, cnt_ref, *, Tm1, H, pad_id):
    table = (jnp.dot(emb_ref[...], wih_ref[...],
                     preferred_element_type=jnp.float32)
             + bih_ref[...]).astype(jnp.bfloat16)                  # (Vp, 3H)
    # decoder_lat and the time-constant [z,c] input-gate term fused in ONE dot:
    # pre = zc @ [lat_w | W_ih_zc] + [lat_b | 0]  -> (bb, 4H)
    pre = (jnp.dot(zc_ref[...].astype(jnp.bfloat16), wpre_ref[...],
                   preferred_element_type=jnp.float32) + bpre_ref[...])
    h0 = pre[:, 0:H]
    gz = pre[:, H:4 * H]
    whh = whh_ref[...]
    bhh = bhh_ref[...]
    fcw = fcw_ref[...]
    fcb = fcb_ref[...]
    bb = zc_ref.shape[0]

    def step(t, carry):
        h, tot, cnt = carry
        oh = oh_ref[t]                                             # (bb, Vp) bf16
        gx = jnp.dot(oh, table, preferred_element_type=jnp.float32) + gz
        gh = jnp.dot(h.astype(jnp.bfloat16), whh,
                     preferred_element_type=jnp.float32) + bhh
        ru = jax.nn.sigmoid(gx[:, 0:2 * H] + gh[:, 0:2 * H])       # fused r,z
        r = ru[:, 0:H]
        u = ru[:, H:2 * H]
        n = jnp.tanh(gx[:, 2 * H:3 * H] + r * gh[:, 2 * H:3 * H])
        h = (1.0 - u) * n + u * h
        # decoder_fc (lane-dense Vp columns, pad bias -1e9) + masked CE vs t+1
        logits = (jnp.dot(h.astype(jnp.bfloat16), fcw,
                          preferred_element_type=jnp.float32) + fcb)  # (bb, Vp)
        m = jnp.max(logits, axis=1, keepdims=True)
        lse = jnp.log(jnp.sum(jnp.exp(logits - m), axis=1, keepdims=True)) + m
        oh_t = oh_ref[t + 1].astype(jnp.float32)                   # target one-hot
        tlogit = jnp.sum(logits * oh_t, axis=1, keepdims=True)
        mask = 1.0 - oh_t[:, pad_id:pad_id + 1]                    # ignore_index
        tot = tot + (lse - tlogit) * mask
        cnt = cnt + mask
        return h, tot, cnt

    zero = jnp.zeros((bb, 1), jnp.float32)
    _, tot, cnt = lax.fori_loop(0, Tm1, step, (h0, zero, zero))
    tot_ref[...] = tot
    cnt_ref[...] = cnt


def decoder_forward(oh, emb_pad, w_ih_e, b_ih, zc, w_pre, b_pre,
                    w_hh, b_hh, fc_w, fc_b, *, pad_id, block_b):
    T, B, Vp = oh.shape
    E = emb_pad.shape[1]
    H = w_hh.shape[0]
    Dzc = zc.shape[1]
    nb = B // block_b
    full = lambda b: (0, 0)
    tot, cnt = pl.pallas_call(
        functools.partial(_decoder_kernel, Tm1=T - 1, H=H, pad_id=pad_id),
        out_shape=(jax.ShapeDtypeStruct((B, 1), jnp.float32),
                   jax.ShapeDtypeStruct((B, 1), jnp.float32)),
        grid=(nb,),
        in_specs=[
            pl.BlockSpec((T, block_b, Vp), lambda b: (0, b, 0)),   # one-hots
            pl.BlockSpec((Vp, E), full),                           # emb (padded)
            pl.BlockSpec((E, 3 * H), full),                        # W_ih (emb part)
            pl.BlockSpec((1, 3 * H), full),                        # b_ih
            pl.BlockSpec((block_b, Dzc), lambda b: (b, 0)),        # zc
            pl.BlockSpec((Dzc, 4 * H), full),                      # [lat_w|W_ih_zc]
            pl.BlockSpec((1, 4 * H), full),                        # [lat_b|0]
            pl.BlockSpec((H, 3 * H), full),                        # W_hh
            pl.BlockSpec((1, 3 * H), full),                        # b_hh
            pl.BlockSpec((H, Vp), full),                           # fc_w (padded)
            pl.BlockSpec((1, Vp), full),                           # fc_b (padded)
        ],
        out_specs=(pl.BlockSpec((block_b, 1), lambda b: (b, 0)),
                   pl.BlockSpec((block_b, 1), lambda b: (b, 0))),
        compiler_params=pltpu.CompilerParams(
            dimension_semantics=("parallel",),
            vmem_limit_bytes=32 * 1024 * 1024),
    )(oh, emb_pad, w_ih_e, b_ih, zc, w_pre, b_pre, w_hh, b_hh, fc_w, fc_b)
    return tot, cnt


# ----------------------------------------------------------------------------
# Full VAE forward (encoder -> z, kl ; decoder -> recon loss)
# ----------------------------------------------------------------------------
def vae_forward(params, x_tokens, c, eps, pad_id, block_b=16):
    B, T = x_tokens.shape
    n_vocab, E = params['emb'].shape
    H = params['enc_w_hh'].shape[0]
    Hd = params['dec_w_hh'].shape[0]
    d_z = params['q_w_h'].shape[1] // 2
    prop = c.shape[1]
    Vp = _round_up(n_vocab, 128)          # lane-dense vocab padding
    Cp = 128                              # property vector padded to 128 lanes

    # --- plain-JAX glue: bf16 token one-hots.  They serve as (a) the in-kernel
    #     embedding/input-projection gather and (b) the CE target + pad mask.
    oh = jax.nn.one_hot(jnp.transpose(x_tokens), Vp, dtype=jnp.bfloat16)  # (T,B,Vp)

    # --- weight prep (casts / pads / merges; tiny, trace-time glue) ----------
    emb_pad = jnp.zeros((Vp, E), jnp.float32).at[:n_vocab].set(params['emb'])
    emb_pad = emb_pad.astype(jnp.bfloat16)

    c_pad = jnp.zeros((B, Cp), jnp.float32).at[:, :prop].set(c)
    q_wc_pad = jnp.zeros((Cp, 2 * d_z), jnp.float32).at[:prop].set(params['q_w_c'])
    q_w = jnp.concatenate([params['q_w_h'], q_wc_pad], axis=0).astype(jnp.bfloat16)

    # ---------------- encoder + latent head ----------------
    z, kl_rows = encoder_forward(
        oh, emb_pad,
        params['enc_w_ih'].astype(jnp.bfloat16), params['enc_b_ih'],
        params['enc_w_hh'].astype(jnp.bfloat16), params['enc_b_hh'],
        c_pad, q_w, params['q_b'], eps, block_b=block_b)
    kl_loss = jnp.sum(kl_rows) / B

    # ---------------- decoder + fc + cross entropy ----------------
    zc = jnp.concatenate([z, c], axis=1)                           # (B, d_z+prop)
    w_pre = jnp.concatenate([params['dec_lat_w'], params['dec_w_ih_z']],
                            axis=1).astype(jnp.bfloat16)           # (d_z+prop, 4Hd)
    b_pre = jnp.concatenate([params['dec_lat_b'],
                             jnp.zeros((1, 3 * Hd), jnp.float32)], axis=1)
    fc_w = jnp.zeros((Hd, Vp), jnp.float32).at[:, :n_vocab].set(params['dec_fc_w'])
    fc_b = jnp.full((1, Vp), -1e9, jnp.float32).at[:, :n_vocab].set(params['dec_fc_b'])

    tot, cnt = decoder_forward(
        oh, emb_pad,
        params['dec_w_ih_e'].astype(jnp.bfloat16), params['dec_b_ih'],
        zc, w_pre, b_pre,
        params['dec_w_hh'].astype(jnp.bfloat16), params['dec_b_hh'],
        fc_w.astype(jnp.bfloat16), fc_b,
        pad_id=pad_id, block_b=block_b)
    recon_loss = jnp.sum(tot) / jnp.maximum(jnp.sum(cnt), 1.0)
    return kl_loss, recon_loss


# ----------------------------------------------------------------------------
# Deterministic parameter init (shapes implied by the nn.Module __init__;
# weights stored (in, out), q_mu/q_logvar merged, decoder W_ih split).
# ----------------------------------------------------------------------------
def init_params(key, n_vocab, d_emb, q_d_h, d_z, prop, d_d_h, pad_id):
    ks = jax.random.split(key, 17)
    s = 0.1

    def rnd(k, shape):
        return jax.random.normal(k, shape, jnp.float32) * s

    return {
        'emb': rnd(ks[0], (n_vocab, d_emb)).at[pad_id].set(0.0),
        # encoder GRU (gate order r, z, n)
        'enc_w_ih': rnd(ks[1], (d_emb, 3 * q_d_h)),
        'enc_w_hh': rnd(ks[2], (q_d_h, 3 * q_d_h)),
        'enc_b_ih': rnd(ks[3], (1, 3 * q_d_h)),
        'enc_b_hh': rnd(ks[4], (1, 3 * q_d_h)),
        # q_mu / q_logvar merged along output dim: columns [mu | logvar]
        'q_w_h': rnd(ks[5], (q_d_h, 2 * d_z)),
        'q_w_c': rnd(ks[6], (prop, 2 * d_z)),
        'q_b': rnd(ks[7], (1, 2 * d_z)),
        # decoder_lat
        'dec_lat_w': rnd(ks[8], (d_z + prop, d_d_h)),
        'dec_lat_b': rnd(ks[9], (1, d_d_h)),
        # decoder GRU, input weights split into embedding part and [z, c] part
        'dec_w_ih_e': rnd(ks[10], (d_emb, 3 * d_d_h)),
        'dec_w_ih_z': rnd(ks[11], (d_z + prop, 3 * d_d_h)),
        'dec_b_ih': rnd(ks[12], (1, 3 * d_d_h)),
        'dec_w_hh': rnd(ks[13], (d_d_h, 3 * d_d_h)),
        'dec_b_hh': rnd(ks[14], (1, 3 * d_d_h)),
        # decoder_fc
        'dec_fc_w': rnd(ks[15], (d_d_h, n_vocab)),
        'dec_fc_b': rnd(ks[16], (1, n_vocab)),
    }


if __name__ == "__main__":
    PAD, BOS, EOS, UNK = 0, 1, 2, 3
    n_vocab, d_emb = 32, 32
    q_d_h, d_z, prop, d_d_h = 128, 32, 4, 128     # H = Hd = 128 (lane aligned)
    B, T = 32, 16                                 # batch split into 2 "parallel" blocks
    block_b = 16

    root = jax.random.PRNGKey(0)
    k_par, k_tok, k_c, k_eps = jax.random.split(root, 4)

    params = init_params(k_par, n_vocab, d_emb, q_d_h, d_z, prop, d_d_h, PAD)

    inner = jax.random.randint(k_tok, (B, T - 2), 4, n_vocab)
    x_tokens = jnp.concatenate(
        [jnp.full((B, 1), BOS), inner, jnp.full((B, 1), EOS)], axis=1
    ).astype(jnp.int32)                                   # (B, T) equal-length
    c = jax.random.normal(k_c, (B, prop), jnp.float32)    # property conditioning
    eps = jax.random.normal(k_eps, (B, d_z), jnp.float32)  # reparameterization noise

    fwd = jax.jit(functools.partial(vae_forward, pad_id=PAD, block_b=block_b))
    kl_loss, recon_loss = fwd(params, x_tokens, c, eps)
    jax.block_until_ready((kl_loss, recon_loss))
    print("KERNEL_OK")
</pallas_src>

<mosaic_0001>
module attributes {stable_mosaic.version = 11 : i64} {
  func.func @_encoder_kernel(%arg0: i32, %arg1: memref<16x16x128xbf16, #tpu.memory_space<vmem>>, %arg2: memref<128x32xbf16, #tpu.memory_space<vmem>>, %arg3: memref<32x384xbf16, #tpu.memory_space<vmem>>, %arg4: memref<1x384xf32, #tpu.memory_space<vmem>>, %arg5: memref<128x384xbf16, #tpu.memory_space<vmem>>, %arg6: memref<1x384xf32, #tpu.memory_space<vmem>>, %arg7: memref<16x128xf32, #tpu.memory_space<vmem>>, %arg8: memref<256x64xbf16, #tpu.memory_space<vmem>>, %arg9: memref<1x64xf32, #tpu.memory_space<vmem>>, %arg10: memref<16x32xf32, #tpu.memory_space<vmem>>, %arg11: memref<16x32xf32, #tpu.memory_space<vmem>>, %arg12: memref<16x1xf32, #tpu.memory_space<vmem>>) attributes {dimension_semantics = [#tpu.dimension_semantics<parallel>], iteration_bounds = array<i64: 2>, scalar_prefetch = 0 : i64, scratch_operands = 0 : i64, tpu.core_type = #tpu.core_type<tc>, window_params = [{transform_indices = @transform_0, window_bounds = array<i64: 16, 16, 128>}, {pipeline_mode = #tpu.pipeline_mode<synchronous>, transform_indices = @transform_1, window_bounds = array<i64: 128, 32>}, {pipeline_mode = #tpu.pipeline_mode<synchronous>, transform_indices = @transform_2, window_bounds = array<i64: 32, 384>}, {pipeline_mode = #tpu.pipeline_mode<synchronous>, transform_indices = @transform_3, window_bounds = array<i64: 1, 384>}, {pipeline_mode = #tpu.pipeline_mode<synchronous>, transform_indices = @transform_4, window_bounds = array<i64: 128, 384>}, {pipeline_mode = #tpu.pipeline_mode<synchronous>, transform_indices = @transform_5, window_bounds = array<i64: 1, 384>}, {transform_indices = @transform_6, window_bounds = array<i64: 16, 128>}, {pipeline_mode = #tpu.pipeline_mode<synchronous>, transform_indices = @transform_7, window_bounds = array<i64: 256, 64>}, {pipeline_mode = #tpu.pipeline_mode<synchronous>, transform_indices = @transform_8, window_bounds = array<i64: 1, 64>}, {transform_indices = @transform_9, window_bounds = array<i64: 16, 32>}, {transform_indices = @transform_10, window_bounds = array<i64: 16, 32>}, {transform_indices = @transform_11, window_bounds = array<i64: 16, 1>}]} {
    %c0 = arith.constant 0 : index
    %c0_0 = arith.constant 0 : index
    %0 = vector.load %arg2[%c0, %c0_0] : memref<128x32xbf16, #tpu.memory_space<vmem>>, vector<128x32xbf16>
    %c0_1 = arith.constant 0 : index
    %c0_2 = arith.constant 0 : index
    %1 = vector.load %arg3[%c0_1, %c0_2] : memref<32x384xbf16, #tpu.memory_space<vmem>>, vector<32x384xbf16>
    %cst = arith.constant dense<0.000000e+00> : vector<128x384xf32>
    %2 = tpu.matmul %0, %1, %cst {dimension_numbers = #tpu.dot_dimension_numbers<[1], [0], [0], [1], [0, 0, 1, 1], [], []>} : vector<128x32xbf16>, vector<32x384xbf16>, vector<128x384xf32> -> vector<128x384xf32>
    %c0_3 = arith.constant 0 : index
    %c0_4 = arith.constant 0 : index
    %3 = vector.load %arg4[%c0_3, %c0_4] : memref<1x384xf32, #tpu.memory_space<vmem>>, vector<1x384xf32>
    %4 = vector.broadcast %3 : vector<1x384xf32> to vector<128x384xf32>
    %5 = arith.addf %2, %4 : vector<128x384xf32>
    %6 = arith.truncf %5 : vector<128x384xf32> to vector<128x384xbf16>
    %c0_5 = arith.constant 0 : index
    %c0_6 = arith.constant 0 : index
    %7 = vector.load %arg5[%c0_5, %c0_6] : memref<128x384xbf16, #tpu.memory_space<vmem>>, vector<128x384xbf16>
    %c0_7 = arith.constant 0 : index
    %c0_8 = arith.constant 0 : index
    %8 = vector.load %arg6[%c0_7, %c0_8] : memref<1x384xf32, #tpu.memory_space<vmem>>, vector<1x384xf32>
    %cst_9 = arith.constant 0.000000e+00 : f32
    %9 = vector.broadcast %cst_9 : f32 to vector<16x128xf32>
    %c0_i32 = arith.constant 0 : i32
    %c16_i32 = arith.constant 16 : i32
    %10 = arith.addi %c0_i32, %c16_i32 : i32
    %c1_i32 = arith.constant 1 : i32
    %11 = scf.for %arg13 = %c0_i32 to %10 step %c1_i32 iter_args(%arg14 = %9) -> (vector<16x128xf32>)  : i32 {
      %40 = arith.index_cast %arg13 : i32 to index
      %c0_28 = arith.constant 0 : index
      %c0_29 = arith.constant 0 : index
      %41 = vector.load %arg1[%40, %c0_28, %c0_29] : memref<16x16x128xbf16, #tpu.memory_space<vmem>>, vector<1x16x128xbf16>
      %42 = vector.shape_cast %41 : vector<1x16x128xbf16> to vector<16x128xbf16>
      %cst_30 = arith.constant dense<0.000000e+00> : vector<16x384xf32>
      %43 = tpu.matmul %42, %6, %cst_30 {dimension_numbers = #tpu.dot_dimension_numbers<[1], [0], [0], [1], [0, 0, 1, 1], [], []>} : vector<16x128xbf16>, vector<128x384xbf16>, vector<16x384xf32> -> vector<16x384xf32>
      %44 = arith.truncf %arg14 : vector<16x128xf32> to vector<16x128xbf16>
      %cst_31 = arith.constant dense<0.000000e+00> : vector<16x384xf32>
      %45 = tpu.matmul %44, %7, %cst_31 {dimension_numbers = #tpu.dot_dimension_numbers<[1], [0], [0], [1], [0, 0, 1, 1], [], []>} : vector<16x128xbf16>, vector<128x384xbf16>, vector<16x384xf32> -> vector<16x384xf32>
      %46 = vector.broadcast %8 : vector<1x384xf32> to vector<16x384xf32>
      %47 = arith.addf %45, %46 : vector<16x384xf32>
      %48 = vector.extract_strided_slice %43 {offsets = [0, 0], sizes = [16, 256], strides = [1, 1]} : vector<16x384xf32> to vector<16x256xf32>
      %49 = vector.extract_strided_slice %47 {offsets = [0, 0], sizes = [16, 256], strides = [1, 1]} : vector<16x384xf32> to vector<16x256xf32>
      %50 = arith.addf %48, %49 : vector<16x256xf32>
      %51 = arith.negf %50 : vector<16x256xf32>
      %52 = math.exp %51 : vector<16x256xf32>
      %cst_32 = arith.constant 1.000000e+00 : f32
      %53 = vector.broadcast %cst_32 : f32 to vector<16x256xf32>
      %54 = arith.addf %53, %52 : vector<16x256xf32>
      %55 = arith.divf %53, %54 : vector<16x256xf32>
      %56 = vector.extract_strided_slice %55 {offsets = [0, 0], sizes = [16, 128], strides = [1, 1]} : vector<16x256xf32> to vector<16x128xf32>
      %57 = vector.extract_strided_slice %55 {offsets = [0, 128], sizes = [16, 128], strides = [1, 1]} : vector<16x256xf32> to vector<16x128xf32>
      %58 = vector.extract_strided_slice %43 {offsets = [0, 256], sizes = [16, 128], strides = [1, 1]} : vector<16x384xf32> to vector<16x128xf32>
      %59 = vector.extract_strided_slice %47 {offsets = [0, 256], sizes = [16, 128], strides = [1, 1]} : vector<16x384xf32> to vector<16x128xf32>
      %60 = arith.mulf %56, %59 : vector<16x128xf32>
      %61 = arith.addf %58, %60 : vector<16x128xf32>
      %62 = math.tanh %61 : vector<16x128xf32>
      %cst_33 = arith.constant 1.000000e+00 : f32
      %63 = vector.broadcast %cst_33 : f32 to vector<16x128xf32>
      %64 = arith.subf %63, %57 : vector<16x128xf32>
      %65 = arith.mulf %64, %62 : vector<16x128xf32>
      %66 = arith.mulf %57, %arg14 : vector<16x128xf32>
      %67 = arith.addf %65, %66 : vector<16x128xf32>
      scf.yield %67 : vector<16x128xf32>
    }
    %c16_i32_10 = arith.constant 16 : i32
    %c0_11 = arith.constant 0 : index
    %c0_12 = arith.constant 0 : index
    %12 = vector.load %arg7[%c0_11, %c0_12] : memref<16x128xf32, #tpu.memory_space<vmem>>, vector<16x128xf32>
    %13 = tpu.concatenate %11, %12 in 1 : vector<16x128xf32>, vector<16x128xf32> -> vector<16x256xf32>
    %14 = arith.truncf %13 : vector<16x256xf32> to vector<16x256xbf16>
    %c0_13 = arith.constant 0 : index
    %c0_14 = arith.constant 0 : index
    %15 = vector.load %arg8[%c0_13, %c0_14] : memref<256x64xbf16, #tpu.memory_space<vmem>>, vector<256x64xbf16>
    %cst_15 = arith.constant dense<0.000000e+00> : vector<16x64xf32>
    %16 = tpu.matmul %14, %15, %cst_15 {dimension_numbers = #tpu.dot_dimension_numbers<[1], [0], [0], [1], [0, 0, 1, 1], [], []>} : vector<16x256xbf16>, vector<256x64xbf16>, vector<16x64xf32> -> vector<16x64xf32>
    %c0_16 = arith.constant 0 : index
    %c0_17 = arith.constant 0 : index
    %17 = vector.load %arg9[%c0_16, %c0_17] : memref<1x64xf32, #tpu.memory_space<vmem>>, vector<1x64xf32>
    %18 = vector.broadcast %17 : vector<1x64xf32> to vector<16x64xf32>
    %19 = arith.addf %16, %18 : vector<16x64xf32>
    %20 = vector.extract_strided_slice %19 {offsets = [0, 0], sizes = [16, 32], strides = [1, 1]} : vector<16x64xf32> to vector<16x32xf32>
    %21 = vector.extract_strided_slice %19 {offsets = [0, 32], sizes = [16, 32], strides = [1, 1]} : vector<16x64xf32> to vector<16x32xf32>
    %cst_18 = arith.constant 5.000000e-01 : f32
    %22 = vector.broadcast %cst_18 : f32 to vector<16x32xf32>
    %23 = arith.mulf %22, %21 : vector<16x32xf32>
    %24 = math.exp %23 : vector<16x32xf32>
    %c0_19 = arith.constant 0 : index
    %c0_20 = arith.constant 0 : index
    %25 = vector.load %arg10[%c0_19, %c0_20] : memref<16x32xf32, #tpu.memory_space<vmem>>, vector<16x32xf32>
    %26 = arith.mulf %24, %25 : vector<16x32xf32>
    %27 = arith.addf %20, %26 : vector<16x32xf32>
    %c0_21 = arith.constant 0 : index
    %c0_22 = arith.constant 0 : index
    %28 = vector.load %arg11[%c0_21, %c0_22] : memref<16x32xf32, #tpu.memory_space<vmem>>, vector<16x32xf32>
    tpu.vector_store %arg11[%c0_21, %c0_22], %27 {strides = array<i32>} : memref<16x32xf32, #tpu.memory_space<vmem>>, vector<16x32xf32>,
    %29 = math.exp %21 : vector<16x32xf32>
    %30 = arith.mulf %20, %20 : vector<16x32xf32>
    %31 = arith.addf %29, %30 : vector<16x32xf32>
    %cst_23 = arith.constant 1.000000e+00 : f32
    %32 = vector.broadcast %cst_23 : f32 to vector<16x32xf32>
    %33 = arith.subf %31, %32 : vector<16x32xf32>
    %34 = arith.subf %33, %21 : vector<16x32xf32>
    %cst_24 = arith.constant dense<0.000000e+00> : vector<16xf32>
    %35 = vector.multi_reduction <add>, %34, %cst_24 [1] : vector<16x32xf32> to vector<16xf32>
    %36 = vector.shape_cast %35 : vector<16xf32> to vector<16x1xf32>
    %cst_25 = arith.constant 5.000000e-01 : f32
    %37 = vector.broadcast %cst_25 : f32 to vector<16x1xf32>
    %38 = arith.mulf %37, %36 : vector<16x1xf32>
    %c0_26 = arith.constant 0 : index
    %c0_27 = arith.constant 0 : index
    %39 = vector.load %arg12[%c0_26, %c0_27] : memref<16x1xf32, #tpu.memory_space<vmem>>, vector<16x1xf32>
    tpu.vector_store %arg12[%c0_26, %c0_27], %38 {strides = array<i32>} : memref<16x1xf32, #tpu.memory_space<vmem>>, vector<16x1xf32>,
    return
  }
  func.func @transform_0(%arg0: i32) -> (i32, i32, i32) {
    %c0_i32 = arith.constant 0 : i32
    %c0_i32_0 = arith.constant 0 : i32
    %c0_i32_1 = arith.constant 0 : i32
    return %c0_i32, %arg0, %c0_i32_0 : i32, i32, i32
  }
  func.func @transform_1(%arg0: i32) -> (i32, i32) {
    %c0_i32 = arith.constant 0 : i32
    %c0_i32_0 = arith.constant 0 : i32
    %c0_i32_1 = arith.constant 0 : i32
    return %c0_i32, %c0_i32_0 : i32, i32
  }
  func.func @transform_2(%arg0: i32) -> (i32, i32) {
    %c0_i32 = arith.constant 0 : i32
    %c0_i32_0 = arith.constant 0 : i32
    %c0_i32_1 = arith.constant 0 : i32
    return %c0_i32, %c0_i32_0 : i32, i32
  }
  func.func @transform_3(%arg0: i32) -> (i32, i32) {
    %c0_i32 = arith.constant 0 : i32
    %c0_i32_0 = arith.constant 0 : i32
    %c0_i32_1 = arith.constant 0 : i32
    return %c0_i32, %c0_i32_0 : i32, i32
  }
  func.func @transform_4(%arg0: i32) -> (i32, i32) {
    %c0_i32 = arith.constant 0 : i32
    %c0_i32_0 = arith.constant 0 : i32
    %c0_i32_1 = arith.constant 0 : i32
    return %c0_i32, %c0_i32_0 : i32, i32
  }
  func.func @transform_5(%arg0: i32) -> (i32, i32) {
    %c0_i32 = arith.constant 0 : i32
    %c0_i32_0 = arith.constant 0 : i32
    %c0_i32_1 = arith.constant 0 : i32
    return %c0_i32, %c0_i32_0 : i32, i32
  }
  func.func @transform_6(%arg0: i32) -> (i32, i32) {
    %c0_i32 = arith.constant 0 : i32
    %c0_i32_0 = arith.constant 0 : i32
    return %arg0, %c0_i32 : i32, i32
  }
  func.func @transform_7(%arg0: i32) -> (i32, i32) {
    %c0_i32 = arith.constant 0 : i32
    %c0_i32_0 = arith.constant 0 : i32
    %c0_i32_1 = arith.constant 0 : i32
    return %c0_i32, %c0_i32_0 : i32, i32
  }
  func.func @transform_8(%arg0: i32) -> (i32, i32) {
    %c0_i32 = arith.constant 0 : i32
    %c0_i32_0 = arith.constant 0 : i32
    %c0_i32_1 = arith.constant 0 : i32
    return %c0_i32, %c0_i32_0 : i32, i32
  }
  func.func @transform_9(%arg0: i32) -> (i32, i32) {
    %c0_i32 = arith.constant 0 : i32
    %c0_i32_0 = arith.constant 0 : i32
    return %arg0, %c0_i32 : i32, i32
  }
  func.func @transform_10(%arg0: i32) -> (i32, i32) {
    %c0_i32 = arith.constant 0 : i32
    %c0_i32_0 = arith.constant 0 : i32
    return %arg0, %c0_i32 : i32, i32
  }
  func.func @transform_11(%arg0: i32) -> (i32, i32) {
    %c0_i32 = arith.constant 0 : i32
    %c0_i32_0 = arith.constant 0 : i32
    return %arg0, %c0_i32 : i32, i32
  }
}

module attributes {stable_mosaic.version = 11 : i64} {
  func.func @_decoder_kernel(%arg0: i32, %arg1: memref<16x16x128xbf16, #tpu.memory_space<vmem>>, %arg2: memref<128x32xbf16, #tpu.memory_space<vmem>>, %arg3: memref<32x384xbf16, #tpu.memory_space<vmem>>, %arg4: memref<1x384xf32, #tpu.memory_space<vmem>>, %arg5: memref<16x36xf32, #tpu.memory_space<vmem>>, %arg6: memref<36x512xbf16, #tpu.memory_space<vmem>>, %arg7: memref<1x512xf32, #tpu.memory_space<vmem>>, %arg8: memref<128x384xbf16, #tpu.memory_space<vmem>>, %arg9: memref<1x384xf32, #tpu.memory_space<vmem>>, %arg10: memref<128x128xbf16, #tpu.memory_space<vmem>>, %arg11: memref<1x128xf32, #tpu.memory_space<vmem>>, %arg12: memref<16x1xf32, #tpu.memory_space<vmem>>, %arg13: memref<16x1xf32, #tpu.memory_space<vmem>>) attributes {dimension_semantics = [#tpu.dimension_semantics<parallel>], iteration_bounds = array<i64: 2>, scalar_prefetch = 0 : i64, scratch_operands = 0 : i64, tpu.core_type = #tpu.core_type<tc>, window_params = [{transform_indices = @transform_0, window_bounds = array<i64: 16, 16, 128>}, {pipeline_mode = #tpu.pipeline_mode<synchronous>, transform_indices = @transform_1, window_bounds = array<i64: 128, 32>}, {pipeline_mode = #tpu.pipeline_mode<synchronous>, transform_indices = @transform_2, window_bounds = array<i64: 32, 384>}, {pipeline_mode = #tpu.pipeline_mode<synchronous>, transform_indices = @transform_3, window_bounds = array<i64: 1, 384>}, {transform_indices = @transform_4, window_bounds = array<i64: 16, 36>}, {pipeline_mode = #tpu.pipeline_mode<synchronous>, transform_indices = @transform_5, window_bounds = array<i64: 36, 512>}, {pipeline_mode = #tpu.pipeline_mode<synchronous>, transform_indices = @transform_6, window_bounds = array<i64: 1, 512>}, {pipeline_mode = #tpu.pipeline_mode<synchronous>, transform_indices = @transform_7, window_bounds = array<i64: 128, 384>}, {pipeline_mode = #tpu.pipeline_mode<synchronous>, transform_indices = @transform_8, window_bounds = array<i64: 1, 384>}, {pipeline_mode = #tpu.pipeline_mode<synchronous>, transform_indices = @transform_9, window_bounds = array<i64: 128, 128>}, {pipeline_mode = #tpu.pipeline_mode<synchronous>, transform_indices = @transform_10, window_bounds = array<i64: 1, 128>}, {transform_indices = @transform_11, window_bounds = array<i64: 16, 1>}, {transform_indices = @transform_12, window_bounds = array<i64: 16, 1>}]} {
    %c0 = arith.constant 0 : index
    %c0_0 = arith.constant 0 : index
    %0 = vector.load %arg2[%c0, %c0_0] : memref<128x32xbf16, #tpu.memory_space<vmem>>, vector<128x32xbf16>
    %c0_1 = arith.constant 0 : index
    %c0_2 = arith.constant 0 : index
    %1 = vector.load %arg3[%c0_1, %c0_2] : memref<32x384xbf16, #tpu.memory_space<vmem>>, vector<32x384xbf16>
    %cst = arith.constant dense<0.000000e+00> : vector<128x384xf32>
    %2 = tpu.matmul %0, %1, %cst {dimension_numbers = #tpu.dot_dimension_numbers<[1], [0], [0], [1], [0, 0, 1, 1], [], []>} : vector<128x32xbf16>, vector<32x384xbf16>, vector<128x384xf32> -> vector<128x384xf32>
    %c0_3 = arith.constant 0 : index
    %c0_4 = arith.constant 0 : index
    %3 = vector.load %arg4[%c0_3, %c0_4] : memref<1x384xf32, #tpu.memory_space<vmem>>, vector<1x384xf32>
    %4 = vector.broadcast %3 : vector<1x384xf32> to vector<128x384xf32>
    %5 = arith.addf %2, %4 : vector<128x384xf32>
    %6 = arith.truncf %5 : vector<128x384xf32> to vector<128x384xbf16>
    %c0_5 = arith.constant 0 : index
    %c0_6 = arith.constant 0 : index
    %7 = vector.load %arg5[%c0_5, %c0_6] : memref<16x36xf32, #tpu.memory_space<vmem>>, vector<16x36xf32>
    %8 = arith.truncf %7 : vector<16x36xf32> to vector<16x36xbf16>
    %c0_7 = arith.constant 0 : index
    %c0_8 = arith.constant 0 : index
    %9 = vector.load %arg6[%c0_7, %c0_8] : memref<36x512xbf16, #tpu.memory_space<vmem>>, vector<36x512xbf16>
    %cst_9 = arith.constant dense<0.000000e+00> : vector<16x512xf32>
    %10 = tpu.matmul %8, %9, %cst_9 {dimension_numbers = #tpu.dot_dimension_numbers<[1], [0], [0], [1], [0, 0, 1, 1], [], []>} : vector<16x36xbf16>, vector<36x512xbf16>, vector<16x512xf32> -> vector<16x512xf32>
    %c0_10 = arith.constant 0 : index
    %c0_11 = arith.constant 0 : index
    %11 = vector.load %arg7[%c0_10, %c0_11] : memref<1x512xf32, #tpu.memory_space<vmem>>, vector<1x512xf32>
    %12 = vector.broadcast %11 : vector<1x512xf32> to vector<16x512xf32>
    %13 = arith.addf %10, %12 : vector<16x512xf32>
    %14 = vector.extract_strided_slice %13 {offsets = [0, 0], sizes = [16, 128], strides = [1, 1]} : vector<16x512xf32> to vector<16x128xf32>
    %15 = vector.extract_strided_slice %13 {offsets = [0, 128], sizes = [16, 384], strides = [1, 1]} : vector<16x512xf32> to vector<16x384xf32>
    %c0_12 = arith.constant 0 : index
    %c0_13 = arith.constant 0 : index
    %16 = vector.load %arg8[%c0_12, %c0_13] : memref<128x384xbf16, #tpu.memory_space<vmem>>, vector<128x384xbf16>
    %c0_14 = arith.constant 0 : index
    %c0_15 = arith.constant 0 : index
    %17 = vector.load %arg9[%c0_14, %c0_15] : memref<1x384xf32, #tpu.memory_space<vmem>>, vector<1x384xf32>
    %c0_16 = arith.constant 0 : index
    %c0_17 = arith.constant 0 : index
    %18 = vector.load %arg10[%c0_16, %c0_17] : memref<128x128xbf16, #tpu.memory_space<vmem>>, vector<128x128xbf16>
    %c0_18 = arith.constant 0 : index
    %c0_19 = arith.constant 0 : index
    %19 = vector.load %arg11[%c0_18, %c0_19] : memref<1x128xf32, #tpu.memory_space<vmem>>, vector<1x128xf32>
    %cst_20 = arith.constant 0.000000e+00 : f32
    %20 = vector.broadcast %cst_20 : f32 to vector<16x1xf32>
    %c0_i32 = arith.constant 0 : i32
    %c15_i32 = arith.constant 15 : i32
    %21 = arith.addi %c0_i32, %c15_i32 : i32
    %c1_i32 = arith.constant 1 : i32
    %22:3 = scf.for %arg14 = %c0_i32 to %21 step %c1_i32 iter_args(%arg15 = %14, %arg16 = %20, %arg17 = %20) -> (vector<16x128xf32>, vector<16x1xf32>, vector<16x1xf32>)  : i32 {
      %25 = arith.index_cast %arg14 : i32 to index
      %c0_26 = arith.constant 0 : index
      %c0_27 = arith.constant 0 : index
      %26 = vector.load %arg1[%25, %c0_26, %c0_27] : memref<16x16x128xbf16, #tpu.memory_space<vmem>>, vector<1x16x128xbf16>
      %27 = vector.shape_cast %26 : vector<1x16x128xbf16> to vector<16x128xbf16>
      %cst_28 = arith.constant dense<0.000000e+00> : vector<16x384xf32>
      %28 = tpu.matmul %27, %6, %cst_28 {dimension_numbers = #tpu.dot_dimension_numbers<[1], [0], [0], [1], [0, 0, 1, 1], [], []>} : vector<16x128xbf16>, vector<128x384xbf16>, vector<16x384xf32> -> vector<16x384xf32>
      %29 = arith.addf %28, %15 : vector<16x384xf32>
      %30 = arith.truncf %arg15 : vector<16x128xf32> to vector<16x128xbf16>
      %cst_29 = arith.constant dense<0.000000e+00> : vector<16x384xf32>
      %31 = tpu.matmul %30, %16, %cst_29 {dimension_numbers = #tpu.dot_dimension_numbers<[1], [0], [0], [1], [0, 0, 1, 1], [], []>} : vector<16x128xbf16>, vector<128x384xbf16>, vector<16x384xf32> -> vector<16x384xf32>
      %32 = vector.broadcast %17 : vector<1x384xf32> to vector<16x384xf32>
      %33 = arith.addf %31, %32 : vector<16x384xf32>
      %34 = vector.extract_strided_slice %29 {offsets = [0, 0], sizes = [16, 256], strides = [1, 1]} : vector<16x384xf32> to vector<16x256xf32>
      %35 = vector.extract_strided_slice %33 {offsets = [0, 0], sizes = [16, 256], strides = [1, 1]} : vector<16x384xf32> to vector<16x256xf32>
      %36 = arith.addf %34, %35 : vector<16x256xf32>
      %37 = arith.negf %36 : vector<16x256xf32>
      %38 = math.exp %37 : vector<16x256xf32>
      %cst_30 = arith.constant 1.000000e+00 : f32
      %39 = vector.broadcast %cst_30 : f32 to vector<16x256xf32>
      %40 = arith.addf %39, %38 : vector<16x256xf32>
      %41 = arith.divf %39, %40 : vector<16x256xf32>
      %42 = vector.extract_strided_slice %41 {offsets = [0, 0], sizes = [16, 128], strides = [1, 1]} : vector<16x256xf32> to vector<16x128xf32>
      %43 = vector.extract_strided_slice %41 {offsets = [0, 128], sizes = [16, 128], strides = [1, 1]} : vector<16x256xf32> to vector<16x128xf32>
      %44 = vector.extract_strided_slice %29 {offsets = [0, 256], sizes = [16, 128], strides = [1, 1]} : vector<16x384xf32> to vector<16x128xf32>
      %45 = vector.extract_strided_slice %33 {offsets = [0, 256], sizes = [16, 128], strides = [1, 1]} : vector<16x384xf32> to vector<16x128xf32>
      %46 = arith.mulf %42, %45 : vector<16x128xf32>
      %47 = arith.addf %44, %46 : vector<16x128xf32>
      %48 = math.tanh %47 : vector<16x128xf32>
      %cst_31 = arith.constant 1.000000e+00 : f32
      %49 = vector.broadcast %cst_31 : f32 to vector<16x128xf32>
      %50 = arith.subf %49, %43 : vector<16x128xf32>
      %51 = arith.mulf %50, %48 : vector<16x128xf32>
      %52 = arith.mulf %43, %arg15 : vector<16x128xf32>
      %53 = arith.addf %51, %52 : vector<16x128xf32>
      %54 = arith.truncf %53 : vector<16x128xf32> to vector<16x128xbf16>
      %cst_32 = arith.constant dense<0.000000e+00> : vector<16x128xf32>
      %55 = tpu.matmul %54, %18, %cst_32 {dimension_numbers = #tpu.dot_dimension_numbers<[1], [0], [0], [1], [0, 0, 1, 1], [], []>} : vector<16x128xbf16>, vector<128x128xbf16>, vector<16x128xf32> -> vector<16x128xf32>
      %56 = vector.broadcast %19 : vector<1x128xf32> to vector<16x128xf32>
      %57 = arith.addf %55, %56 : vector<16x128xf32>
      %cst_33 = arith.constant dense<0xFF800000> : vector<16xf32>
      %58 = vector.multi_reduction <maximumf>, %57, %cst_33 [1] : vector<16x128xf32> to vector<16xf32>
      %59 = vector.shape_cast %58 : vector<16xf32> to vector<16x1xf32>
      %60 = vector.broadcast %59 : vector<16x1xf32> to vector<16x128xf32>
      %61 = arith.subf %57, %60 : vector<16x128xf32>
      %62 = math.exp %61 : vector<16x128xf32>
      %cst_34 = arith.constant dense<0.000000e+00> : vector<16xf32>
      %63 = vector.multi_reduction <add>, %62, %cst_34 [1] : vector<16x128xf32> to vector<16xf32>
      %64 = vector.shape_cast %63 : vector<16xf32> to vector<16x1xf32>
      %65 = math.log %64 : vector<16x1xf32>
      %66 = arith.addf %65, %59 : vector<16x1xf32>
      %c1_i32_35 = arith.constant 1 : i32
      %67 = arith.addi %arg14, %c1_i32_35 : i32
      %68 = arith.index_cast %67 : i32 to index
      %c0_36 = arith.constant 0 : index
      %c0_37 = arith.constant 0 : index
      %69 = vector.load %arg1[%68, %c0_36, %c0_37] : memref<16x16x128xbf16, #tpu.memory_space<vmem>>, vector<1x16x128xbf16>
      %70 = vector.shape_cast %69 : vector<1x16x128xbf16> to vector<16x128xbf16>
      %71 = arith.extf %70 : vector<16x128xbf16> to vector<16x128xf32>
      %72 = arith.mulf %57, %71 : vector<16x128xf32>
      %cst_38 = arith.constant dense<0.000000e+00> : vector<16xf32>
      %73 = vector.multi_reduction <add>, %72, %cst_38 [1] : vector<16x128xf32> to vector<16xf32>
      %74 = vector.shape_cast %73 : vector<16xf32> to vector<16x1xf32>
      %75 = vector.extract_strided_slice %71 {offsets = [0, 0], sizes = [16, 1], strides = [1, 1]} : vector<16x128xf32> to vector<16x1xf32>
      %cst_39 = arith.constant 1.000000e+00 : f32
      %76 = vector.broadcast %cst_39 : f32 to vector<16x1xf32>
      %77 = arith.subf %76, %75 : vector<16x1xf32>
      %78 = arith.subf %66, %74 : vector<16x1xf32>
      %79 = arith.mulf %78, %77 : vector<16x1xf32>
      %80 = arith.addf %arg16, %79 : vector<16x1xf32>
      %81 = arith.addf %arg17, %77 : vector<16x1xf32>
      scf.yield %53, %80, %81 : vector<16x128xf32>, vector<16x1xf32>, vector<16x1xf32>
    }
    %c15_i32_21 = arith.constant 15 : i32
    %c0_22 = arith.constant 0 : index
    %c0_23 = arith.constant 0 : index
    %23 = vector.load %arg12[%c0_22, %c0_23] : memref<16x1xf32, #tpu.memory_space<vmem>>, vector<16x1xf32>
    tpu.vector_store %arg12[%c0_22, %c0_23], %22#1 {strides = array<i32>} : memref<16x1xf32, #tpu.memory_space<vmem>>, vector<16x1xf32>,
    %c0_24 = arith.constant 0 : index
    %c0_25 = arith.constant 0 : index
    %24 = vector.load %arg13[%c0_24, %c0_25] : memref<16x1xf32, #tpu.memory_space<vmem>>, vector<16x1xf32>
    tpu.vector_store %arg13[%c0_24, %c0_25], %22#2 {strides = array<i32>} : memref<16x1xf32, #tpu.memory_space<vmem>>, vector<16x1xf32>,
    return
  }
  func.func @transform_0(%arg0: i32) -> (i32, i32, i32) {
    %c0_i32 = arith.constant 0 : i32
    %c0_i32_0 = arith.constant 0 : i32
    %c0_i32_1 = arith.constant 0 : i32
    return %c0_i32, %arg0, %c0_i32_0 : i32, i32, i32
  }
  func.func @transform_1(%arg0: i32) -> (i32, i32) {
    %c0_i32 = arith.constant 0 : i32
    %c0_i32_0 = arith.constant 0 : i32
    %c0_i32_1 = arith.constant 0 : i32
    return %c0_i32, %c0_i32_0 : i32, i32
  }
  func.func @transform_2(%arg0: i32) -> (i32, i32) {
    %c0_i32 = arith.constant 0 : i32
    %c0_i32_0 = arith.constant 0 : i32
    %c0_i32_1 = arith.constant 0 : i32
    return %c0_i32, %c0_i32_0 : i32, i32
  }
  func.func @transform_3(%arg0: i32) -> (i32, i32) {
    %c0_i32 = arith.constant 0 : i32
    %c0_i32_0 = arith.constant 0 : i32
    %c0_i32_1 = arith.constant 0 : i32
    return %c0_i32, %c0_i32_0 : i32, i32
  }
  func.func @transform_4(%arg0: i32) -> (i32, i32) {
    %c0_i32 = arith.constant 0 : i32
    %c0_i32_0 = arith.constant 0 : i32
    return %arg0, %c0_i32 : i32, i32
  }
  func.func @transform_5(%arg0: i32) -> (i32, i32) {
    %c0_i32 = arith.constant 0 : i32
    %c0_i32_0 = arith.constant 0 : i32
    %c0_i32_1 = arith.constant 0 : i32
    return %c0_i32, %c0_i32_0 : i32, i32
  }
  func.func @transform_6(%arg0: i32) -> (i32, i32) {
    %c0_i32 = arith.constant 0 : i32
    %c0_i32_0 = arith.constant 0 : i32
    %c0_i32_1 = arith.constant 0 : i32
    return %c0_i32, %c0_i32_0 : i32, i32
  }
  func.func @transform_7(%arg0: i32) -> (i32, i32) {
    %c0_i32 = arith.constant 0 : i32
    %c0_i32_0 = arith.constant 0 : i32
    %c0_i32_1 = arith.constant 0 : i32
    return %c0_i32, %c0_i32_0 : i32, i32
  }
  func.func @transform_8(%arg0: i32) -> (i32, i32) {
    %c0_i32 = arith.constant 0 : i32
    %c0_i32_0 = arith.constant 0 : i32
    %c0_i32_1 = arith.constant 0 : i32
    return %c0_i32, %c0_i32_0 : i32, i32
  }
  func.func @transform_9(%arg0: i32) -> (i32, i32) {
    %c0_i32 = arith.constant 0 : i32
    %c0_i32_0 = arith.constant 0 : i32
    %c0_i32_1 = arith.constant 0 : i32
    return %c0_i32, %c0_i32_0 : i32, i32
  }
  func.func @transform_10(%arg0: i32) -> (i32, i32) {
    %c0_i32 = arith.constant 0 : i32
    %c0_i32_0 = arith.constant 0 : i32
    %c0_i32_1 = arith.constant 0 : i32
    return %c0_i32, %c0_i32_0 : i32, i32
  }
  func.func @transform_11(%arg0: i32) -> (i32, i32) {
    %c0_i32 = arith.constant 0 : i32
    %c0_i32_0 = arith.constant 0 : i32
    return %arg0, %c0_i32 : i32, i32
  }
  func.func @transform_12(%arg0: i32) -> (i32, i32) {
    %c0_i32 = arith.constant 0 : i32
    %c0_i32_0 = arith.constant 0 : i32
    return %arg0, %c0_i32 : i32, i32
  }
}

</mosaic_0001>

<llo_original>
// kernel: vae_forward.3
$region0: #{vae_forward.3}
  #allocation0 [shape = 'u32[]', space=smem, size = 0x4, offset = 0x4, fixed_abs, tag = 'smem constant byte address 0x4 - core index']
  #allocation1 [shape = 'u32[144,128]{1,0:T(1,128)}', space=vmem, size = 0x12000, scoped, tag = 'internal scratch']
  %s0 = inlined_call_operand.vmem [shape: bf16[16,32,128], index: 0, kind: input, shape index: {}]
  %s1 = inlined_call_operand.vmem [shape: bf16[128,32], index: 1, kind: input, shape index: {}]
  %s2 = inlined_call_operand.vmem [shape: bf16[32,384], index: 2, kind: input, shape index: {}]
  %s3 = inlined_call_operand.vmem [shape: f32[1,384], index: 3, kind: input, shape index: {}]
  %s4 = inlined_call_operand.vmem [shape: f32[32,36], index: 4, kind: input, shape index: {}]
  %s5 = inlined_call_operand.vmem [shape: bf16[36,512], index: 5, kind: input, shape index: {}]
  %s6 = inlined_call_operand.vmem [shape: f32[1,512], index: 6, kind: input, shape index: {}]
  %s7 = inlined_call_operand.vmem [shape: bf16[128,384], index: 7, kind: input, shape index: {}]
  %s8 = inlined_call_operand.vmem [shape: f32[1,384], index: 8, kind: input, shape index: {}]
  %s9 = inlined_call_operand.vmem [shape: bf16[128,128], index: 9, kind: input, shape index: {}]
  %s10 = inlined_call_operand.vmem [shape: f32[1,128], index: 10, kind: input, shape index: {}]
  %s11 = inlined_call_operand.vmem [shape: f32[32,1], index: 11, kind: output, shape index: {0}]
  %s12 = inlined_call_operand.vmem [shape: f32[32,1], index: 12, kind: output, shape index: {1}]
  %13 = xla_tuple %s11, %s12
  %s14 = sld [smem:[#allocation0]]
  $region133: #{vae_forward.3} parent=0
    _
  %s16 = ssub.s32 1, %s14
  %s17 = scalar_select 0, %s16, %s14
  $region1: #{vae_forward.3} parent=0
    #allocation2 [shape = 'u8[131072]{0}', space=vmem, size = 0x20000, scoped, tag = 'input window, operand 0']
    loop: start=0, step=1, limit=4
    $region2: #{vae_forward.3} parent=1 // loop_pre_header
      _
    $region3: #{vae_forward.3} parent=1 // loop_header
      %s19 = sphi 0, %s23
      %p20 = scmp.ge.s32.totalorder %s19, 4
      %s29 = sphi 0, %s31
      %s32 = sphi 0, %s29
      %s33 = sphi 0, %s32
      %s49 = sphi 0, %s33
      %s53 = sphi 0, %s53
      %s55 = sphi 0, %s53
      %s56 = sphi 0, %s55
      %s70 = sphi 0, %s56
      %s74 = sphi 0, %s74
      %s76 = sphi 0, %s74
      %s77 = sphi 0, %s76
      %s91 = sphi 0, %s77
      %s95 = sphi 0, %s95
      %s97 = sphi 0, %s95
      %s98 = sphi 0, %s97
      %s112 = sphi 0, %s98
      %s118 = sphi 0, %s120
      %s121 = sphi 0, %s118
      %s122 = sphi 0, %s121
      %s138 = sphi 0, %s122
      %s142 = sphi 0, %s142
      %s144 = sphi 0, %s142
      %s145 = sphi 0, %s144
      %s159 = sphi 0, %s145
      %s163 = sphi 0, %s163
      %s165 = sphi 0, %s163
      %s166 = sphi 0, %s165
      %s180 = sphi 0, %s166
      %s184 = sphi 0, %s184
      %s186 = sphi 0, %s184
      %s187 = sphi 0, %s186
      %s201 = sphi 0, %s187
      %s205 = sphi 0, %s205
      %s207 = sphi 0, %s205
      %s208 = sphi 0, %s207
      %s222 = sphi 0, %s208
      %s226 = sphi 0, %s226
      %s228 = sphi 0, %s226
      %s229 = sphi 0, %s228
      %s243 = sphi 0, %s229
      %s247 = sphi 0, %s247
      %s249 = sphi 0, %s247
      %s250 = sphi 0, %s249
      %s264 = sphi 0, %s250
      %s270 = sphi 0, %s272
      %s273 = sphi 0, %s270
      %s274 = sphi 0, %s273
      %s290 = sphi 0, %s274
      %s296 = sphi 0, %s298
      %s299 = sphi 0, %s296
      %s300 = sphi 0, %s299
      %s316 = sphi 0, %s300
    $region4: #{vae_forward.3} parent=1 // loop_header_branch
      %22 = sbr.rel (%p20) target = $region8
    $region5: #{vae_forward.3} parent=1 // loop_body
      %s24 = ssub.s32 %s19, 1
      %s25 = ssub.s32 %s19, 2
      %s26 = sadd.s32 %s19, 1
      %s27 = ssub.s32 %s19, %s26
      %p28 = scmp.eq.s32.totalorder %s27, 0
      %s30 = sadd.s32 %s29, 1
      %s31 = scalar_select %p28, %s29, %s30
      %p34 = pneg %p28
      %p35 = scmp.eq.s32.totalorder %s19, 1
      %p36 = por %p34, %p35
      %p37 = scmp.ne.s32.totalorder %s29, %s32
      %p38 = scmp.eq.s32.totalorder %s19, 0
      %p39 = por %p37, %p38
      %p40 = scmp.ne.s32.totalorder %s29, %s32
      %p41 = scmp.eq.s32.totalorder %s24, 1
      %p42 = por %p40, %p41
      %p43 = scmp.ne.s32.totalorder %s32, %s33
      %p44 = scmp.eq.s32.totalorder %s24, 0
      %p45 = por %p43, %p44
      %p46 = scmp.ne.s32.totalorder %s32, %s33
      %p47 = scmp.eq.s32.totalorder %s25, 1
      %p48 = por %p46, %p47
      %p50 = scmp.ne.s32.totalorder %s33, %s49
      %p51 = scmp.eq.s32.totalorder %s25, 0
      %p52 = por %p50, %p51
      %s54 = sadd.s32 %s53, 1
      %p57 = scmp.eq.s32.totalorder %s19, 1
      %p58 = scmp.ne.s32.totalorder %s53, %s55
      %p59 = scmp.eq.s32.totalorder %s19, 0
      %p60 = por %p58, %p59
      %p61 = scmp.ne.s32.totalorder %s53, %s55
      %p62 = scmp.eq.s32.totalorder %s24, 1
      %p63 = por %p61, %p62
      %p64 = scmp.ne.s32.totalorder %s55, %s56
      %p65 = scmp.eq.s32.totalorder %s24, 0
      %p66 = por %p64, %p65
      %p67 = scmp.ne.s32.totalorder %s55, %s56
      %p68 = scmp.eq.s32.totalorder %s25, 1
      %p69 = por %p67, %p68
      %p71 = scmp.ne.s32.totalorder %s56, %s70
      %p72 = scmp.eq.s32.totalorder %s25, 0
      %p73 = por %p71, %p72
      %s75 = sadd.s32 %s74, 1
      %p78 = scmp.eq.s32.totalorder %s19, 1
      %p79 = scmp.ne.s32.totalorder %s74, %s76
      %p80 = scmp.eq.s32.totalorder %s19, 0
      %p81 = por %p79, %p80
      %p82 = scmp.ne.s32.totalorder %s74, %s76
      %p83 = scmp.eq.s32.totalorder %s24, 1
      %p84 = por %p82, %p83
      %p85 = scmp.ne.s32.totalorder %s76, %s77
      %p86 = scmp.eq.s32.totalorder %s24, 0
      %p87 = por %p85, %p86
      %p88 = scmp.ne.s32.totalorder %s76, %s77
      %p89 = scmp.eq.s32.totalorder %s25, 1
      %p90 = por %p88, %p89
      %p92 = scmp.ne.s32.totalorder %s77, %s91
      %p93 = scmp.eq.s32.totalorder %s25, 0
      %p94 = por %p92, %p93
      %s96 = sadd.s32 %s95, 1
      %p99 = scmp.eq.s32.totalorder %s19, 1
      %p100 = scmp.ne.s32.totalorder %s95, %s97
      %p101 = scmp.eq.s32.totalorder %s19, 0
      %p102 = por %p100, %p101
      %p103 = scmp.ne.s32.totalorder %s95, %s97
      %p104 = scmp.eq.s32.totalorder %s24, 1
      %p105 = por %p103, %p104
      %p106 = scmp.ne.s32.totalorder %s97, %s98
      %p107 = scmp.eq.s32.totalorder %s24, 0
      %p108 = por %p106, %p107
      %p109 = scmp.ne.s32.totalorder %s97, %s98
      %p110 = scmp.eq.s32.totalorder %s25, 1
      %p111 = por %p109, %p110
      %p113 = scmp.ne.s32.totalorder %s98, %s112
      %p114 = scmp.eq.s32.totalorder %s25, 0
      %p115 = por %p113, %p114
      %s116 = ssub.s32 %s19, %s26
      %p117 = scmp.eq.s32.totalorder %s116, 0
      %s119 = sadd.s32 %s118, 1
      %s120 = scalar_select %p117, %s118, %s119
      %p123 = pneg %p117
      %p124 = scmp.eq.s32.totalorder %s19, 1
      %p125 = por %p123, %p124
      %p126 = scmp.ne.s32.totalorder %s118, %s121
      %p127 = scmp.eq.s32.totalorder %s19, 0
      %p128 = por %p126, %p127
      %p129 = scmp.ne.s32.totalorder %s118, %s121
      %p130 = scmp.eq.s32.totalorder %s24, 1
      %p131 = por %p129, %p130
      %p132 = scmp.ne.s32.totalorder %s121, %s122
      %p133 = scmp.eq.s32.totalorder %s24, 0
      %p134 = por %p132, %p133
      %p135 = scmp.ne.s32.totalorder %s121, %s122
      %p136 = scmp.eq.s32.totalorder %s25, 1
      %p137 = por %p135, %p136
      %p139 = scmp.ne.s32.totalorder %s122, %s138
      %p140 = scmp.eq.s32.totalorder %s25, 0
      %p141 = por %p139, %p140
      %s143 = sadd.s32 %s142, 1
      %p146 = scmp.eq.s32.totalorder %s19, 1
      %p147 = scmp.ne.s32.totalorder %s142, %s144
      %p148 = scmp.eq.s32.totalorder %s19, 0
      %p149 = por %p147, %p148
      %p150 = scmp.ne.s32.totalorder %s142, %s144
      %p151 = scmp.eq.s32.totalorder %s24, 1
      %p152 = por %p150, %p151
      %p153 = scmp.ne.s32.totalorder %s144, %s145
      %p154 = scmp.eq.s32.totalorder %s24, 0
      %p155 = por %p153, %p154
      %p156 = scmp.ne.s32.totalorder %s144, %s145
      %p157 = scmp.eq.s32.totalorder %s25, 1
      %p158 = por %p156, %p157
      %p160 = scmp.ne.s32.totalorder %s145, %s159
      %p161 = scmp.eq.s32.totalorder %s25, 0
      %p162 = por %p160, %p161
      %s164 = sadd.s32 %s163, 1
      %p167 = scmp.eq.s32.totalorder %s19, 1
      %p168 = scmp.ne.s32.totalorder %s163, %s165
      %p169 = scmp.eq.s32.totalorder %s19, 0
      %p170 = por %p168, %p169
      %p171 = scmp.ne.s32.totalorder %s163, %s165
      %p172 = scmp.eq.s32.totalorder %s24, 1
      %p173 = por %p171, %p172
      %p174 = scmp.ne.s32.totalorder %s165, %s166
      %p175 = scmp.eq.s32.totalorder %s24, 0
      %p176 = por %p174, %p175
      %p177 = scmp.ne.s32.totalorder %s165, %s166
      %p178 = scmp.eq.s32.totalorder %s25, 1
      %p179 = por %p177, %p178
      %p181 = scmp.ne.s32.totalorder %s166, %s180
      %p182 = scmp.eq.s32.totalorder %s25, 0
      %p183 = por %p181, %p182
      %s185 = sadd.s32 %s184, 1
      %p188 = scmp.eq.s32.totalorder %s19, 1
      %p189 = scmp.ne.s32.totalorder %s184, %s186
      %p190 = scmp.eq.s32.totalorder %s19, 0
      %p191 = por %p189, %p190
      %p192 = scmp.ne.s32.totalorder %s184, %s186
      %p193 = scmp.eq.s32.totalorder %s24, 1
      %p194 = por %p192, %p193
      %p195 = scmp.ne.s32.totalorder %s186, %s187
      %p196 = scmp.eq.s32.totalorder %s24, 0
      %p197 = por %p195, %p196
      %p198 = scmp.ne.s32.totalorder %s186, %s187
      %p199 = scmp.eq.s32.totalorder %s25, 1
      %p200 = por %p198, %p199
      %p202 = scmp.ne.s32.totalorder %s187, %s201
      %p203 = scmp.eq.s32.totalorder %s25, 0
      %p204 = por %p202, %p203
      %s206 = sadd.s32 %s205, 1
      %p209 = scmp.eq.s32.totalorder %s19, 1
      %p210 = scmp.ne.s32.totalorder %s205, %s207
      %p211 = scmp.eq.s32.totalorder %s19, 0
      %p212 = por %p210, %p211
      %p213 = scmp.ne.s32.totalorder %s205, %s207
      %p214 = scmp.eq.s32.totalorder %s24, 1
      %p215 = por %p213, %p214
      %p216 = scmp.ne.s32.totalorder %s207, %s208
      %p217 = scmp.eq.s32.totalorder %s24, 0
      %p218 = por %p216, %p217
      %p219 = scmp.ne.s32.totalorder %s207, %s208
      %p220 = scmp.eq.s32.totalorder %s25, 1
      %p221 = por %p219, %p220
      %p223 = scmp.ne.s32.totalorder %s208, %s222
      %p224 = scmp.eq.s32.totalorder %s25, 0
      %p225 = por %p223, %p224
      %s227 = sadd.s32 %s226, 1
      %p230 = scmp.eq.s32.totalorder %s19, 1
      %p231 = scmp.ne.s32.totalorder %s226, %s228
      %p232 = scmp.eq.s32.totalorder %s19, 0
      %p233 = por %p231, %p232
      %p234 = scmp.ne.s32.totalorder %s226, %s228
      %p235 = scmp.eq.s32.totalorder %s24, 1
      %p236 = por %p234, %p235
      %p237 = scmp.ne.s32.totalorder %s228, %s229
      %p238 = scmp.eq.s32.totalorder %s24, 0
      %p239 = por %p237, %p238
      %p240 = scmp.ne.s32.totalorder %s228, %s229
      %p241 = scmp.eq.s32.totalorder %s25, 1
      %p242 = por %p240, %p241
      %p244 = scmp.ne.s32.totalorder %s229, %s243
      %p245 = scmp.eq.s32.totalorder %s25, 0
      %p246 = por %p244, %p245
      %s248 = sadd.s32 %s247, 1
      %p251 = scmp.eq.s32.totalorder %s19, 1
      %p252 = scmp.ne.s32.totalorder %s247, %s249
      %p253 = scmp.eq.s32.totalorder %s19, 0
      %p254 = por %p252, %p253
      %p255 = scmp.ne.s32.totalorder %s247, %s249
      %p256 = scmp.eq.s32.totalorder %s24, 1
      %p257 = por %p255, %p256
      %p258 = scmp.ne.s32.totalorder %s249, %s250
      %p259 = scmp.eq.s32.totalorder %s24, 0
      %p260 = por %p258, %p259
      %p261 = scmp.ne.s32.totalorder %s249, %s250
      %p262 = scmp.eq.s32.totalorder %s25, 1
      %p263 = por %p261, %p262
      %p265 = scmp.ne.s32.totalorder %s250, %s264
      %p266 = scmp.eq.s32.totalorder %s25, 0
      %p267 = por %p265, %p266
      %s268 = ssub.s32 %s19, %s26
      %p269 = scmp.eq.s32.totalorder %s268, 0
      %s271 = sadd.s32 %s270, 1
      %s272 = scalar_select %p269, %s270, %s271
      %p275 = pneg %p269
      %p276 = scmp.eq.s32.totalorder %s19, 1
      %p277 = por %p275, %p276
      %p278 = scmp.ne.s32.totalorder %s270, %s273
      %p279 = scmp.eq.s32.totalorder %s19, 0
      %p280 = por %p278, %p279
      %p281 = scmp.ne.s32.totalorder %s270, %s273
      %p282 = scmp.eq.s32.totalorder %s24, 1
      %p283 = por %p281, %p282
      %p284 = scmp.ne.s32.totalorder %s273, %s274
      %p285 = scmp.eq.s32.totalorder %s24, 0
      %p286 = por %p284, %p285
      %p287 = scmp.ne.s32.totalorder %s273, %s274
      %p288 = scmp.eq.s32.totalorder %s25, 1
      %p289 = por %p287, %p288
      %p291 = scmp.ne.s32.totalorder %s274, %s290
      %p292 = scmp.eq.s32.totalorder %s25, 0
      %p293 = por %p291, %p292
      %s294 = ssub.s32 %s19, %s26
      %p295 = scmp.eq.s32.totalorder %s294, 0
      %s297 = sadd.s32 %s296, 1
      %s298 = scalar_select %p295, %s296, %s297
      %p301 = pneg %p295
      %p302 = scmp.eq.s32.totalorder %s19, 1
      %p303 = por %p301, %p302
      %p304 = scmp.ne.s32.totalorder %s296, %s299
      %p305 = scmp.eq.s32.totalorder %s19, 0
      %p306 = por %p304, %p305
      %p307 = scmp.ne.s32.totalorder %s296, %s299
      %p308 = scmp.eq.s32.totalorder %s24, 1
      %p309 = por %p307, %p308
      %p310 = scmp.ne.s32.totalorder %s299, %s300
      %p311 = scmp.eq.s32.totalorder %s24, 0
      %p312 = por %p310, %p311
      %p313 = scmp.ne.s32.totalorder %s299, %s300
      %p314 = scmp.eq.s32.totalorder %s25, 1
      %p315 = por %p313, %p314
      %p317 = scmp.ne.s32.totalorder %s300, %s316
      %p318 = scmp.eq.s32.totalorder %s25, 0
      %p319 = por %p317, %p318
      %p320 = scmp.le.s32.totalorder 1, %s19
      %p321 = scmp.lt.s32.totalorder %s19, 3
      %p322 = pnand %p320, %p321
      %p323 = pneg %p322
      // Predicated region
      $region9: #{vae_forward.3} parent=5 // pred_check
        _
      $region10: #{vae_forward.3} parent=5 // pred_check_branch
        %325 = sbr.rel (%p322) target = $region12
      $region11: #{vae_forward.3} parent=5 // pred_region
        %s326 = ssub.s32 %s19, 1
        // Predicated region
        $region13: #{vae_forward.3} parent=11 // pred_check
          %p327 = pneg %p66
        $region14: #{vae_forward.3} parent=11 // pred_check_branch
          %329 = sbr.rel (%p327) target = $region16
        $region15: #{vae_forward.3} parent=11 // pred_region
          _
        $region16: #{vae_forward.3} parent=11 // pred_fallthru
          _
        // Predicated region
        $region17: #{vae_forward.3} parent=11 // pred_check
          %p330 = pneg %p87
        $region18: #{vae_forward.3} parent=11 // pred_check_branch
          %332 = sbr.rel (%p330) target = $region20
        $region19: #{vae_forward.3} parent=11 // pred_region
          _
        $region20: #{vae_forward.3} parent=11 // pred_fallthru
          _
        // Predicated region
        $region21: #{vae_forward.3} parent=11 // pred_check
          %p333 = pneg %p108
        $region22: #{vae_forward.3} parent=11 // pred_check_branch
          %335 = sbr.rel (%p333) target = $region24
        $region23: #{vae_forward.3} parent=11 // pred_region
          _
        $region24: #{vae_forward.3} parent=11 // pred_fallthru
          _
        // Predicated region
        $region25: #{vae_forward.3} parent=11 // pred_check
          %p336 = pneg %p155
        $region26: #{vae_forward.3} parent=11 // pred_check_branch
          %338 = sbr.rel (%p336) target = $region28
        $region27: #{vae_forward.3} parent=11 // pred_region
          _
        $region28: #{vae_forward.3} parent=11 // pred_fallthru
          _
        // Predicated region
        $region29: #{vae_forward.3} parent=11 // pred_check
          %p339 = pneg %p176
        $region30: #{vae_forward.3} parent=11 // pred_check_branch
          %341 = sbr.rel (%p339) target = $region32
        $region31: #{vae_forward.3} parent=11 // pred_region
          _
        $region32: #{vae_forward.3} parent=11 // pred_fallthru
          _
        // Predicated region
        $region33: #{vae_forward.3} parent=11 // pred_check
          %p342 = pneg %p197
        $region34: #{vae_forward.3} parent=11 // pred_check_branch
          %344 = sbr.rel (%p342) target = $region36
        $region35: #{vae_forward.3} parent=11 // pred_region
          _
        $region36: #{vae_forward.3} parent=11 // pred_fallthru
          _
        // Predicated region
        $region37: #{vae_forward.3} parent=11 // pred_check
          %p345 = pneg %p218
        $region38: #{vae_forward.3} parent=11 // pred_check_branch
          %347 = sbr.rel (%p345) target = $region40
        $region39: #{vae_forward.3} parent=11 // pred_region
          _
        $region40: #{vae_forward.3} parent=11 // pred_fallthru
          _
        // Predicated region
        $region41: #{vae_forward.3} parent=11 // pred_check
          %p348 = pneg %p239
        $region42: #{vae_forward.3} parent=11 // pred_check_branch
          %350 = sbr.rel (%p348) target = $region44
        $region43: #{vae_forward.3} parent=11 // pred_region
          _
        $region44: #{vae_forward.3} parent=11 // pred_fallthru
          _
        // Predicated region
        $region45: #{vae_forward.3} parent=11 // pred_check
          %p351 = pneg %p260
        $region46: #{vae_forward.3} parent=11 // pred_check_branch
          %353 = sbr.rel (%p351) target = $region48
        $region47: #{vae_forward.3} parent=11 // pred_region
          _
        $region48: #{vae_forward.3} parent=11 // pred_fallthru
          _
      $region12: #{vae_forward.3} parent=5 // pred_fallthru
        _
      %p354 = scmp.lt.s32.totalorder %s19, 2
      // Predicated region
      $region49: #{vae_forward.3} parent=5 // pred_check
        %p355 = pneg %p354
      $region50: #{vae_forward.3} parent=5 // pred_check_branch
        %357 = sbr.rel (%p355) target = $region52
      $region51: #{vae_forward.3} parent=5 // pred_region
        // Predicated region
        $region53: #{vae_forward.3} parent=51 // pred_check
          %p358 = pneg %p39
        $region54: #{vae_forward.3} parent=51 // pred_check_branch
          %360 = sbr.rel (%p358) target = $region56
        $region55: #{vae_forward.3} parent=51 // pred_region
          %s361 = sand.u32 %s29, 1
          %s362 = sand.u32 %s29, 1
          %s363 = smul.addr %s362, 128
          %s364 = scalar_lea.vmem [#allocation2], %s363
          %s365 = smul.u32 2, %s19
          %s366 = smul.addr %s365, 4
          %s367 = scalar_lea.vmem %s0, %s366
          // Predicated region
          $region57: #{vae_forward.3} parent=55 // pred_check
            _
          $region58: #{vae_forward.3} parent=55 // pred_check_branch
            %369 = sbr.rel (0) target = $region60
          $region59: #{vae_forward.3} parent=55 // pred_region
            // Predicated region
            $region61: #{vae_forward.3} parent=59 // pred_check
              _
            $region62: #{vae_forward.3} parent=59 // pred_check_branch
              %371 = sbr.rel target = $region64
            $region63: #{vae_forward.3} parent=59 // pred_region
              // Predicated region
              $region76: #{vae_forward.3} parent=63 // pred_check
                _
              $region77: #{vae_forward.3} parent=63 // pred_check_branch
                %449 = sbr.rel (0) target = $region79
              $region78: #{vae_forward.3} parent=63 // pred_region
                loop: start=0, step=1, limit=1
                $region80: #{vae_forward.3} parent=78 // loop_pre_header
                  _
                $region81: #{vae_forward.3} parent=78 // loop_header
                  %s451 = sphi 0, %s455
                  %p452 = scmp.ge.s32.totalorder %s451, 1
                  %s456 = sphi %s367, %s367
                  %s457 = sphi %s364, %s364
                $region82: #{vae_forward.3} parent=78 // loop_header_branch
                  %454 = sbr.rel (%p452) target = $region86
                $region83: #{vae_forward.3} parent=78 // loop_body
                  _
                $region84: #{vae_forward.3} parent=78 // loop_footer
                  %s455 = sadd.s32 1, %s451
                $region85: #{vae_forward.3} parent=78 // loop_footer_branch
                  %450 = sbr.rel target = $region81
                $region86: #{vae_forward.3} parent=78 // loop_exit
                  _
                %s459 = ssub.s32 16, 1
                loop: start=0, step=1, limit=1
                $region87: #{vae_forward.3} parent=78 // loop_pre_header
                  _
                $region88: #{vae_forward.3} parent=78 // loop_header
                  %s461 = sphi 0, %s465
                  %p462 = scmp.ge.s32.totalorder %s461, 1
                  %s466 = sphi %s367, %s367
                  %s467 = sphi %s364, %s364
                $region89: #{vae_forward.3} parent=78 // loop_header_branch
                  %464 = sbr.rel (%p462) target = $region93
                $region90: #{vae_forward.3} parent=78 // loop_body
                  %v468 = vld [vmem:[%s466] sm:%s459]
                  %469 = vst [vmem:[%s467] sm:%s459] %v468
                  %v470 = vld [vmem:[%s466 + $0x4] sm:%s459]
                  %471 = vst [vmem:[%s467 + $0x4] sm:%s459] %v470
                  %v472 = vld [vmem:[%s466 + $0x10] sm:%s459]
                  %473 = vst [vmem:[%s467 + $0x8] sm:%s459] %v472
                  %v474 = vld [vmem:[%s466 + $0x14] sm:%s459]
                  %475 = vst [vmem:[%s467 + $0xc] sm:%s459] %v474
                  %v476 = vld [vmem:[%s466 + $0x20] sm:%s459]
                  %477 = vst [vmem:[%s467 + $0x10] sm:%s459] %v476
                  %v478 = vld [vmem:[%s466 + $0x24] sm:%s459]
                  %479 = vst [vmem:[%s467 + $0x14] sm:%s459] %v478
                  %v480 = vld [vmem:[%s466 + $0x30] sm:%s459]
                  %481 = vst [vmem:[%s467 + $0x18] sm:%s459] %v480
                  %v482 = vld [vmem:[%s466 + $0x34] sm:%s459]
                  %483 = vst [vmem:[%s467 + $0x1c] sm:%s459] %v482
                  %v484 = vld [vmem:[%s466 + $0x40] sm:%s459]
                  %485 = vst [vmem:[%s467 + $0x20] sm:%s459] %v484
                  %v486 = vld [vmem:[%s466 + $0x44] sm:%s459]
                  %487 = vst [vmem:[%s467 + $0x24] sm:%s459] %v486
                  %v488 = vld [vmem:[%s466 + $0x50] sm:%s459]
                  %489 = vst [vmem:[%s467 + $0x28] sm:%s459] %v488
                  %v490 = vld [vmem:[%s466 + $0x54] sm:%s459]
                  %491 = vst [vmem:[%s467 + $0x2c] sm:%s459] %v490
                  %v492 = vld [vmem:[%s466 + $0x60] sm:%s459]
                  %493 = vst [vmem:[%s467 + $0x30] sm:%s459] %v492
                  %v494 = vld [vmem:[%s466 + $0x64] sm:%s459]
                  %495 = vst [vmem:[%s467 + $0x34] sm:%s459] %v494
                  %v496 = vld [vmem:[%s466 + $0x70] sm:%s459]
                  %497 = vst [vmem:[%s467 + $0x38] sm:%s459] %v496
                  %v498 = vld [vmem:[%s466 + $0x74] sm:%s459]
                  %499 = vst [vmem:[%s467 + $0x3c] sm:%s459] %v498
                  %v500 = vld [vmem:[%s466 + $0x80] sm:%s459]
                  %501 = vst [vmem:[%s467 + $0x40] sm:%s459] %v500
                  %v502 = vld [vmem:[%s466 + $0x84] sm:%s459]
                  %503 = vst [vmem:[%s467 + $0x44] sm:%s459] %v502
                  %v504 = vld [vmem:[%s466 + $0x90] sm:%s459]
                  %505 = vst [vmem:[%s467 + $0x48] sm:%s459] %v504
                  %v506 = vld [vmem:[%s466 + $0x94] sm:%s459]
                  %507 = vst [vmem:[%s467 + $0x4c] sm:%s459] %v506
                  %v508 = vld [vmem:[%s466 + $0xa0] sm:%s459]
                  %509 = vst [vmem:[%s467 + $0x50] sm:%s459] %v508
                  %v510 = vld [vmem:[%s466 + $0xa4] sm:%s459]
                  %511 = vst [vmem:[%s467 + $0x54] sm:%s459] %v510
                  %v512 = vld [vmem:[%s466 + $0xb0] sm:%s459]
                  %513 = vst [vmem:[%s467 + $0x58] sm:%s459] %v512
                  %v514 = vld [vmem:[%s466 + $0xb4] sm:%s459]
                  %515 = vst [vmem:[%s467 + $0x5c] sm:%s459] %v514
                  %v516 = vld [vmem:[%s466 + $0xc0] sm:%s459]
                  %517 = vst [vmem:[%s467 + $0x60] sm:%s459] %v516
                  %v518 = vld [vmem:[%s466 + $0xc4] sm:%s459]
                  %519 = vst [vmem:[%s467 + $0x64] sm:%s459] %v518
                  %v520 = vld [vmem:[%s466 + $0xd0] sm:%s459]
                  %521 = vst [vmem:[%s467 + $0x68] sm:%s459] %v520
                  %v522 = vld [vmem:[%s466 + $0xd4] sm:%s459]
                  %523 = vst [vmem:[%s467 + $0x6c] sm:%s459] %v522
                  %v524 = vld [vmem:[%s466 + $0xe0] sm:%s459]
                  %525 = vst [vmem:[%s467 + $0x70] sm:%s459] %v524
                  %v526 = vld [vmem:[%s466 + $0xe4] sm:%s459]
                  %527 = vst [vmem:[%s467 + $0x74] sm:%s459] %v526
                  %v528 = vld [vmem:[%s466 + $0xf0] sm:%s459]
                  %529 = vst [vmem:[%s467 + $0x78] sm:%s459] %v528
                  %v530 = vld [vmem:[%s466 + $0xf4] sm:%s459]
                  %531 = vst [vmem:[%s467 + $0x7c] sm:%s459] %v530
                $region91: #{vae_forward.3} parent=78 // loop_footer
                  %s465 = sadd.s32 1, %s461
                $region92: #{vae_forward.3} parent=78 // loop_footer_branch
                  %460 = sbr.rel target = $region88
                $region93: #{vae_forward.3} parent=78 // loop_exit
                  _
              $region79: #{vae_forward.3} parent=63 // pred_fallthru
                _
            $region64: #{vae_forward.3} parent=59 // pred_fallthru
              _
            // Predicated region
            $region65: #{vae_forward.3} parent=59 // pred_check
              _
            $region66: #{vae_forward.3} parent=59 // pred_check_branch
              %373 = sbr.rel (0) target = $region68
            $region67: #{vae_forward.3} parent=59 // pred_region
              %s375 = ssub.s32 16, 1
              loop: start=0, step=1, limit=1
              $region69: #{vae_forward.3} parent=67 // loop_pre_header
                _
              $region70: #{vae_forward.3} parent=67 // loop_header
                %s377 = sphi 0, %s381
                %p378 = scmp.ge.s32.totalorder %s377, 1
                %s382 = sphi %s367, %s367
                %s383 = sphi %s364, %s364
              $region71: #{vae_forward.3} parent=67 // loop_header_branch
                %380 = sbr.rel (%p378) target = $region75
              $region72: #{vae_forward.3} parent=67 // loop_body
                %v384 = vld [vmem:[%s382] sm:%s375]
                %385 = vst [vmem:[%s383] sm:%s375] %v384
                %v386 = vld [vmem:[%s382 + $0x4] sm:%s375]
                %387 = vst [vmem:[%s383 + $0x4] sm:%s375] %v386
                %v388 = vld [vmem:[%s382 + $0x10] sm:%s375]
                %389 = vst [vmem:[%s383 + $0x8] sm:%s375] %v388
                %v390 = vld [vmem:[%s382 + $0x14] sm:%s375]
                %391 = vst [vmem:[%s383 + $0xc] sm:%s375] %v390
                %v392 = vld [vmem:[%s382 + $0x20] sm:%s375]
                %393 = vst [vmem:[%s383 + $0x10] sm:%s375] %v392
                %v394 = vld [vmem:[%s382 + $0x24] sm:%s375]
                %395 = vst [vmem:[%s383 + $0x14] sm:%s375] %v394
                %v396 = vld [vmem:[%s382 + $0x30] sm:%s375]
                %397 = vst [vmem:[%s383 + $0x18] sm:%s375] %v396
                %v398 = vld [vmem:[%s382 + $0x34] sm:%s375]
                %399 = vst [vmem:[%s383 + $0x1c] sm:%s375] %v398
                %v400 = vld [vmem:[%s382 + $0x40] sm:%s375]
                %401 = vst [vmem:[%s383 + $0x20] sm:%s375] %v400
                %v402 = vld [vmem:[%s382 + $0x44] sm:%s375]
                %403 = vst [vmem:[%s383 + $0x24] sm:%s375] %v402
                %v404 = vld [vmem:[%s382 + $0x50] sm:%s375]
                %405 = vst [vmem:[%s383 + $0x28] sm:%s375] %v404
                %v406 = vld [vmem:[%s382 + $0x54] sm:%s375]
                %407 = vst [vmem:[%s383 + $0x2c] sm:%s375] %v406
                %v408 = vld [vmem:[%s382 + $0x60] sm:%s375]
                %409 = vst [vmem:[%s383 + $0x30] sm:%s375] %v408
                %v410 = vld [vmem:[%s382 + $0x64] sm:%s375]
                %411 = vst [vmem:[%s383 + $0x34] sm:%s375] %v410
                %v412 = vld [vmem:[%s382 + $0x70] sm:%s375]
                %413 = vst [vmem:[%s383 + $0x38] sm:%s375] %v412
                %v414 = vld [vmem:[%s382 + $0x74] sm:%s375]
                %415 = vst [vmem:[%s383 + $0x3c] sm:%s375] %v414
                %v416 = vld [vmem:[%s382 + $0x80] sm:%s375]
                %417 = vst [vmem:[%s383 + $0x40] sm:%s375] %v416
                %v418 = vld [vmem:[%s382 + $0x84] sm:%s375]
                %419 = vst [vmem:[%s383 + $0x44] sm:%s375] %v418
                %v420 = vld [vmem:[%s382 + $0x90] sm:%s375]
                %421 = vst [vmem:[%s383 + $0x48] sm:%s375] %v420
                %v422 = vld [vmem:[%s382 + $0x94] sm:%s375]
                %423 = vst [vmem:[%s383 + $0x4c] sm:%s375] %v422
                %v424 = vld [vmem:[%s382 + $0xa0] sm:%s375]
                %425 = vst [vmem:[%s383 + $0x50] sm:%s375] %v424
                %v426 = vld [vmem:[%s382 + $0xa4] sm:%s375]
                %427 = vst [vmem:[%s383 + $0x54] sm:%s375] %v426
                %v428 = vld [vmem:[%s382 + $0xb0] sm:%s375]
                %429 = vst [vmem:[%s383 + $0x58] sm:%s375] %v428
                %v430 = vld [vmem:[%s382 + $0xb4] sm:%s375]
                %431 = vst [vmem:[%s383 + $0x5c] sm:%s375] %v430
                %v432 = vld [vmem:[%s382 + $0xc0] sm:%s375]
                %433 = vst [vmem:[%s383 + $0x60] sm:%s375] %v432
                %v434 = vld [vmem:[%s382 + $0xc4] sm:%s375]
                %435 = vst [vmem:[%s383 + $0x64] sm:%s375] %v434
                %v436 = vld [vmem:[%s382 + $0xd0] sm:%s375]
                %437 = vst [vmem:[%s383 + $0x68] sm:%s375] %v436
                %v438 = vld [vmem:[%s382 + $0xd4] sm:%s375]
                %439 = vst [vmem:[%s383 + $0x6c] sm:%s375] %v438
                %v440 = vld [vmem:[%s382 + $0xe0] sm:%s375]
                %441 = vst [vmem:[%s383 + $0x70] sm:%s375] %v440
                %v442 = vld [vmem:[%s382 + $0xe4] sm:%s375]
                %443 = vst [vmem:[%s383 + $0x74] sm:%s375] %v442
                %v444 = vld [vmem:[%s382 + $0xf0] sm:%s375]
                %445 = vst [vmem:[%s383 + $0x78] sm:%s375] %v444
                %v446 = vld [vmem:[%s382 + $0xf4] sm:%s375]
                %447 = vst [vmem:[%s383 + $0x7c] sm:%s375] %v446
              $region73: #{vae_forward.3} parent=67 // loop_footer
                %s381 = sadd.s32 1, %s377
              $region74: #{vae_forward.3} parent=67 // loop_footer_branch
                %376 = sbr.rel target = $region70
              $region75: #{vae_forward.3} parent=67 // loop_exit
                _
            $region68: #{vae_forward.3} parent=59 // pred_fallthru
              _
          $region60: #{vae_forward.3} parent=55 // pred_fallthru
            _
          %532 = vnop
        $region56: #{vae_forward.3} parent=51 // pred_fallthru
          _
        // Predicated region
        $region94: #{vae_forward.3} parent=51 // pred_check
          %p533 = pneg %p128
        $region95: #{vae_forward.3} parent=51 // pred_check_branch
          %535 = sbr.rel (%p533) target = $region97
        $region96: #{vae_forward.3} parent=51 // pred_region
          %s536 = smul.u32 2, %s19
          %p537 = scmp.lt.s32.totalorder %s536, 3
          %s538 = scalar_select %p537, %s536, 3
          %s539 = smul.addr %s538, 8
          %s540 = scalar_lea.vmem %s4, %s539
          %s541 = smul.u32 2, %s19
        $region97: #{vae_forward.3} parent=51 // pred_fallthru
          _
      $region52: #{vae_forward.3} parent=5 // pred_fallthru
        _
      %p542 = scmp.le.s32.totalorder 1, %s19
      %p543 = scmp.lt.s32.totalorder %s19, 3
      %p544 = pnand %p542, %p543
      %p545 = pneg %p544
      // Predicated region
      $region98: #{vae_forward.3} parent=5 // pred_check
        _
      $region99: #{vae_forward.3} parent=5 // pred_check_branch
        %547 = sbr.rel (%p544) target = $region101
      $region100: #{vae_forward.3} parent=5 // pred_region
        %s548 = ssub.s32 %s19, 1
        %s549 = sand.u32 %s32, 1
        %s550 = sand.u32 %s32, 1
        %s551 = smul.addr %s550, 128
        %s552 = scalar_lea.vmem [#allocation2], %s551
        // Predicated region
        $region102: #{vae_forward.3} parent=100 // pred_check
          %p553 = pneg %p45
        $region103: #{vae_forward.3} parent=100 // pred_check_branch
          %555 = sbr.rel (%p553) target = $region105
        $region104: #{vae_forward.3} parent=100 // pred_region
          _
        $region105: #{vae_forward.3} parent=100 // pred_fallthru
          _
        %s556 = sand.u32 %s32, 1
        %s557 = sand.u32 %s32, 1
        %s558 = smul.addr %s557, 128
        %s559 = scalar_lea.vmem [#allocation2], %s558
        %p560 = pneg %p45
        %p561 = pneg %p42
        %p562 = pneg %p66
        %p563 = pneg %p63
        %p564 = pneg %p87
        %p565 = pneg %p84
        %p566 = pneg %p108
        %p567 = pneg %p105
        %s568 = smul.u32 2, %s24
        %p569 = scmp.lt.s32.totalorder %s568, 3
        %s570 = scalar_select %p569, %s568, 3
        %s571 = smul.addr %s570, 8
        %s572 = scalar_lea.vmem %s4, %s571
        %p573 = pneg %p134
        %p574 = pneg %p131
        %p575 = pneg %p155
        %p576 = pneg %p152
        %p577 = pneg %p176
        %p578 = pneg %p173
        %p579 = pneg %p197
        %p580 = pneg %p194
        %p581 = pneg %p218
        %p582 = pneg %p215
        %p583 = pneg %p239
        %p584 = pneg %p236
        %p585 = pneg %p260
        %p586 = pneg %p257
        %p587 = pneg %p286
        %p588 = pneg %p283
        %s589 = smul.u32 2, %s24
        %p590 = scmp.lt.s32.totalorder %s589, 3
        %s591 = scalar_select %p590, %s589, 3
        %s592 = smul.addr %s591, 8
        %s593 = scalar_lea.vmem %s11, %s592
        %p594 = pneg %p312
        %p595 = pneg %p309
        %s596 = smul.u32 2, %s24
        %p597 = scmp.lt.s32.totalorder %s596, 3
        %s598 = scalar_select %p597, %s596, 3
        %s599 = smul.addr %s598, 8
        %s600 = scalar_lea.vmem %s12, %s599
        %s601 = smul.u32 2, %s24
        %s602 = smul.u32 2, %s24
        %p603 = scmp.lt.s32.totalorder %s602, 3
        %s604 = scalar_select %p603, %s602, 3
        %s605 = smul.addr %s604, 8
        %s606 = scalar_lea.vmem %s4, %s605
        %s607 = smul.u32 2, %s24
        %s608 = smul.u32 2, %s24
        %p609 = scmp.lt.s32.totalorder %s608, 3
        %s610 = scalar_select %p609, %s608, 3
        %s611 = smul.addr %s610, 8
        %s612 = scalar_lea.vmem %s11, %s611
        %s613 = smul.u32 2, %s24
        %s614 = smul.u32 2, %s24
        %p615 = scmp.lt.s32.totalorder %s614, 3
        %s616 = scalar_select %p615, %s614, 3
        %s617 = smul.addr %s616, 8
        %s618 = scalar_lea.vmem %s12, %s617
        %s619 = smul.u32 2, %s24
        %v621 = vld [vmem:[%s1] sm:$0xf]
        %v622 = vld [vmem:[%s1 + $0x4] sm:$0xf]
        %v623 = vld [vmem:[%s1 + $0x8] sm:$0xf]
        %v624 = vld [vmem:[%s1 + $0xc] sm:$0xf]
        %v625 = vld [vmem:[%s1 + $0x10] sm:$0xf]
        %v626 = vld [vmem:[%s1 + $0x14] sm:$0xf]
        %v627 = vld [vmem:[%s1 + $0x18] sm:$0xf]
        %v628 = vld [vmem:[%s1 + $0x1c] sm:$0xf]
        %v629 = vld [vmem:[%s1 + $0x20] sm:$0xf]
        %v630 = vld [vmem:[%s1 + $0x24] sm:$0xf]
        %v631 = vld [vmem:[%s1 + $0x28] sm:$0xf]
        %v632 = vld [vmem:[%s1 + $0x2c] sm:$0xf]
        %v633 = vld [vmem:[%s1 + $0x30] sm:$0xf]
        %v634 = vld [vmem:[%s1 + $0x34] sm:$0xf]
        %v635 = vld [vmem:[%s1 + $0x38] sm:$0xf]
        %v636 = vld [vmem:[%s1 + $0x3c] sm:$0xf]
        %v637 = vld [vmem:[%s2] sm:$0xff]
        %v638 = vld [vmem:[%s2 + $0x8] sm:$0xf]
        %v639 = vld [vmem:[%s2 + $0xc] sm:$0xff]
        %v640 = vld [vmem:[%s2 + $0x14] sm:$0xf]
        %v641 = vld [vmem:[%s2 + $0x18] sm:$0xff]
        %v642 = vld [vmem:[%s2 + $0x20] sm:$0xf]
        %v643 = vld [vmem:[%s2 + $0x24] sm:$0xff]
        %v644 = vld [vmem:[%s2 + $0x2c] sm:$0xf]
        %v645 = vld [vmem:[%s3] sm:$0x7]
        %v647 = vlaneseq
        %v648 = vshrl.u32 %v647, 7
        %v649 = vsub.s32 0, %v648
        %v650 = vrot.slane %v645, %v649
        %v651 = vlaneseq
        %v652 = vshrl.u32 %v651, 7
        %v653 = vsub.s32 1, %v652
        %v654 = vrot.slane %v645, %v653
        %v655 = vlaneseq
        %v656 = vshrl.u32 %v655, 7
        %v657 = vsub.s32 2, %v656
        %v658 = vrot.slane %v645, %v657
        %v678 = vunpack.c.l.b16 %v621
        %v679 = vunpack.c.l.b16 %v622
        %v680 = vunpack.c.l.b16 %v623
        %v681 = vunpack.c.l.b16 %v624
        %v682 = vunpack.c.l.b16 %v625
        %v683 = vunpack.c.l.b16 %v626
        %v684 = vunpack.c.l.b16 %v627
        %v685 = vunpack.c.l.b16 %v628
        %v686 = vunpack.c.l.b16 %v629
        %v687 = vunpack.c.l.b16 %v630
        %v688 = vunpack.c.l.b16 %v631
        %v689 = vunpack.c.l.b16 %v632
        %v690 = vunpack.c.l.b16 %v633
        %v691 = vunpack.c.l.b16 %v634
        %v692 = vunpack.c.l.b16 %v635
        %v693 = vunpack.c.l.b16 %v636
        %v694 = vpack.c.b16 %v679, %v678
        %v695 = vpack.c.b16 %v681, %v680
        %v696 = vpack.c.b16 %v683, %v682
        %v697 = vpack.c.b16 %v685, %v684
        %v698 = vpack.c.b16 %v687, %v686
        %v699 = vpack.c.b16 %v689, %v688
        %v700 = vpack.c.b16 %v691, %v690
        %v701 = vpack.c.b16 %v693, %v692
        %v710 = vunpack.c.l.b16 %v637
        %v711 = vunpack.c.h.b16 %v637
        %v712 = vunpack.c.l.b16 %v638
        %v713 = vunpack.c.l.b16 %v639
        %v714 = vunpack.c.h.b16 %v639
        %v715 = vunpack.c.l.b16 %v640
        %v716 = vunpack.c.l.b16 %v641
        %v717 = vunpack.c.h.b16 %v641
        %v718 = vunpack.c.l.b16 %v642
        %v719 = vunpack.c.l.b16 %v643
        %v720 = vunpack.c.h.b16 %v643
        %v721 = vunpack.c.l.b16 %v644
        %v722 = vpack.c.b16 %v713, %v710
        %v723 = vpack.c.b16 %v714, %v711
        %v724 = vpack.c.b16 %v715, %v712
        %v725 = vpack.c.b16 %v719, %v716
        %v726 = vpack.c.b16 %v720, %v717
        %v727 = vpack.c.b16 %v721, %v718
        %vm734 = vcmask 261120
        %v736 = vsel %vm734, %v694, 0
        %v739 = vsel %vm734, %v695, 0
        %v742 = vsel %vm734, %v696, 0
        %v745 = vsel %vm734, %v697, 0
        %v748 = vsel %vm734, %v698, 0
        %v751 = vsel %vm734, %v699, 0
        %v754 = vsel %vm734, %v700, 0
        %v757 = vsel %vm734, %v701, 0
        %759 = vmatprep.subr.bf16.mxu0 0
        %760 = vmatpush1.bf16.msra.mxu0 0
        %761 = vmatprep.subr.bf16.mxu0 0
        %762 = vmatpush1.bf16.msra.mxu0 0
        %763 = vmatprep.subr.bf16.mxu0 0
        %764 = vmatpush1.bf16.msra.mxu0 0
        %765 = vmatprep.subr.bf16.mxu0 0
        %766 = vmatpush1.bf16.msra.mxu0 0
        %767 = vmatprep.subr.bf16.mxu0 0
        %768 = vmatpush1.bf16.msra.mxu0 0
        %769 = vmatprep.subr.bf16.mxu0 0
        %770 = vmatpush1.bf16.msra.mxu0 0
        %771 = vmatprep.subr.bf16.mxu0 %v726
        %772 = vmatpush1.bf16.msra.mxu0 %v725
        %773 = vmatprep.subr.bf16.mxu0 %v723
        %774 = vmatpush1.bf16.msra.mxu0 %v722
        %775 = vmatprep.subr.bf16.mxu0 0
        %776 = vmatpush2.bf16.msra.mxu0 0
        %777 = vmatprep.subr.bf16.mxu0 0
        %778 = vmatpush2.bf16.msra.mxu0 0
        %779 = vmatprep.subr.bf16.mxu0 0
        %780 = vmatpush2.bf16.msra.mxu0 0
        %781 = vmatprep.subr.bf16.mxu0 0
        %782 = vmatpush2.bf16.msra.mxu0 0
        %783 = vmatprep.subr.bf16.mxu0 0
        %784 = vmatpush2.bf16.msra.mxu0 0
        %785 = vmatprep.subr.bf16.mxu0 0
        %786 = vmatpush2.bf16.msra.mxu0 0
        %787 = vmatprep.subr.bf16.mxu0 0
        %788 = vmatpush2.bf16.msra.mxu0 0
        %789 = vmatprep.subr.bf16.mxu0 0
        %790 = vmatpush2.bf16.msra.mxu0 0
        %791 = vmatprep.mubr.bf16.mxu0 0
        %792 = vmatmul.mubr.bf16.gmra.mxu0 %v736
        %v793 = vpop.f32.mrf.mxu0
        %v794 = vadd.f32 %v650, %v793
        %v795 = vpop.f32.mrf.mxu0
        %v796 = vadd.f32 %v654, %v795
        %v797 = vpop.f32.mrf.mxu0
        %v798 = vadd.f32 %v650, %v797
        %v799 = vpop.f32.mrf.mxu0
        %v800 = vadd.f32 %v654, %v799
        %801 = vmatprep.mubr.bf16.mxu0 0
        %802 = vmatmul.mubr.bf16.gmra.mxu0 %v739
        %v803 = vpop.f32.mrf.mxu0
        %v804 = vadd.f32 %v650, %v803
        %v805 = vpop.f32.mrf.mxu0
        %v806 = vadd.f32 %v654, %v805
        %v807 = vpop.f32.mrf.mxu0
        %v808 = vadd.f32 %v650, %v807
        %v809 = vpop.f32.mrf.mxu0
        %v810 = vadd.f32 %v654, %v809
        %811 = vmatprep.mubr.bf16.mxu0 0
        %812 = vmatmul.mubr.bf16.gmra.mxu0 %v742
        %v813 = vpop.f32.mrf.mxu0
        %v814 = vadd.f32 %v650, %v813
        %v815 = vpop.f32.mrf.mxu0
        %v816 = vadd.f32 %v654, %v815
        %v817 = vpop.f32.mrf.mxu0
        %v818 = vadd.f32 %v650, %v817
        %v819 = vpop.f32.mrf.mxu0
        %v820 = vadd.f32 %v654, %v819
        %821 = vmatprep.mubr.bf16.mxu0 0
        %822 = vmatmul.mubr.bf16.gmra.mxu0 %v745
        %v823 = vpop.f32.mrf.mxu0
        %v824 = vadd.f32 %v650, %v823
        %v825 = vpop.f32.mrf.mxu0
        %v826 = vadd.f32 %v654, %v825
        %v827 = vpop.f32.mrf.mxu0
        %v828 = vadd.f32 %v650, %v827
        %v829 = vpop.f32.mrf.mxu0
        %v830 = vadd.f32 %v654, %v829
        %831 = vmatprep.mubr.bf16.mxu0 0
        %832 = vmatmul.mubr.bf16.gmra.mxu0 %v748
        %v833 = vpop.f32.mrf.mxu0
        %v834 = vadd.f32 %v650, %v833
        %v835 = vpop.f32.mrf.mxu0
        %v836 = vadd.f32 %v654, %v835
        %v837 = vpop.f32.mrf.mxu0
        %v838 = vadd.f32 %v650, %v837
        %v839 = vpop.f32.mrf.mxu0
        %v840 = vadd.f32 %v654, %v839
        %841 = vmatprep.mubr.bf16.mxu0 0
        %842 = vmatmul.mubr.bf16.gmra.mxu0 %v751
        %v843 = vpop.f32.mrf.mxu0
        %v844 = vadd.f32 %v650, %v843
        %v845 = vpop.f32.mrf.mxu0
        %v846 = vadd.f32 %v654, %v845
        %v847 = vpop.f32.mrf.mxu0
        %v848 = vadd.f32 %v650, %v847
        %v849 = vpop.f32.mrf.mxu0
        %v850 = vadd.f32 %v654, %v849
        %851 = vmatprep.mubr.bf16.mxu0 0
        %852 = vmatmul.mubr.bf16.gmra.mxu0 %v754
        %v853 = vpop.f32.mrf.mxu0
        %v854 = vadd.f32 %v650, %v853
        %v855 = vpop.f32.mrf.mxu0
        %v856 = vadd.f32 %v654, %v855
        %v857 = vpop.f32.mrf.mxu0
        %v858 = vadd.f32 %v650, %v857
        %v859 = vpop.f32.mrf.mxu0
        %v860 = vadd.f32 %v654, %v859
        %861 = vmatprep.mubr.bf16.mxu0 0
        %862 = vmatmul.mubr.bf16.gmra.mxu0 %v757
        %v863 = vpop.f32.mrf.mxu0
        %v864 = vadd.f32 %v650, %v863
        %v865 = vpop.f32.mrf.mxu0
        %v866 = vadd.f32 %v654, %v865
        %v867 = vpop.f32.mrf.mxu0
        %v868 = vadd.f32 %v650, %v867
        %v869 = vpop.f32.mrf.mxu0
        %v870 = vadd.f32 %v654, %v869
        %871 = vdwg.mxu0
        %872 = vmatprep.subr.bf16.mxu0 0
        %873 = vmatpush1.bf16.msra.mxu0 0
        %874 = vmatprep.subr.bf16.mxu0 0
        %875 = vmatpush1.bf16.msra.mxu0 0
        %876 = vmatprep.subr.bf16.mxu0 0
        %877 = vmatpush1.bf16.msra.mxu0 0
        %878 = vmatprep.subr.bf16.mxu0 0
        %879 = vmatpush1.bf16.msra.mxu0 0
        %880 = vmatprep.subr.bf16.mxu0 0
        %881 = vmatpush1.bf16.msra.mxu0 0
        %882 = vmatprep.subr.bf16.mxu0 0
        %883 = vmatpush1.bf16.msra.mxu0 0
        %884 = vmatprep.subr.bf16.mxu0 0
        %885 = vmatpush1.bf16.msra.mxu0 %v727
        %886 = vmatprep.subr.bf16.mxu0 0
        %887 = vmatpush1.bf16.msra.mxu0 %v724
        %888 = vmatprep.subr.bf16.mxu0 0
        %889 = vmatpush2.bf16.msra.mxu0 0
        %890 = vmatprep.subr.bf16.mxu0 0
        %891 = vmatpush2.bf16.msra.mxu0 0
        %892 = vmatprep.subr.bf16.mxu0 0
        %893 = vmatpush2.bf16.msra.mxu0 0
        %894 = vmatprep.subr.bf16.mxu0 0
        %895 = vmatpush2.bf16.msra.mxu0 0
        %896 = vmatprep.subr.bf16.mxu0 0
        %897 = vmatpush2.bf16.msra.mxu0 0
        %898 = vmatprep.subr.bf16.mxu0 0
        %899 = vmatpush2.bf16.msra.mxu0 0
        %900 = vmatprep.subr.bf16.mxu0 0
        %901 = vmatpush2.bf16.msra.mxu0 0
        %902 = vmatprep.subr.bf16.mxu0 0
        %903 = vmatpush2.bf16.msra.mxu0 0
        %904 = vmatprep.mubr.bf16.mxu0 0
        %905 = vmatmul.mubr.bf16.gmra.mxu0 %v736
        %v906 = vpop.f32.mrf.mxu0
        %v907 = vadd.f32 %v658, %v906
        %v908 = vpop.f32.mrf.mxu0
        %v909 = vpop.f32.mrf.mxu0
        %v910 = vadd.f32 %v658, %v909
        %v911 = vpop.f32.mrf.mxu0
        %912 = vmatprep.mubr.bf16.mxu0 0
        %913 = vmatmul.mubr.bf16.gmra.mxu0 %v739
        %v914 = vpop.f32.mrf.mxu0
        %v915 = vadd.f32 %v658, %v914
        %v916 = vpop.f32.mrf.mxu0
        %v917 = vpop.f32.mrf.mxu0
        %v918 = vadd.f32 %v658, %v917
        %v919 = vpop.f32.mrf.mxu0
        %920 = vmatprep.mubr.bf16.mxu0 0
        %921 = vmatmul.mubr.bf16.gmra.mxu0 %v742
        %v922 = vpop.f32.mrf.mxu0
        %v923 = vadd.f32 %v658, %v922
        %v924 = vpop.f32.mrf.mxu0
        %v925 = vpop.f32.mrf.mxu0
        %v926 = vadd.f32 %v658, %v925
        %v927 = vpop.f32.mrf.mxu0
        %928 = vmatprep.mubr.bf16.mxu0 0
        %929 = vmatmul.mubr.bf16.gmra.mxu0 %v745
        %v930 = vpop.f32.mrf.mxu0
        %v931 = vadd.f32 %v658, %v930
        %v932 = vpop.f32.mrf.mxu0
        %v933 = vpop.f32.mrf.mxu0
        %v934 = vadd.f32 %v658, %v933
        %v935 = vpop.f32.mrf.mxu0
        %936 = vmatprep.mubr.bf16.mxu0 0
        %937 = vmatmul.mubr.bf16.gmra.mxu0 %v748
        %v938 = vpop.f32.mrf.mxu0
        %v939 = vadd.f32 %v658, %v938
        %v940 = vpop.f32.mrf.mxu0
        %v941 = vpop.f32.mrf.mxu0
        %v942 = vadd.f32 %v658, %v941
        %v943 = vpop.f32.mrf.mxu0
        %944 = vmatprep.mubr.bf16.mxu0 0
        %945 = vmatmul.mubr.bf16.gmra.mxu0 %v751
        %v946 = vpop.f32.mrf.mxu0
        %v947 = vadd.f32 %v658, %v946
        %v948 = vpop.f32.mrf.mxu0
        %v949 = vpop.f32.mrf.mxu0
        %v950 = vadd.f32 %v658, %v949
        %v951 = vpop.f32.mrf.mxu0
        %952 = vmatprep.mubr.bf16.mxu0 0
        %953 = vmatmul.mubr.bf16.gmra.mxu0 %v754
        %v954 = vpop.f32.mrf.mxu0
        %v955 = vadd.f32 %v658, %v954
        %v956 = vpop.f32.mrf.mxu0
        %v957 = vpop.f32.mrf.mxu0
        %v958 = vadd.f32 %v658, %v957
        %v959 = vpop.f32.mrf.mxu0
        %960 = vmatprep.mubr.bf16.mxu0 0
        %961 = vmatmul.mubr.bf16.gmra.mxu0 %v757
        %v962 = vpop.f32.mrf.mxu0
        %v963 = vadd.f32 %v658, %v962
        %v964 = vpop.f32.mrf.mxu0
        %v965 = vpop.f32.mrf.mxu0
        %v966 = vadd.f32 %v658, %v965
        %v967 = vpop.f32.mrf.mxu0
        %968 = vdwg.mxu0
        %v969 = vpack.c.bf16 %v798, %v794
        %v970 = vpack.c.bf16 %v800, %v796
        %v971 = vpack.c.bf16 %v910, %v907
        %v972 = vpack.c.bf16 %v808, %v804
        %v973 = vpack.c.bf16 %v810, %v806
        %v974 = vpack.c.bf16 %v918, %v915
        %v975 = vpack.c.bf16 %v818, %v814
        %v976 = vpack.c.bf16 %v820, %v816
        %v977 = vpack.c.bf16 %v926, %v923
        %v978 = vpack.c.bf16 %v828, %v824
        %v979 = vpack.c.bf16 %v830, %v826
        %v980 = vpack.c.bf16 %v934, %v931
        %v981 = vpack.c.bf16 %v838, %v834
        %v982 = vpack.c.bf16 %v840, %v836
        %v983 = vpack.c.bf16 %v942, %v939
        %v984 = vpack.c.bf16 %v848, %v844
        %v985 = vpack.c.bf16 %v850, %v846
        %v986 = vpack.c.bf16 %v950, %v947
        %v987 = vpack.c.bf16 %v858, %v854
        %v988 = vpack.c.bf16 %v860, %v856
        %v989 = vpack.c.bf16 %v958, %v955
        %v990 = vpack.c.bf16 %v868, %v864
        %v991 = vpack.c.bf16 %v870, %v866
        %v992 = vpack.c.bf16 %v966, %v963
        %v993 = vld [vmem:[%s606] sm:$0xff]
        %v994 = vld [vmem:[%s606 + $0x8] sm:$0xff]
        %v995 = vpack.c.bf16 %v994, %v993
        %v996 = vld [vmem:[%s5] sm:$0xff]
        %v997 = vld [vmem:[%s5 + $0x8] sm:$0xff]
        %v998 = vld [vmem:[%s5 + $0x10] sm:$0xff]
        %v999 = vld [vmem:[%s5 + $0x18] sm:$0xff]
        %v1000 = vld [vmem:[%s5 + $0x20] sm:$0xff]
        %v1001 = vld [vmem:[%s5 + $0x28] sm:$0xff]
        %v1002 = vld [vmem:[%s5 + $0x30] sm:$0xff]
        %v1003 = vld [vmem:[%s5 + $0x38] sm:$0xff]
        %v1004 = vld [vmem:[%s5 + $0x40] sm:$0x33]
        %v1005 = vld [vmem:[%s5 + $0x48] sm:$0x33]
        %v1006 = vld [vmem:[%s6] sm:$0xf]
        %v1008 = vlaneseq
        %v1009 = vshrl.u32 %v1008, 7
        %v1010 = vsub.s32 0, %v1009
        %v1011 = vrot.slane %v1006, %v1010
        %v1012 = vlaneseq
        %v1013 = vshrl.u32 %v1012, 7
        %v1014 = vsub.s32 1, %v1013
        %v1015 = vrot.slane %v1006, %v1014
        %v1016 = vlaneseq
        %v1017 = vshrl.u32 %v1016, 7
        %v1018 = vsub.s32 2, %v1017
        %v1019 = vrot.slane %v1006, %v1018
        %v1020 = vlaneseq
        %v1021 = vshrl.u32 %v1020, 7
        %v1022 = vsub.s32 3, %v1021
        %v1023 = vrot.slane %v1006, %v1022
        %v1038 = vunpack.c.l.b16 %v996
        %v1039 = vunpack.c.h.b16 %v996
        %v1040 = vunpack.c.l.b16 %v997
        %v1041 = vunpack.c.h.b16 %v997
        %v1042 = vunpack.c.l.b16 %v998
        %v1043 = vunpack.c.h.b16 %v998
        %v1044 = vunpack.c.l.b16 %v999
        %v1045 = vunpack.c.h.b16 %v999
        %v1046 = vunpack.c.l.b16 %v1000
        %v1047 = vunpack.c.h.b16 %v1000
        %v1048 = vunpack.c.l.b16 %v1001
        %v1049 = vunpack.c.h.b16 %v1001
        %v1050 = vunpack.c.l.b16 %v1002
        %v1051 = vunpack.c.h.b16 %v1002
        %v1052 = vunpack.c.l.b16 %v1003
        %v1053 = vunpack.c.h.b16 %v1003
        %v1054 = vunpack.c.l.b16 %v1004
        %v1055 = vunpack.c.h.b16 %v1004
        %v1056 = vunpack.c.l.b16 %v1005
        %v1057 = vunpack.c.h.b16 %v1005
        %v1058 = vpack.c.b16 %v1042, %v1038
        %v1059 = vpack.c.b16 %v1043, %v1039
        %v1060 = vpack.c.b16 %v1044, %v1040
        %v1061 = vpack.c.b16 %v1045, %v1041
        %v1062 = vpack.c.b16 %v1050, %v1046
        %v1063 = vpack.c.b16 %v1051, %v1047
        %v1064 = vpack.c.b16 %v1052, %v1048
        %v1065 = vpack.c.b16 %v1053, %v1049
        %v1066 = vpack.c.b16 %v1054, %v1054
        %v1067 = vpack.c.b16 %v1055, %v1055
        %v1068 = vpack.c.b16 %v1056, %v1056
        %v1069 = vpack.c.b16 %v1057, %v1057
        %vm1078 = vcmask 293888
        %v1080 = vsel %vm1078, %v995, 0
        %vm1082 = vcmask 1041408
        %v1084 = vsel %vm1082, %v1066, 0
        %v1087 = vsel %vm1082, %v1067, 0
        %v1090 = vsel %vm1082, %v1068, 0
        %v1093 = vsel %vm1082, %v1069, 0
        %1095 = vmatprep.subr.bf16.mxu0 0
        %1096 = vmatpush1.bf16.msra.mxu0 0
        %1097 = vmatprep.subr.bf16.mxu0 0
        %1098 = vmatpush1.bf16.msra.mxu0 0
        %1099 = vmatprep.subr.bf16.mxu0 0
        %1100 = vmatpush1.bf16.msra.mxu0 0
        %1101 = vmatprep.subr.bf16.mxu0 0
        %1102 = vmatpush1.bf16.msra.mxu0 0
        %1103 = vmatprep.subr.bf16.mxu0 0
        %1104 = vmatpush1.bf16.msra.mxu0 0
        %1105 = vmatprep.subr.bf16.mxu0 %v1087
        %1106 = vmatpush1.bf16.msra.mxu0 %v1084
        %1107 = vmatprep.subr.bf16.mxu0 %v1063
        %1108 = vmatpush1.bf16.msra.mxu0 %v1062
        %1109 = vmatprep.subr.bf16.mxu0 %v1059
        %1110 = vmatpush1.bf16.msra.mxu0 %v1058
        %1111 = vmatprep.subr.bf16.mxu0 0
        %1112 = vmatpush2.bf16.msra.mxu0 0
        %1113 = vmatprep.subr.bf16.mxu0 0
        %1114 = vmatpush2.bf16.msra.mxu0 0
        %1115 = vmatprep.subr.bf16.mxu0 0
        %1116 = vmatpush2.bf16.msra.mxu0 0
        %1117 = vmatprep.subr.bf16.mxu0 0
        %1118 = vmatpush2.bf16.msra.mxu0 0
        %1119 = vmatprep.subr.bf16.mxu0 0
        %1120 = vmatpush2.bf16.msra.mxu0 0
        %1121 = vmatprep.subr.bf16.mxu0 0
        %1122 = vmatpush2.bf16.msra.mxu0 0
        %1123 = vmatprep.subr.bf16.mxu0 0
        %1124 = vmatpush2.bf16.msra.mxu0 0
        %1125 = vmatprep.subr.bf16.mxu0 0
        %1126 = vmatpush2.bf16.msra.mxu0 0
        %1127 = vmatprep.mubr.bf16.mxu0 0
        %1128 = vmatmul.mubr.bf16.gmra.mxu0 %v1080
        %v1129 = vpop.f32.mrf.mxu0
        %v1130 = vadd.f32 %v1011, %v1129
        %v1131 = vpop.f32.mrf.mxu0
        %v1132 = vadd.f32 %v1015, %v1131
        %v1133 = vpop.f32.mrf.mxu0
        %v1134 = vadd.f32 %v1011, %v1133
        %v1135 = vpop.f32.mrf.mxu0
        %v1136 = vadd.f32 %v1015, %v1135
        %1137 = vdwg.mxu0
        %1138 = vmatprep.subr.bf16.mxu0 0
        %1139 = vmatpush1.bf16.msra.mxu0 0
        %1140 = vmatprep.subr.bf16.mxu0 0
        %1141 = vmatpush1.bf16.msra.mxu0 0
        %1142 = vmatprep.subr.bf16.mxu0 0
        %1143 = vmatpush1.bf16.msra.mxu0 0
        %1144 = vmatprep.subr.bf16.mxu0 0
        %1145 = vmatpush1.bf16.msra.mxu0 0
        %1146 = vmatprep.subr.bf16.mxu0 0
        %1147 = vmatpush1.bf16.msra.mxu0 0
        %1148 = vmatprep.subr.bf16.mxu0 %v1093
        %1149 = vmatpush1.bf16.msra.mxu0 %v1090
        %1150 = vmatprep.subr.bf16.mxu0 %v1065
        %1151 = vmatpush1.bf16.msra.mxu0 %v1064
        %1152 = vmatprep.subr.bf16.mxu0 %v1061
        %1153 = vmatpush1.bf16.msra.mxu0 %v1060
        %1154 = vmatprep.subr.bf16.mxu0 0
        %1155 = vmatpush2.bf16.msra.mxu0 0
        %1156 = vmatprep.subr.bf16.mxu0 0
        %1157 = vmatpush2.bf16.msra.mxu0 0
        %1158 = vmatprep.subr.bf16.mxu0 0
        %1159 = vmatpush2.bf16.msra.mxu0 0
        %1160 = vmatprep.subr.bf16.mxu0 0
        %1161 = vmatpush2.bf16.msra.mxu0 0
        %1162 = vmatprep.subr.bf16.mxu0 0
        %1163 = vmatpush2.bf16.msra.mxu0 0
        %1164 = vmatprep.subr.bf16.mxu0 0
        %1165 = vmatpush2.bf16.msra.mxu0 0
        %1166 = vmatprep.subr.bf16.mxu0 0
        %1167 = vmatpush2.bf16.msra.mxu0 0
        %1168 = vmatprep.subr.bf16.mxu0 0
        %1169 = vmatpush2.bf16.msra.mxu0 0
        %1170 = vmatprep.mubr.bf16.mxu0 0
        %1171 = vmatmul.mubr.bf16.gmra.mxu0 %v1080
        %v1172 = vpop.f32.mrf.mxu0
        %v1173 = vadd.f32 %v1019, %v1172
        %v1174 = vpop.f32.mrf.mxu0
        %v1175 = vadd.f32 %v1023, %v1174
        %v1176 = vpop.f32.mrf.mxu0
        %v1177 = vadd.f32 %v1019, %v1176
        %v1178 = vpop.f32.mrf.mxu0
        %v1179 = vadd.f32 %v1023, %v1178
        %1180 = vdwg.mxu0
        %v1181 = vld [vmem:[%s7] sm:$0xff]
        %v1182 = vld [vmem:[%s7 + $0x8] sm:$0xf]
        %v1183 = vld [vmem:[%s7 + $0xc] sm:$0xff]
        %v1184 = vld [vmem:[%s7 + $0x14] sm:$0xf]
        %v1185 = vld [vmem:[%s7 + $0x18] sm:$0xff]
        %v1186 = vld [vmem:[%s7 + $0x20] sm:$0xf]
        %v1187 = vld [vmem:[%s7 + $0x24] sm:$0xff]
        %v1188 = vld [vmem:[%s7 + $0x2c] sm:$0xf]
        %v1189 = vld [vmem:[%s7 + $0x30] sm:$0xff]
        %v1190 = vld [vmem:[%s7 + $0x38] sm:$0xf]
        %v1191 = vld [vmem:[%s7 + $0x3c] sm:$0xff]
        %v1192 = vld [vmem:[%s7 + $0x44] sm:$0xf]
        %v1193 = vld [vmem:[%s7 + $0x48] sm:$0xff]
        %v1194 = vld [vmem:[%s7 + $0x50] sm:$0xf]
        %v1195 = vld [vmem:[%s7 + $0x54] sm:$0xff]
        %v1196 = vld [vmem:[%s7 + $0x5c] sm:$0xf]
        %v1197 = vld [vmem:[%s7 + $0x60] sm:$0xff]
        %v1198 = vld [vmem:[%s7 + $0x68] sm:$0xf]
        %v1199 = vld [vmem:[%s7 + $0x6c] sm:$0xff]
        %v1200 = vld [vmem:[%s7 + $0x74] sm:$0xf]
        %v1201 = vld [vmem:[%s7 + $0x78] sm:$0xff]
        %v1202 = vld [vmem:[%s7 + $0x80] sm:$0xf]
        %v1203 = vld [vmem:[%s7 + $0x84] sm:$0xff]
        %v1204 = vld [vmem:[%s7 + $0x8c] sm:$0xf]
        %v1205 = vld [vmem:[%s7 + $0x90] sm:$0xff]
        %v1206 = vld [vmem:[%s7 + $0x98] sm:$0xf]
        %v1207 = vld [vmem:[%s7 + $0x9c] sm:$0xff]
        %v1208 = vld [vmem:[%s7 + $0xa4] sm:$0xf]
        %v1209 = vld [vmem:[%s7 + $0xa8] sm:$0xff]
        %v1210 = vld [vmem:[%s7 + $0xb0] sm:$0xf]
        %v1211 = vld [vmem:[%s7 + $0xb4] sm:$0xff]
        %v1212 = vld [vmem:[%s7 + $0xbc] sm:$0xf]
        %v1213 = vld [vmem:[%s8] sm:$0x7]
        %v1214 = vld [vmem:[%s9] sm:$0xf]
        %v1215 = vld [vmem:[%s9 + $0x4] sm:$0xf]
        %v1216 = vld [vmem:[%s9 + $0x8] sm:$0xf]
        %v1217 = vld [vmem:[%s9 + $0xc] sm:$0xf]
        %v1218 = vld [vmem:[%s9 + $0x10] sm:$0xf]
        %v1219 = vld [vmem:[%s9 + $0x14] sm:$0xf]
        %v1220 = vld [vmem:[%s9 + $0x18] sm:$0xf]
        %v1221 = vld [vmem:[%s9 + $0x1c] sm:$0xf]
        %v1222 = vld [vmem:[%s9 + $0x20] sm:$0xf]
        %v1223 = vld [vmem:[%s9 + $0x24] sm:$0xf]
        %v1224 = vld [vmem:[%s9 + $0x28] sm:$0xf]
        %v1225 = vld [vmem:[%s9 + $0x2c] sm:$0xf]
        %v1226 = vld [vmem:[%s9 + $0x30] sm:$0xf]
        %v1227 = vld [vmem:[%s9 + $0x34] sm:$0xf]
        %v1228 = vld [vmem:[%s9 + $0x38] sm:$0xf]
        %v1229 = vld [vmem:[%s9 + $0x3c] sm:$0xf]
        %v1230 = vld [vmem:[%s10] sm:$0x1]
        loop: start=0, step=1, limit=15
        $region106: #{vae_forward.3} parent=100 // loop_pre_header
          _
        $region107: #{vae_forward.3} parent=100 // loop_header
          %s1232 = sphi 0, %s1236
          %p1233 = scmp.ge.s32.totalorder %s1232, 15
          %v1237 = vphi %v1130, %v1607
          %v1238 = vphi %v1134, %v1608
          %v1239 = vphi 0.0, %v1745
          %v1240 = vphi 0.0, %v1746
          %v1241 = vphi 0.0, %v1747
          %v1242 = vphi 0.0, %v1748
        $region108: #{vae_forward.3} parent=100 // loop_header_branch
          %1235 = sbr.rel (%p1233) target = $region112
        $region109: #{vae_forward.3} parent=100 // loop_body
          %s1243 = smul.u32 %s1232, 2
          %s1244 = smul.addr %s1243, 4
          %s1245 = scalar_lea.vmem %s552, %s1244 [#allocation2]
          %v1246 = vld [vmem:[%s1245] sm:$0xf]
          %v1247 = vld [vmem:[%s1245 + $0x4] sm:$0xf]
          %v1250 = vunpack.c.l.b16 %v1246
          %v1251 = vunpack.c.l.b16 %v1247
          %v1252 = vpack.c.b16 %v1251, %v1250
          %1254 = vmatprep.subr.bf16.mxu0 %v991
          %1255 = vmatpush1.bf16.msra.mxu0 %v990
          %1256 = vmatprep.subr.bf16.mxu0 %v988
          %1257 = vmatpush1.bf16.msra.mxu0 %v987
          %1258 = vmatprep.subr.bf16.mxu0 %v985
          %1259 = vmatpush1.bf16.msra.mxu0 %v984
          %1260 = vmatprep.subr.bf16.mxu0 %v982
          %1261 = vmatpush1.bf16.msra.mxu0 %v981
          %1262 = vmatprep.subr.bf16.mxu0 %v979
          %1263 = vmatpush1.bf16.msra.mxu0 %v978
          %1264 = vmatprep.subr.bf16.mxu0 %v976
          %1265 = vmatpush1.bf16.msra.mxu0 %v975
          %1266 = vmatprep.subr.bf16.mxu0 %v973
          %1267 = vmatpush1.bf16.msra.mxu0 %v972
          %1268 = vmatprep.subr.bf16.mxu0 %v970
          %1269 = vmatpush1.bf16.msra.mxu0 %v969
          %1270 = vmatprep.subr.bf16.mxu0 0
          %1271 = vmatpush2.bf16.msra.mxu0 0
          %1272 = vmatprep.subr.bf16.mxu0 0
          %1273 = vmatpush2.bf16.msra.mxu0 0
          %1274 = vmatprep.subr.bf16.mxu0 0
          %1275 = vmatpush2.bf16.msra.mxu0 0
          %1276 = vmatprep.subr.bf16.mxu0 0
          %1277 = vmatpush2.bf16.msra.mxu0 0
          %1278 = vmatprep.subr.bf16.mxu0 0
          %1279 = vmatpush2.bf16.msra.mxu0 0
          %1280 = vmatprep.subr.bf16.mxu0 0
          %1281 = vmatpush2.bf16.msra.mxu0 0
          %1282 = vmatprep.subr.bf16.mxu0 0
          %1283 = vmatpush2.bf16.msra.mxu0 0
          %1284 = vmatprep.subr.bf16.mxu0 0
          %1285 = vmatpush2.bf16.msra.mxu0 0
          %1286 = vmatprep.mubr.bf16.mxu0 0
          %1287 = vmatmul.mubr.bf16.gmra.mxu0 %v1252
          %v1288 = vpop.f32.mrf.mxu0
          %v1289 = vadd.f32 %v1132, %v1288
          %v1290 = vpop.f32.mrf.mxu0
          %v1291 = vadd.f32 %v1173, %v1290
          %v1292 = vpop.f32.mrf.mxu0
          %v1293 = vadd.f32 %v1136, %v1292
          %v1294 = vpop.f32.mrf.mxu0
          %v1295 = vadd.f32 %v1177, %v1294
          %1296 = vdwg.mxu0
          %1297 = vmatprep.subr.bf16.mxu0 0
          %1298 = vmatpush1.bf16.msra.mxu0 %v992
          %1299 = vmatprep.subr.bf16.mxu0 0
          %1300 = vmatpush1.bf16.msra.mxu0 %v989
          %1301 = vmatprep.subr.bf16.mxu0 0
          %1302 = vmatpush1.bf16.msra.mxu0 %v986
          %1303 = vmatprep.subr.bf16.mxu0 0
          %1304 = vmatpush1.bf16.msra.mxu0 %v983
          %1305 = vmatprep.subr.bf16.mxu0 0
          %1306 = vmatpush1.bf16.msra.mxu0 %v980
          %1307 = vmatprep.subr.bf16.mxu0 0
          %1308 = vmatpush1.bf16.msra.mxu0 %v977
          %1309 = vmatprep.subr.bf16.mxu0 0
          %1310 = vmatpush1.bf16.msra.mxu0 %v974
          %1311 = vmatprep.subr.bf16.mxu0 0
          %1312 = vmatpush1.bf16.msra.mxu0 %v971
          %1313 = vmatprep.subr.bf16.mxu0 0
          %1314 = vmatpush2.bf16.msra.mxu0 0
          %1315 = vmatprep.subr.bf16.mxu0 0
          %1316 = vmatpush2.bf16.msra.mxu0 0
          %1317 = vmatprep.subr.bf16.mxu0 0
          %1318 = vmatpush2.bf16.msra.mxu0 0
          %1319 = vmatprep.subr.bf16.mxu0 0
          %1320 = vmatpush2.bf16.msra.mxu0 0
          %1321 = vmatprep.subr.bf16.mxu0 0
          %1322 = vmatpush2.bf16.msra.mxu0 0
          %1323 = vmatprep.subr.bf16.mxu0 0
          %1324 = vmatpush2.bf16.msra.mxu0 0
          %1325 = vmatprep.subr.bf16.mxu0 0
          %1326 = vmatpush2.bf16.msra.mxu0 0
          %1327 = vmatprep.subr.bf16.mxu0 0
          %1328 = vmatpush2.bf16.msra.mxu0 0
          %1329 = vmatprep.mubr.bf16.mxu0 0
          %1330 = vmatmul.mubr.bf16.gmra.mxu0 %v1252
          %v1331 = vpop.f32.mrf.mxu0
          %v1332 = vadd.f32 %v1175, %v1331
          %v1333 = vpop.f32.mrf.mxu0
          %v1334 = vpop.f32.mrf.mxu0
          %v1335 = vadd.f32 %v1179, %v1334
          %v1336 = vpop.f32.mrf.mxu0
          %1337 = vdwg.mxu0
          %v1338 = vpack.c.bf16 %v1238, %v1237
          %v1340 = vlaneseq
          %v1341 = vshrl.u32 %v1340, 7
          %v1342 = vsub.s32 0, %v1341
          %v1343 = vrot.slane %v1213, %v1342
          %v1344 = vlaneseq
          %v1345 = vshrl.u32 %v1344, 7
          %v1346 = vsub.s32 1, %v1345
          %v1347 = vrot.slane %v1213, %v1346
          %v1348 = vlaneseq
          %v1349 = vshrl.u32 %v1348, 7
          %v1350 = vsub.s32 2, %v1349
          %v1351 = vrot.slane %v1213, %v1350
          %v1387 = vunpack.c.l.b16 %v1181
          %v1388 = vunpack.c.h.b16 %v1181
          %v1389 = vunpack.c.l.b16 %v1182
          %v1390 = vunpack.c.l.b16 %v1183
          %v1391 = vunpack.c.h.b16 %v1183
          %v1392 = vunpack.c.l.b16 %v1184
          %v1393 = vunpack.c.l.b16 %v1185
          %v1394 = vunpack.c.h.b16 %v1185
          %v1395 = vunpack.c.l.b16 %v1186
          %v1396 = vunpack.c.l.b16 %v1187
          %v1397 = vunpack.c.h.b16 %v1187
          %v1398 = vunpack.c.l.b16 %v1188
          %v1399 = vunpack.c.l.b16 %v1189
          %v1400 = vunpack.c.h.b16 %v1189
          %v1401 = vunpack.c.l.b16 %v1190
          %v1402 = vunpack.c.l.b16 %v1191
          %v1403 = vunpack.c.h.b16 %v1191
          %v1404 = vunpack.c.l.b16 %v1192
          %v1405 = vunpack.c.l.b16 %v1193
          %v1406 = vunpack.c.h.b16 %v1193
          %v1407 = vunpack.c.l.b16 %v1194
          %v1408 = vunpack.c.l.b16 %v1195
          %v1409 = vunpack.c.h.b16 %v1195
          %v1410 = vunpack.c.l.b16 %v1196
          %v1411 = vunpack.c.l.b16 %v1197
          %v1412 = vunpack.c.h.b16 %v1197
          %v1413 = vunpack.c.l.b16 %v1198
          %v1414 = vunpack.c.l.b16 %v1199
          %v1415 = vunpack.c.h.b16 %v1199
          %v1416 = vunpack.c.l.b16 %v1200
          %v1417 = vunpack.c.l.b16 %v1201
          %v1418 = vunpack.c.h.b16 %v1201
          %v1419 = vunpack.c.l.b16 %v1202
          %v1420 = vunpack.c.l.b16 %v1203
          %v1421 = vunpack.c.h.b16 %v1203
          %v1422 = vunpack.c.l.b16 %v1204
          %v1423 = vunpack.c.l.b16 %v1205
          %v1424 = vunpack.c.h.b16 %v1205
          %v1425 = vunpack.c.l.b16 %v1206
          %v1426 = vunpack.c.l.b16 %v1207
          %v1427 = vunpack.c.h.b16 %v1207
          %v1428 = vunpack.c.l.b16 %v1208
          %v1429 = vunpack.c.l.b16 %v1209
          %v1430 = vunpack.c.h.b16 %v1209
          %v1431 = vunpack.c.l.b16 %v1210
          %v1432 = vunpack.c.l.b16 %v1211
          %v1433 = vunpack.c.h.b16 %v1211
          %v1434 = vunpack.c.l.b16 %v1212
          %v1435 = vpack.c.b16 %v1390, %v1387
          %v1436 = vpack.c.b16 %v1391, %v1388
          %v1437 = vpack.c.b16 %v1392, %v1389
          %v1438 = vpack.c.b16 %v1396, %v1393
          %v1439 = vpack.c.b16 %v1397, %v1394
          %v1440 = vpack.c.b16 %v1398, %v1395
          %v1441 = vpack.c.b16 %v1402, %v1399
          %v1442 = vpack.c.b16 %v1403, %v1400
          %v1443 = vpack.c.b16 %v1404, %v1401
          %v1444 = vpack.c.b16 %v1408, %v1405
          %v1445 = vpack.c.b16 %v1409, %v1406
          %v1446 = vpack.c.b16 %v1410, %v1407
          %v1447 = vpack.c.b16 %v1414, %v1411
          %v1448 = vpack.c.b16 %v1415, %v1412
          %v1449 = vpack.c.b16 %v1416, %v1413
          %v1450 = vpack.c.b16 %v1420, %v1417
          %v1451 = vpack.c.b16 %v1421, %v1418
          %v1452 = vpack.c.b16 %v1422, %v1419
          %v1453 = vpack.c.b16 %v1426, %v1423
          %v1454 = vpack.c.b16 %v1427, %v1424
          %v1455 = vpack.c.b16 %v1428, %v1425
          %v1456 = vpack.c.b16 %v1432, %v1429
          %v1457 = vpack.c.b16 %v1433, %v1430
          %v1458 = vpack.c.b16 %v1434, %v1431
          %1483 = vmatprep.subr.bf16.mxu0 %v1457
          %1484 = vmatpush1.bf16.msra.mxu0 %v1456
          %1485 = vmatprep.subr.bf16.mxu0 %v1454
          %1486 = vmatpush1.bf16.msra.mxu0 %v1453
          %1487 = vmatprep.subr.bf16.mxu0 %v1451
          %1488 = vmatpush1.bf16.msra.mxu0 %v1450
          %1489 = vmatprep.subr.bf16.mxu0 %v1448
          %1490 = vmatpush1.bf16.msra.mxu0 %v1447
          %1491 = vmatprep.subr.bf16.mxu0 %v1445
          %1492 = vmatpush1.bf16.msra.mxu0 %v1444
          %1493 = vmatprep.subr.bf16.mxu0 %v1442
          %1494 = vmatpush1.bf16.msra.mxu0 %v1441
          %1495 = vmatprep.subr.bf16.mxu0 %v1439
          %1496 = vmatpush1.bf16.msra.mxu0 %v1438
          %1497 = vmatprep.subr.bf16.mxu0 %v1436
          %1498 = vmatpush1.bf16.msra.mxu0 %v1435
          %1499 = vmatprep.subr.bf16.mxu0 0
          %1500 = vmatpush2.bf16.msra.mxu0 0
          %1501 = vmatprep.subr.bf16.mxu0 0
          %1502 = vmatpush2.bf16.msra.mxu0 0
          %1503 = vmatprep.subr.bf16.mxu0 0
          %1504 = vmatpush2.bf16.msra.mxu0 0
          %1505 = vmatprep.subr.bf16.mxu0 0
          %1506 = vmatpush2.bf16.msra.mxu0 0
          %1507 = vmatprep.subr.bf16.mxu0 0
          %1508 = vmatpush2.bf16.msra.mxu0 0
          %1509 = vmatprep.subr.bf16.mxu0 0
          %1510 = vmatpush2.bf16.msra.mxu0 0
          %1511 = vmatprep.subr.bf16.mxu0 0
          %1512 = vmatpush2.bf16.msra.mxu0 0
          %1513 = vmatprep.subr.bf16.mxu0 0
          %1514 = vmatpush2.bf16.msra.mxu0 0
          %1515 = vmatprep.mubr.bf16.mxu0 0
          %1516 = vmatmul.mubr.bf16.gmra.mxu0 %v1338
          %v1517 = vpop.f32.mrf.mxu0
          %v1518 = vadd.f32 %v1343, %v1517
          %v1519 = vpop.f32.mrf.mxu0
          %v1520 = vadd.f32 %v1347, %v1519
          %v1521 = vpop.f32.mrf.mxu0
          %v1522 = vadd.f32 %v1343, %v1521
          %v1523 = vpop.f32.mrf.mxu0
          %v1524 = vadd.f32 %v1347, %v1523
          %1525 = vdwg.mxu0
          %1526 = vmatprep.subr.bf16.mxu0 0
          %1527 = vmatpush1.bf16.msra.mxu0 %v1458
          %1528 = vmatprep.subr.bf16.mxu0 0
          %1529 = vmatpush1.bf16.msra.mxu0 %v1455
          %1530 = vmatprep.subr.bf16.mxu0 0
          %1531 = vmatpush1.bf16.msra.mxu0 %v1452
          %1532 = vmatprep.subr.bf16.mxu0 0
          %1533 = vmatpush1.bf16.msra.mxu0 %v1449
          %1534 = vmatprep.subr.bf16.mxu0 0
          %1535 = vmatpush1.bf16.msra.mxu0 %v1446
          %1536 = vmatprep.subr.bf16.mxu0 0
          %1537 = vmatpush1.bf16.msra.mxu0 %v1443
          %1538 = vmatprep.subr.bf16.mxu0 0
          %1539 = vmatpush1.bf16.msra.mxu0 %v1440
          %1540 = vmatprep.subr.bf16.mxu0 0
          %1541 = vmatpush1.bf16.msra.mxu0 %v1437
          %1542 = vmatprep.subr.bf16.mxu0 0
          %1543 = vmatpush2.bf16.msra.mxu0 0
          %1544 = vmatprep.subr.bf16.mxu0 0
          %1545 = vmatpush2.bf16.msra.mxu0 0
          %1546 = vmatprep.subr.bf16.mxu0 0
          %1547 = vmatpush2.bf16.msra.mxu0 0
          %1548 = vmatprep.subr.bf16.mxu0 0
          %1549 = vmatpush2.bf16.msra.mxu0 0
          %1550 = vmatprep.subr.bf16.mxu0 0
          %1551 = vmatpush2.bf16.msra.mxu0 0
          %1552 = vmatprep.subr.bf16.mxu0 0
          %1553 = vmatpush2.bf16.msra.mxu0 0
          %1554 = vmatprep.subr.bf16.mxu0 0
          %1555 = vmatpush2.bf16.msra.mxu0 0
          %1556 = vmatprep.subr.bf16.mxu0 0
          %1557 = vmatpush2.bf16.msra.mxu0 0
          %1558 = vmatprep.mubr.bf16.mxu0 0
          %1559 = vmatmul.mubr.bf16.gmra.mxu0 %v1338
          %v1560 = vpop.f32.mrf.mxu0
          %v1561 = vadd.f32 %v1351, %v1560
          %v1562 = vpop.f32.mrf.mxu0
          %v1563 = vpop.f32.mrf.mxu0
          %v1564 = vadd.f32 %v1351, %v1563
          %v1565 = vpop.f32.mrf.mxu0
          %1566 = vdwg.mxu0
          %v1567 = vadd.f32 %v1289, %v1518
          %v1568 = vadd.f32 %v1291, %v1520
          %v1569 = vadd.f32 %v1293, %v1522
          %v1570 = vadd.f32 %v1295, %v1524
          %v1571 = vxor.u32 %v1567, 2147483648
          %v1572 = vxor.u32 %v1568, 2147483648
          %v1573 = vxor.u32 %v1569, 2147483648
          %v1574 = vxor.u32 %v1570, 2147483648
          %v1575 = vmul.f32 %v1571, 1.442695
          %v1576 = vpow.pop %v1575
          %v1577 = vmul.f32 %v1572, 1.442695
          %v1578 = vpow.pop %v1577
          %v1579 = vmul.f32 %v1573, 1.442695
          %v1580 = vpow.pop %v1579
          %v1581 = vmul.f32 %v1574, 1.442695
          %v1582 = vpow.pop %v1581
          %v1583 = vadd.f32 %v1576, 1.0
          %v1584 = vadd.f32 %v1578, 1.0
          %v1585 = vadd.f32 %v1580, 1.0
          %v1586 = vadd.f32 %v1582, 1.0
          %v1587 = vrcp.pop %v1583
          %v1588 = vmul.f32 1.0, %v1587
          %v1589 = vrcp.pop %v1584
          %v1590 = vmul.f32 1.0, %v1589
          %v1591 = vrcp.pop %v1585
          %v1592 = vmul.f32 1.0, %v1591
          %v1593 = vrcp.pop %v1586
          %v1594 = vmul.f32 1.0, %v1593
          %v1595 = vmul.f32 %v1588, %v1561
          %v1596 = vmul.f32 %v1592, %v1564
          %v1597 = vadd.f32 %v1332, %v1595
          %v1598 = vadd.f32 %v1335, %v1596
          %v1599 = vtanh.pop %v1597
          %v1600 = vtanh.pop %v1598
          %v1601 = vsub.f32 1.0, %v1590
          %v1602 = vsub.f32 1.0, %v1594
          %v1603 = vmul.f32 %v1601, %v1599
          %v1604 = vmul.f32 %v1602, %v1600
          %v1605 = vmul.f32 %v1590, %v1237
          %v1606 = vmul.f32 %v1594, %v1238
          %v1607 = vadd.f32 %v1603, %v1605
          %v1608 = vadd.f32 %v1604, %v1606
          %v1609 = vpack.c.bf16 %v1608, %v1607
          %v1611 = vlaneseq
          %v1612 = vshrl.u32 %v1611, 7
          %v1613 = vsub.s32 0, %v1612
          %v1614 = vrot.slane %v1230, %v1613
          %v1632 = vunpack.c.l.b16 %v1214
          %v1633 = vunpack.c.l.b16 %v1215
          %v1634 = vunpack.c.l.b16 %v1216
          %v1635 = vunpack.c.l.b16 %v1217
          %v1636 = vunpack.c.l.b16 %v1218
          %v1637 = vunpack.c.l.b16 %v1219
          %v1638 = vunpack.c.l.b16 %v1220
          %v1639 = vunpack.c.l.b16 %v1221
          %v1640 = vunpack.c.l.b16 %v1222
          %v1641 = vunpack.c.l.b16 %v1223
          %v1642 = vunpack.c.l.b16 %v1224
          %v1643 = vunpack.c.l.b16 %v1225
          %v1644 = vunpack.c.l.b16 %v1226
          %v1645 = vunpack.c.l.b16 %v1227
          %v1646 = vunpack.c.l.b16 %v1228
          %v1647 = vunpack.c.l.b16 %v1229
          %v1648 = vpack.c.b16 %v1633, %v1632
          %v1649 = vpack.c.b16 %v1635, %v1634
          %v1650 = vpack.c.b16 %v1637, %v1636
          %v1651 = vpack.c.b16 %v1639, %v1638
          %v1652 = vpack.c.b16 %v1641, %v1640
          %v1653 = vpack.c.b16 %v1643, %v1642
          %v1654 = vpack.c.b16 %v1645, %v1644
          %v1655 = vpack.c.b16 %v1647, %v1646
          %1664 = vmatprep.subr.bf16.mxu0 0
          %1665 = vmatpush1.bf16.msra.mxu0 %v1655
          %1666 = vmatprep.subr.bf16.mxu0 0
          %1667 = vmatpush1.bf16.msra.mxu0 %v1654
          %1668 = vmatprep.subr.bf16.mxu0 0
          %1669 = vmatpush1.bf16.msra.mxu0 %v1653
          %1670 = vmatprep.subr.bf16.mxu0 0
          %1671 = vmatpush1.bf16.msra.mxu0 %v1652
          %1672 = vmatprep.subr.bf16.mxu0 0
          %1673 = vmatpush1.bf16.msra.mxu0 %v1651
          %1674 = vmatprep.subr.bf16.mxu0 0
          %1675 = vmatpush1.bf16.msra.mxu0 %v1650
          %1676 = vmatprep.subr.bf16.mxu0 0
          %1677 = vmatpush1.bf16.msra.mxu0 %v1649
          %1678 = vmatprep.subr.bf16.mxu0 0
          %1679 = vmatpush1.bf16.msra.mxu0 %v1648
          %1680 = vmatprep.subr.bf16.mxu0 0
          %1681 = vmatpush2.bf16.msra.mxu0 0
          %1682 = vmatprep.subr.bf16.mxu0 0
          %1683 = vmatpush2.bf16.msra.mxu0 0
          %1684 = vmatprep.subr.bf16.mxu0 0
          %1685 = vmatpush2.bf16.msra.mxu0 0
          %1686 = vmatprep.subr.bf16.mxu0 0
          %1687 = vmatpush2.bf16.msra.mxu0 0
          %1688 = vmatprep.subr.bf16.mxu0 0
          %1689 = vmatpush2.bf16.msra.mxu0 0
          %1690 = vmatprep.subr.bf16.mxu0 0
          %1691 = vmatpush2.bf16.msra.mxu0 0
          %1692 = vmatprep.subr.bf16.mxu0 0
          %1693 = vmatpush2.bf16.msra.mxu0 0
          %1694 = vmatprep.subr.bf16.mxu0 0
          %1695 = vmatpush2.bf16.msra.mxu0 0
          %1696 = vmatprep.mubr.bf16.mxu0 0
          %1697 = vmatmul.mubr.bf16.gmra.mxu0 %v1609
          %v1698 = vpop.f32.mrf.mxu0
          %v1699 = vadd.f32 %v1614, %v1698
          %v1700 = vpop.f32.mrf.mxu0
          %v1701 = vpop.f32.mrf.mxu0
          %v1702 = vadd.f32 %v1614, %v1701
          %v1703 = vpop.f32.mrf.mxu0
          %1704 = vdwg.mxu0
          %1705 = vmax.xlane.f32.xlu0 %v1699
          %v1706 = vpop.xlane.xlu0 %1705
          %1707 = vmax.xlane.f32.xlu0 %v1702
          %v1708 = vpop.xlane.xlu0 %1707
          %v1709 = vsub.f32 %v1699, %v1706
          %v1710 = vsub.f32 %v1702, %v1708
          %v1711 = vmul.f32 %v1709, 1.442695
          %v1712 = vpow.pop %v1711
          %v1713 = vmul.f32 %v1710, 1.442695
          %v1714 = vpow.pop %v1713
          %1715 = vadd.xlane.f32.xlu0 %v1712
          %v1716 = vpop.xlane.xlu0 %1715
          %1717 = vadd.xlane.f32.xlu0 %v1714
          %v1718 = vpop.xlane.xlu0 %1717
          %v1719 = vlog2.pop %v1716
          %v1720 = vmul.f32 %v1719, 0.6931472
          %v1721 = vlog2.pop %v1718
          %v1722 = vmul.f32 %v1721, 0.6931472
          %v1723 = vadd.f32 %v1720, %v1706
          %v1724 = vadd.f32 %v1722, %v1708
          %s1725 = sadd.s32 %s1232, 1
          %s1726 = smul.u32 %s1725, 2
          %s1727 = smul.addr %s1726, 4
          %s1728 = scalar_lea.vmem %s552, %s1727 [#allocation2]
          %v1729 = vld [vmem:[%s1728] sm:$0xf]
          %v1730 = vld [vmem:[%s1728 + $0x4] sm:$0xf]
          %v1731 = vunpack.c.l.bf16 %v1729
          %v1732 = vunpack.c.l.bf16 %v1730
          %v1733 = vmul.f32 %v1699, %v1731
          %v1734 = vmul.f32 %v1702, %v1732
          %1735 = vadd.xlane.f32.xlu0 %v1733
          %v1736 = vpop.xlane.xlu0 %1735
          %1737 = vadd.xlane.f32.xlu0 %v1734
          %v1738 = vpop.xlane.xlu0 %1737
          %v1739 = vsub.f32 1.0, %v1731
          %v1740 = vsub.f32 1.0, %v1732
          %v1741 = vsub.f32 %v1723, %v1736
          %v1742 = vsub.f32 %v1724, %v1738
          %v1743 = vmul.f32 %v1741, %v1739
          %v1744 = vmul.f32 %v1742, %v1740
          %v1745 = vadd.f32 %v1239, %v1743
          %v1746 = vadd.f32 %v1240, %v1744
          %v1747 = vadd.f32 %v1241, %v1739
          %v1748 = vadd.f32 %v1242, %v1740
        $region110: #{vae_forward.3} parent=100 // loop_footer
          %s1236 = sadd.s32 1, %s1232
        $region111: #{vae_forward.3} parent=100 // loop_footer_branch
          %1231 = sbr.rel target = $region107
        $region112: #{vae_forward.3} parent=100 // loop_exit
          _
        %vm1749 = vcmask 7168
        %1750 = vst.msk [vmem:[%s612] sm:$0xff] %vm1749, %v1239
        %1751 = vst.msk [vmem:[%s612 + $0x8] sm:$0xff] %vm1749, %v1240
        %1752 = vst.msk [vmem:[%s618] sm:$0xff] %vm1749, %v1241
        %1753 = vst.msk [vmem:[%s618 + $0x8] sm:$0xff] %vm1749, %v1242
        %s1754 = smul.u32 2, %s24
        %p1755 = scmp.lt.s32.totalorder %s1754, 3
        %s1756 = scalar_select %p1755, %s1754, 3
        %s1757 = smul.addr %s1756, 8
        %s1758 = scalar_lea.vmem %s11, %s1757
        %s1759 = smul.u32 2, %s24
        %p1760 = scmp.lt.s32.totalorder %s1759, 3
        %s1761 = scalar_select %p1760, %s1759, 3
        %s1762 = smul.addr %s1761, 8
        %s1763 = scalar_lea.vmem %s12, %s1762
        // Predicated region
        $region113: #{vae_forward.3} parent=100 // pred_check
          %p1764 = pneg %p283
        $region114: #{vae_forward.3} parent=100 // pred_check_branch
          %1766 = sbr.rel (%p1764) target = $region116
        $region115: #{vae_forward.3} parent=100 // pred_region
          %s1767 = smul.u32 2, %s24
        $region116: #{vae_forward.3} parent=100 // pred_fallthru
          _
        // Predicated region
        $region117: #{vae_forward.3} parent=100 // pred_check
          %p1768 = pneg %p309
        $region118: #{vae_forward.3} parent=100 // pred_check_branch
          %1770 = sbr.rel (%p1768) target = $region120
        $region119: #{vae_forward.3} parent=100 // pred_region
          %s1771 = smul.u32 2, %s24
        $region120: #{vae_forward.3} parent=100 // pred_fallthru
          _
      $region101: #{vae_forward.3} parent=5 // pred_fallthru
        _
      %p1772 = scmp.le.s32.totalorder 2, %s19
      // Predicated region
      $region121: #{vae_forward.3} parent=5 // pred_check
        %p1773 = pneg %p1772
      $region122: #{vae_forward.3} parent=5 // pred_check_branch
        %1775 = sbr.rel (%p1773) target = $region124
      $region123: #{vae_forward.3} parent=5 // pred_region
        %s1776 = ssub.s32 %s19, 2
        // Predicated region
        $region125: #{vae_forward.3} parent=123 // pred_check
          %p1777 = pneg %p289
        $region126: #{vae_forward.3} parent=123 // pred_check_branch
          %1779 = sbr.rel (%p1777) target = $region128
        $region127: #{vae_forward.3} parent=123 // pred_region
          %s1780 = smul.u32 2, %s25
          %p1781 = scmp.lt.s32.totalorder %s1780, 3
          %s1782 = scalar_select %p1781, %s1780, 3
          %s1783 = smul.addr %s1782, 8
          %s1784 = scalar_lea.vmem %s11, %s1783
        $region128: #{vae_forward.3} parent=123 // pred_fallthru
          _
        // Predicated region
        $region129: #{vae_forward.3} parent=123 // pred_check
          %p1785 = pneg %p315
        $region130: #{vae_forward.3} parent=123 // pred_check_branch
          %1787 = sbr.rel (%p1785) target = $region132
        $region131: #{vae_forward.3} parent=123 // pred_region
          %s1788 = smul.u32 2, %s25
          %p1789 = scmp.lt.s32.totalorder %s1788, 3
          %s1790 = scalar_select %p1789, %s1788, 3
          %s1791 = smul.addr %s1790, 8
          %s1792 = scalar_lea.vmem %s12, %s1791
        $region132: #{vae_forward.3} parent=123 // pred_fallthru
          _
      $region124: #{vae_forward.3} parent=5 // pred_fallthru
        _
    $region6: #{vae_forward.3} parent=1 // loop_footer
      %s23 = sadd.s32 1, %s19
    $region7: #{vae_forward.3} parent=1 // loop_footer_branch
      %18 = sbr.rel target = $region3
    $region8: #{vae_forward.3} parent=1 // loop_exit
      _

// kernel: vae_forward.2
$region0: #{vae_forward.2}
  #allocation0 [shape = 'u32[]', space=smem, size = 0x4, offset = 0x4, fixed_abs, tag = 'smem constant byte address 0x4 - core index']
  #allocation1 [shape = 'u32[144,128]{1,0:T(1,128)}', space=vmem, size = 0x12000, scoped, tag = 'internal scratch']
  %s0 = inlined_call_operand.vmem [shape: bf16[16,32,128], index: 0, kind: input, shape index: {}]
  %s1 = inlined_call_operand.vmem [shape: bf16[128,32], index: 1, kind: input, shape index: {}]
  %s2 = inlined_call_operand.vmem [shape: bf16[32,384], index: 2, kind: input, shape index: {}]
  %s3 = inlined_call_operand.vmem [shape: f32[1,384], index: 3, kind: input, shape index: {}]
  %s4 = inlined_call_operand.vmem [shape: bf16[128,384], index: 4, kind: input, shape index: {}]
  %s5 = inlined_call_operand.vmem [shape: f32[1,384], index: 5, kind: input, shape index: {}]
  %s6 = inlined_call_operand.vmem [shape: f32[32,128], index: 6, kind: input, shape index: {}]
  %s7 = inlined_call_operand.vmem [shape: bf16[256,64], index: 7, kind: input, shape index: {}]
  %s8 = inlined_call_operand.vmem [shape: f32[1,64], index: 8, kind: input, shape index: {}]
  %s9 = inlined_call_operand.vmem [shape: f32[32,32], index: 9, kind: input, shape index: {}]
  %s10 = inlined_call_operand.vmem [shape: f32[32,32], index: 10, kind: output, shape index: {0}]
  %s11 = inlined_call_operand.vmem [shape: f32[32,1], index: 11, kind: output, shape index: {1}]
  %12 = xla_tuple %s10, %s11
  %s13 = sld [smem:[#allocation0]]
  $region129: #{vae_forward.2} parent=0
    _
  %s15 = ssub.s32 1, %s13
  %s16 = scalar_select 0, %s15, %s13
  $region1: #{vae_forward.2} parent=0
    #allocation2 [shape = 'u8[131072]{0}', space=vmem, size = 0x20000, scoped, tag = 'input window, operand 0']
    loop: start=0, step=1, limit=4
    $region2: #{vae_forward.2} parent=1 // loop_pre_header
      _
    $region3: #{vae_forward.2} parent=1 // loop_header
      %s18 = sphi 0, %s22
      %p19 = scmp.ge.s32.totalorder %s18, 4
      %s28 = sphi 0, %s30
      %s31 = sphi 0, %s28
      %s32 = sphi 0, %s31
      %s48 = sphi 0, %s32
      %s52 = sphi 0, %s52
      %s54 = sphi 0, %s52
      %s55 = sphi 0, %s54
      %s69 = sphi 0, %s55
      %s73 = sphi 0, %s73
      %s75 = sphi 0, %s73
      %s76 = sphi 0, %s75
      %s90 = sphi 0, %s76
      %s94 = sphi 0, %s94
      %s96 = sphi 0, %s94
      %s97 = sphi 0, %s96
      %s111 = sphi 0, %s97
      %s115 = sphi 0, %s115
      %s117 = sphi 0, %s115
      %s118 = sphi 0, %s117
      %s132 = sphi 0, %s118
      %s136 = sphi 0, %s136
      %s138 = sphi 0, %s136
      %s139 = sphi 0, %s138
      %s153 = sphi 0, %s139
      %s159 = sphi 0, %s161
      %s162 = sphi 0, %s159
      %s163 = sphi 0, %s162
      %s179 = sphi 0, %s163
      %s183 = sphi 0, %s183
      %s185 = sphi 0, %s183
      %s186 = sphi 0, %s185
      %s200 = sphi 0, %s186
      %s204 = sphi 0, %s204
      %s206 = sphi 0, %s204
      %s207 = sphi 0, %s206
      %s221 = sphi 0, %s207
      %s227 = sphi 0, %s229
      %s230 = sphi 0, %s227
      %s231 = sphi 0, %s230
      %s247 = sphi 0, %s231
      %s253 = sphi 0, %s255
      %s256 = sphi 0, %s253
      %s257 = sphi 0, %s256
      %s273 = sphi 0, %s257
      %s279 = sphi 0, %s281
      %s282 = sphi 0, %s279
      %s283 = sphi 0, %s282
      %s299 = sphi 0, %s283
    $region4: #{vae_forward.2} parent=1 // loop_header_branch
      %21 = sbr.rel (%p19) target = $region8
    $region5: #{vae_forward.2} parent=1 // loop_body
      %s23 = ssub.s32 %s18, 1
      %s24 = ssub.s32 %s18, 2
      %s25 = sadd.s32 %s18, 1
      %s26 = ssub.s32 %s18, %s25
      %p27 = scmp.eq.s32.totalorder %s26, 0
      %s29 = sadd.s32 %s28, 1
      %s30 = scalar_select %p27, %s28, %s29
      %p33 = pneg %p27
      %p34 = scmp.eq.s32.totalorder %s18, 1
      %p35 = por %p33, %p34
      %p36 = scmp.ne.s32.totalorder %s28, %s31
      %p37 = scmp.eq.s32.totalorder %s18, 0
      %p38 = por %p36, %p37
      %p39 = scmp.ne.s32.totalorder %s28, %s31
      %p40 = scmp.eq.s32.totalorder %s23, 1
      %p41 = por %p39, %p40
      %p42 = scmp.ne.s32.totalorder %s31, %s32
      %p43 = scmp.eq.s32.totalorder %s23, 0
      %p44 = por %p42, %p43
      %p45 = scmp.ne.s32.totalorder %s31, %s32
      %p46 = scmp.eq.s32.totalorder %s24, 1
      %p47 = por %p45, %p46
      %p49 = scmp.ne.s32.totalorder %s32, %s48
      %p50 = scmp.eq.s32.totalorder %s24, 0
      %p51 = por %p49, %p50
      %s53 = sadd.s32 %s52, 1
      %p56 = scmp.eq.s32.totalorder %s18, 1
      %p57 = scmp.ne.s32.totalorder %s52, %s54
      %p58 = scmp.eq.s32.totalorder %s18, 0
      %p59 = por %p57, %p58
      %p60 = scmp.ne.s32.totalorder %s52, %s54
      %p61 = scmp.eq.s32.totalorder %s23, 1
      %p62 = por %p60, %p61
      %p63 = scmp.ne.s32.totalorder %s54, %s55
      %p64 = scmp.eq.s32.totalorder %s23, 0
      %p65 = por %p63, %p64
      %p66 = scmp.ne.s32.totalorder %s54, %s55
      %p67 = scmp.eq.s32.totalorder %s24, 1
      %p68 = por %p66, %p67
      %p70 = scmp.ne.s32.totalorder %s55, %s69
      %p71 = scmp.eq.s32.totalorder %s24, 0
      %p72 = por %p70, %p71
      %s74 = sadd.s32 %s73, 1
      %p77 = scmp.eq.s32.totalorder %s18, 1
      %p78 = scmp.ne.s32.totalorder %s73, %s75
      %p79 = scmp.eq.s32.totalorder %s18, 0
      %p80 = por %p78, %p79
      %p81 = scmp.ne.s32.totalorder %s73, %s75
      %p82 = scmp.eq.s32.totalorder %s23, 1
      %p83 = por %p81, %p82
      %p84 = scmp.ne.s32.totalorder %s75, %s76
      %p85 = scmp.eq.s32.totalorder %s23, 0
      %p86 = por %p84, %p85
      %p87 = scmp.ne.s32.totalorder %s75, %s76
      %p88 = scmp.eq.s32.totalorder %s24, 1
      %p89 = por %p87, %p88
      %p91 = scmp.ne.s32.totalorder %s76, %s90
      %p92 = scmp.eq.s32.totalorder %s24, 0
      %p93 = por %p91, %p92
      %s95 = sadd.s32 %s94, 1
      %p98 = scmp.eq.s32.totalorder %s18, 1
      %p99 = scmp.ne.s32.totalorder %s94, %s96
      %p100 = scmp.eq.s32.totalorder %s18, 0
      %p101 = por %p99, %p100
      %p102 = scmp.ne.s32.totalorder %s94, %s96
      %p103 = scmp.eq.s32.totalorder %s23, 1
      %p104 = por %p102, %p103
      %p105 = scmp.ne.s32.totalorder %s96, %s97
      %p106 = scmp.eq.s32.totalorder %s23, 0
      %p107 = por %p105, %p106
      %p108 = scmp.ne.s32.totalorder %s96, %s97
      %p109 = scmp.eq.s32.totalorder %s24, 1
      %p110 = por %p108, %p109
      %p112 = scmp.ne.s32.totalorder %s97, %s111
      %p113 = scmp.eq.s32.totalorder %s24, 0
      %p114 = por %p112, %p113
      %s116 = sadd.s32 %s115, 1
      %p119 = scmp.eq.s32.totalorder %s18, 1
      %p120 = scmp.ne.s32.totalorder %s115, %s117
      %p121 = scmp.eq.s32.totalorder %s18, 0
      %p122 = por %p120, %p121
      %p123 = scmp.ne.s32.totalorder %s115, %s117
      %p124 = scmp.eq.s32.totalorder %s23, 1
      %p125 = por %p123, %p124
      %p126 = scmp.ne.s32.totalorder %s117, %s118
      %p127 = scmp.eq.s32.totalorder %s23, 0
      %p128 = por %p126, %p127
      %p129 = scmp.ne.s32.totalorder %s117, %s118
      %p130 = scmp.eq.s32.totalorder %s24, 1
      %p131 = por %p129, %p130
      %p133 = scmp.ne.s32.totalorder %s118, %s132
      %p134 = scmp.eq.s32.totalorder %s24, 0
      %p135 = por %p133, %p134
      %s137 = sadd.s32 %s136, 1
      %p140 = scmp.eq.s32.totalorder %s18, 1
      %p141 = scmp.ne.s32.totalorder %s136, %s138
      %p142 = scmp.eq.s32.totalorder %s18, 0
      %p143 = por %p141, %p142
      %p144 = scmp.ne.s32.totalorder %s136, %s138
      %p145 = scmp.eq.s32.totalorder %s23, 1
      %p146 = por %p144, %p145
      %p147 = scmp.ne.s32.totalorder %s138, %s139
      %p148 = scmp.eq.s32.totalorder %s23, 0
      %p149 = por %p147, %p148
      %p150 = scmp.ne.s32.totalorder %s138, %s139
      %p151 = scmp.eq.s32.totalorder %s24, 1
      %p152 = por %p150, %p151
      %p154 = scmp.ne.s32.totalorder %s139, %s153
      %p155 = scmp.eq.s32.totalorder %s24, 0
      %p156 = por %p154, %p155
      %s157 = ssub.s32 %s18, %s25
      %p158 = scmp.eq.s32.totalorder %s157, 0
      %s160 = sadd.s32 %s159, 1
      %s161 = scalar_select %p158, %s159, %s160
      %p164 = pneg %p158
      %p165 = scmp.eq.s32.totalorder %s18, 1
      %p166 = por %p164, %p165
      %p167 = scmp.ne.s32.totalorder %s159, %s162
      %p168 = scmp.eq.s32.totalorder %s18, 0
      %p169 = por %p167, %p168
      %p170 = scmp.ne.s32.totalorder %s159, %s162
      %p171 = scmp.eq.s32.totalorder %s23, 1
      %p172 = por %p170, %p171
      %p173 = scmp.ne.s32.totalorder %s162, %s163
      %p174 = scmp.eq.s32.totalorder %s23, 0
      %p175 = por %p173, %p174
      %p176 = scmp.ne.s32.totalorder %s162, %s163
      %p177 = scmp.eq.s32.totalorder %s24, 1
      %p178 = por %p176, %p177
      %p180 = scmp.ne.s32.totalorder %s163, %s179
      %p181 = scmp.eq.s32.totalorder %s24, 0
      %p182 = por %p180, %p181
      %s184 = sadd.s32 %s183, 1
      %p187 = scmp.eq.s32.totalorder %s18, 1
      %p188 = scmp.ne.s32.totalorder %s183, %s185
      %p189 = scmp.eq.s32.totalorder %s18, 0
      %p190 = por %p188, %p189
      %p191 = scmp.ne.s32.totalorder %s183, %s185
      %p192 = scmp.eq.s32.totalorder %s23, 1
      %p193 = por %p191, %p192
      %p194 = scmp.ne.s32.totalorder %s185, %s186
      %p195 = scmp.eq.s32.totalorder %s23, 0
      %p196 = por %p194, %p195
      %p197 = scmp.ne.s32.totalorder %s185, %s186
      %p198 = scmp.eq.s32.totalorder %s24, 1
      %p199 = por %p197, %p198
      %p201 = scmp.ne.s32.totalorder %s186, %s200
      %p202 = scmp.eq.s32.totalorder %s24, 0
      %p203 = por %p201, %p202
      %s205 = sadd.s32 %s204, 1
      %p208 = scmp.eq.s32.totalorder %s18, 1
      %p209 = scmp.ne.s32.totalorder %s204, %s206
      %p210 = scmp.eq.s32.totalorder %s18, 0
      %p211 = por %p209, %p210
      %p212 = scmp.ne.s32.totalorder %s204, %s206
      %p213 = scmp.eq.s32.totalorder %s23, 1
      %p214 = por %p212, %p213
      %p215 = scmp.ne.s32.totalorder %s206, %s207
      %p216 = scmp.eq.s32.totalorder %s23, 0
      %p217 = por %p215, %p216
      %p218 = scmp.ne.s32.totalorder %s206, %s207
      %p219 = scmp.eq.s32.totalorder %s24, 1
      %p220 = por %p218, %p219
      %p222 = scmp.ne.s32.totalorder %s207, %s221
      %p223 = scmp.eq.s32.totalorder %s24, 0
      %p224 = por %p222, %p223
      %s225 = ssub.s32 %s18, %s25
      %p226 = scmp.eq.s32.totalorder %s225, 0
      %s228 = sadd.s32 %s227, 1
      %s229 = scalar_select %p226, %s227, %s228
      %p232 = pneg %p226
      %p233 = scmp.eq.s32.totalorder %s18, 1
      %p234 = por %p232, %p233
      %p235 = scmp.ne.s32.totalorder %s227, %s230
      %p236 = scmp.eq.s32.totalorder %s18, 0
      %p237 = por %p235, %p236
      %p238 = scmp.ne.s32.totalorder %s227, %s230
      %p239 = scmp.eq.s32.totalorder %s23, 1
      %p240 = por %p238, %p239
      %p241 = scmp.ne.s32.totalorder %s230, %s231
      %p242 = scmp.eq.s32.totalorder %s23, 0
      %p243 = por %p241, %p242
      %p244 = scmp.ne.s32.totalorder %s230, %s231
      %p245 = scmp.eq.s32.totalorder %s24, 1
      %p246 = por %p244, %p245
      %p248 = scmp.ne.s32.totalorder %s231, %s247
      %p249 = scmp.eq.s32.totalorder %s24, 0
      %p250 = por %p248, %p249
      %s251 = ssub.s32 %s18, %s25
      %p252 = scmp.eq.s32.totalorder %s251, 0
      %s254 = sadd.s32 %s253, 1
      %s255 = scalar_select %p252, %s253, %s254
      %p258 = pneg %p252
      %p259 = scmp.eq.s32.totalorder %s18, 1
      %p260 = por %p258, %p259
      %p261 = scmp.ne.s32.totalorder %s253, %s256
      %p262 = scmp.eq.s32.totalorder %s18, 0
      %p263 = por %p261, %p262
      %p264 = scmp.ne.s32.totalorder %s253, %s256
      %p265 = scmp.eq.s32.totalorder %s23, 1
      %p266 = por %p264, %p265
      %p267 = scmp.ne.s32.totalorder %s256, %s257
      %p268 = scmp.eq.s32.totalorder %s23, 0
      %p269 = por %p267, %p268
      %p270 = scmp.ne.s32.totalorder %s256, %s257
      %p271 = scmp.eq.s32.totalorder %s24, 1
      %p272 = por %p270, %p271
      %p274 = scmp.ne.s32.totalorder %s257, %s273
      %p275 = scmp.eq.s32.totalorder %s24, 0
      %p276 = por %p274, %p275
      %s277 = ssub.s32 %s18, %s25
      %p278 = scmp.eq.s32.totalorder %s277, 0
      %s280 = sadd.s32 %s279, 1
      %s281 = scalar_select %p278, %s279, %s280
      %p284 = pneg %p278
      %p285 = scmp.eq.s32.totalorder %s18, 1
      %p286 = por %p284, %p285
      %p287 = scmp.ne.s32.totalorder %s279, %s282
      %p288 = scmp.eq.s32.totalorder %s18, 0
      %p289 = por %p287, %p288
      %p290 = scmp.ne.s32.totalorder %s279, %s282
      %p291 = scmp.eq.s32.totalorder %s23, 1
      %p292 = por %p290, %p291
      %p293 = scmp.ne.s32.totalorder %s282, %s283
      %p294 = scmp.eq.s32.totalorder %s23, 0
      %p295 = por %p293, %p294
      %p296 = scmp.ne.s32.totalorder %s282, %s283
      %p297 = scmp.eq.s32.totalorder %s24, 1
      %p298 = por %p296, %p297
      %p300 = scmp.ne.s32.totalorder %s283, %s299
      %p301 = scmp.eq.s32.totalorder %s24, 0
      %p302 = por %p300, %p301
      %p303 = scmp.le.s32.totalorder 1, %s18
      %p304 = scmp.lt.s32.totalorder %s18, 3
      %p305 = pnand %p303, %p304
      %p306 = pneg %p305
      // Predicated region
      $region9: #{vae_forward.2} parent=5 // pred_check
        _
      $region10: #{vae_forward.2} parent=5 // pred_check_branch
        %308 = sbr.rel (%p305) target = $region12
      $region11: #{vae_forward.2} parent=5 // pred_region
        %s309 = ssub.s32 %s18, 1
        // Predicated region
        $region13: #{vae_forward.2} parent=11 // pred_check
          %p310 = pneg %p65
        $region14: #{vae_forward.2} parent=11 // pred_check_branch
          %312 = sbr.rel (%p310) target = $region16
        $region15: #{vae_forward.2} parent=11 // pred_region
          _
        $region16: #{vae_forward.2} parent=11 // pred_fallthru
          _
        // Predicated region
        $region17: #{vae_forward.2} parent=11 // pred_check
          %p313 = pneg %p86
        $region18: #{vae_forward.2} parent=11 // pred_check_branch
          %315 = sbr.rel (%p313) target = $region20
        $region19: #{vae_forward.2} parent=11 // pred_region
          _
        $region20: #{vae_forward.2} parent=11 // pred_fallthru
          _
        // Predicated region
        $region21: #{vae_forward.2} parent=11 // pred_check
          %p316 = pneg %p107
        $region22: #{vae_forward.2} parent=11 // pred_check_branch
          %318 = sbr.rel (%p316) target = $region24
        $region23: #{vae_forward.2} parent=11 // pred_region
          _
        $region24: #{vae_forward.2} parent=11 // pred_fallthru
          _
        // Predicated region
        $region25: #{vae_forward.2} parent=11 // pred_check
          %p319 = pneg %p128
        $region26: #{vae_forward.2} parent=11 // pred_check_branch
          %321 = sbr.rel (%p319) target = $region28
        $region27: #{vae_forward.2} parent=11 // pred_region
          _
        $region28: #{vae_forward.2} parent=11 // pred_fallthru
          _
        // Predicated region
        $region29: #{vae_forward.2} parent=11 // pred_check
          %p322 = pneg %p149
        $region30: #{vae_forward.2} parent=11 // pred_check_branch
          %324 = sbr.rel (%p322) target = $region32
        $region31: #{vae_forward.2} parent=11 // pred_region
          _
        $region32: #{vae_forward.2} parent=11 // pred_fallthru
          _
        // Predicated region
        $region33: #{vae_forward.2} parent=11 // pred_check
          %p325 = pneg %p196
        $region34: #{vae_forward.2} parent=11 // pred_check_branch
          %327 = sbr.rel (%p325) target = $region36
        $region35: #{vae_forward.2} parent=11 // pred_region
          _
        $region36: #{vae_forward.2} parent=11 // pred_fallthru
          _
        // Predicated region
        $region37: #{vae_forward.2} parent=11 // pred_check
          %p328 = pneg %p217
        $region38: #{vae_forward.2} parent=11 // pred_check_branch
          %330 = sbr.rel (%p328) target = $region40
        $region39: #{vae_forward.2} parent=11 // pred_region
          _
        $region40: #{vae_forward.2} parent=11 // pred_fallthru
          _
      $region12: #{vae_forward.2} parent=5 // pred_fallthru
        _
      %p331 = scmp.lt.s32.totalorder %s18, 2
      // Predicated region
      $region41: #{vae_forward.2} parent=5 // pred_check
        %p332 = pneg %p331
      $region42: #{vae_forward.2} parent=5 // pred_check_branch
        %334 = sbr.rel (%p332) target = $region44
      $region43: #{vae_forward.2} parent=5 // pred_region
        // Predicated region
        $region45: #{vae_forward.2} parent=43 // pred_check
          %p335 = pneg %p38
        $region46: #{vae_forward.2} parent=43 // pred_check_branch
          %337 = sbr.rel (%p335) target = $region48
        $region47: #{vae_forward.2} parent=43 // pred_region
          %s338 = sand.u32 %s28, 1
          %s339 = sand.u32 %s28, 1
          %s340 = smul.addr %s339, 128
          %s341 = scalar_lea.vmem [#allocation2], %s340
          %s342 = smul.u32 2, %s18
          %s343 = smul.addr %s342, 4
          %s344 = scalar_lea.vmem %s0, %s343
          // Predicated region
          $region49: #{vae_forward.2} parent=47 // pred_check
            _
          $region50: #{vae_forward.2} parent=47 // pred_check_branch
            %346 = sbr.rel (0) target = $region52
          $region51: #{vae_forward.2} parent=47 // pred_region
            // Predicated region
            $region53: #{vae_forward.2} parent=51 // pred_check
              _
            $region54: #{vae_forward.2} parent=51 // pred_check_branch
              %348 = sbr.rel target = $region56
            $region55: #{vae_forward.2} parent=51 // pred_region
              // Predicated region
              $region68: #{vae_forward.2} parent=55 // pred_check
                _
              $region69: #{vae_forward.2} parent=55 // pred_check_branch
                %426 = sbr.rel (0) target = $region71
              $region70: #{vae_forward.2} parent=55 // pred_region
                loop: start=0, step=1, limit=1
                $region72: #{vae_forward.2} parent=70 // loop_pre_header
                  _
                $region73: #{vae_forward.2} parent=70 // loop_header
                  %s428 = sphi 0, %s432
                  %p429 = scmp.ge.s32.totalorder %s428, 1
                  %s433 = sphi %s344, %s344
                  %s434 = sphi %s341, %s341
                $region74: #{vae_forward.2} parent=70 // loop_header_branch
                  %431 = sbr.rel (%p429) target = $region78
                $region75: #{vae_forward.2} parent=70 // loop_body
                  _
                $region76: #{vae_forward.2} parent=70 // loop_footer
                  %s432 = sadd.s32 1, %s428
                $region77: #{vae_forward.2} parent=70 // loop_footer_branch
                  %427 = sbr.rel target = $region73
                $region78: #{vae_forward.2} parent=70 // loop_exit
                  _
                %s436 = ssub.s32 16, 1
                loop: start=0, step=1, limit=1
                $region79: #{vae_forward.2} parent=70 // loop_pre_header
                  _
                $region80: #{vae_forward.2} parent=70 // loop_header
                  %s438 = sphi 0, %s442
                  %p439 = scmp.ge.s32.totalorder %s438, 1
                  %s443 = sphi %s344, %s344
                  %s444 = sphi %s341, %s341
                $region81: #{vae_forward.2} parent=70 // loop_header_branch
                  %441 = sbr.rel (%p439) target = $region85
                $region82: #{vae_forward.2} parent=70 // loop_body
                  %v445 = vld [vmem:[%s443] sm:%s436]
                  %446 = vst [vmem:[%s444] sm:%s436] %v445
                  %v447 = vld [vmem:[%s443 + $0x4] sm:%s436]
                  %448 = vst [vmem:[%s444 + $0x4] sm:%s436] %v447
                  %v449 = vld [vmem:[%s443 + $0x10] sm:%s436]
                  %450 = vst [vmem:[%s444 + $0x8] sm:%s436] %v449
                  %v451 = vld [vmem:[%s443 + $0x14] sm:%s436]
                  %452 = vst [vmem:[%s444 + $0xc] sm:%s436] %v451
                  %v453 = vld [vmem:[%s443 + $0x20] sm:%s436]
                  %454 = vst [vmem:[%s444 + $0x10] sm:%s436] %v453
                  %v455 = vld [vmem:[%s443 + $0x24] sm:%s436]
                  %456 = vst [vmem:[%s444 + $0x14] sm:%s436] %v455
                  %v457 = vld [vmem:[%s443 + $0x30] sm:%s436]
                  %458 = vst [vmem:[%s444 + $0x18] sm:%s436] %v457
                  %v459 = vld [vmem:[%s443 + $0x34] sm:%s436]
                  %460 = vst [vmem:[%s444 + $0x1c] sm:%s436] %v459
                  %v461 = vld [vmem:[%s443 + $0x40] sm:%s436]
                  %462 = vst [vmem:[%s444 + $0x20] sm:%s436] %v461
                  %v463 = vld [vmem:[%s443 + $0x44] sm:%s436]
                  %464 = vst [vmem:[%s444 + $0x24] sm:%s436] %v463
                  %v465 = vld [vmem:[%s443 + $0x50] sm:%s436]
                  %466 = vst [vmem:[%s444 + $0x28] sm:%s436] %v465
                  %v467 = vld [vmem:[%s443 + $0x54] sm:%s436]
                  %468 = vst [vmem:[%s444 + $0x2c] sm:%s436] %v467
                  %v469 = vld [vmem:[%s443 + $0x60] sm:%s436]
                  %470 = vst [vmem:[%s444 + $0x30] sm:%s436] %v469
                  %v471 = vld [vmem:[%s443 + $0x64] sm:%s436]
                  %472 = vst [vmem:[%s444 + $0x34] sm:%s436] %v471
                  %v473 = vld [vmem:[%s443 + $0x70] sm:%s436]
                  %474 = vst [vmem:[%s444 + $0x38] sm:%s436] %v473
                  %v475 = vld [vmem:[%s443 + $0x74] sm:%s436]
                  %476 = vst [vmem:[%s444 + $0x3c] sm:%s436] %v475
                  %v477 = vld [vmem:[%s443 + $0x80] sm:%s436]
                  %478 = vst [vmem:[%s444 + $0x40] sm:%s436] %v477
                  %v479 = vld [vmem:[%s443 + $0x84] sm:%s436]
                  %480 = vst [vmem:[%s444 + $0x44] sm:%s436] %v479
                  %v481 = vld [vmem:[%s443 + $0x90] sm:%s436]
                  %482 = vst [vmem:[%s444 + $0x48] sm:%s436] %v481
                  %v483 = vld [vmem:[%s443 + $0x94] sm:%s436]
                  %484 = vst [vmem:[%s444 + $0x4c] sm:%s436] %v483
                  %v485 = vld [vmem:[%s443 + $0xa0] sm:%s436]
                  %486 = vst [vmem:[%s444 + $0x50] sm:%s436] %v485
                  %v487 = vld [vmem:[%s443 + $0xa4] sm:%s436]
                  %488 = vst [vmem:[%s444 + $0x54] sm:%s436] %v487
                  %v489 = vld [vmem:[%s443 + $0xb0] sm:%s436]
                  %490 = vst [vmem:[%s444 + $0x58] sm:%s436] %v489
                  %v491 = vld [vmem:[%s443 + $0xb4] sm:%s436]
                  %492 = vst [vmem:[%s444 + $0x5c] sm:%s436] %v491
                  %v493 = vld [vmem:[%s443 + $0xc0] sm:%s436]
                  %494 = vst [vmem:[%s444 + $0x60] sm:%s436] %v493
                  %v495 = vld [vmem:[%s443 + $0xc4] sm:%s436]
                  %496 = vst [vmem:[%s444 + $0x64] sm:%s436] %v495
                  %v497 = vld [vmem:[%s443 + $0xd0] sm:%s436]
                  %498 = vst [vmem:[%s444 + $0x68] sm:%s436] %v497
                  %v499 = vld [vmem:[%s443 + $0xd4] sm:%s436]
                  %500 = vst [vmem:[%s444 + $0x6c] sm:%s436] %v499
                  %v501 = vld [vmem:[%s443 + $0xe0] sm:%s436]
                  %502 = vst [vmem:[%s444 + $0x70] sm:%s436] %v501
                  %v503 = vld [vmem:[%s443 + $0xe4] sm:%s436]
                  %504 = vst [vmem:[%s444 + $0x74] sm:%s436] %v503
                  %v505 = vld [vmem:[%s443 + $0xf0] sm:%s436]
                  %506 = vst [vmem:[%s444 + $0x78] sm:%s436] %v505
                  %v507 = vld [vmem:[%s443 + $0xf4] sm:%s436]
                  %508 = vst [vmem:[%s444 + $0x7c] sm:%s436] %v507
                $region83: #{vae_forward.2} parent=70 // loop_footer
                  %s442 = sadd.s32 1, %s438
                $region84: #{vae_forward.2} parent=70 // loop_footer_branch
                  %437 = sbr.rel target = $region80
                $region85: #{vae_forward.2} parent=70 // loop_exit
                  _
              $region71: #{vae_forward.2} parent=55 // pred_fallthru
                _
            $region56: #{vae_forward.2} parent=51 // pred_fallthru
              _
            // Predicated region
            $region57: #{vae_forward.2} parent=51 // pred_check
              _
            $region58: #{vae_forward.2} parent=51 // pred_check_branch
              %350 = sbr.rel (0) target = $region60
            $region59: #{vae_forward.2} parent=51 // pred_region
              %s352 = ssub.s32 16, 1
              loop: start=0, step=1, limit=1
              $region61: #{vae_forward.2} parent=59 // loop_pre_header
                _
              $region62: #{vae_forward.2} parent=59 // loop_header
                %s354 = sphi 0, %s358
                %p355 = scmp.ge.s32.totalorder %s354, 1
                %s359 = sphi %s344, %s344
                %s360 = sphi %s341, %s341
              $region63: #{vae_forward.2} parent=59 // loop_header_branch
                %357 = sbr.rel (%p355) target = $region67
              $region64: #{vae_forward.2} parent=59 // loop_body
                %v361 = vld [vmem:[%s359] sm:%s352]
                %362 = vst [vmem:[%s360] sm:%s352] %v361
                %v363 = vld [vmem:[%s359 + $0x4] sm:%s352]
                %364 = vst [vmem:[%s360 + $0x4] sm:%s352] %v363
                %v365 = vld [vmem:[%s359 + $0x10] sm:%s352]
                %366 = vst [vmem:[%s360 + $0x8] sm:%s352] %v365
                %v367 = vld [vmem:[%s359 + $0x14] sm:%s352]
                %368 = vst [vmem:[%s360 + $0xc] sm:%s352] %v367
                %v369 = vld [vmem:[%s359 + $0x20] sm:%s352]
                %370 = vst [vmem:[%s360 + $0x10] sm:%s352] %v369
                %v371 = vld [vmem:[%s359 + $0x24] sm:%s352]
                %372 = vst [vmem:[%s360 + $0x14] sm:%s352] %v371
                %v373 = vld [vmem:[%s359 + $0x30] sm:%s352]
                %374 = vst [vmem:[%s360 + $0x18] sm:%s352] %v373
                %v375 = vld [vmem:[%s359 + $0x34] sm:%s352]
                %376 = vst [vmem:[%s360 + $0x1c] sm:%s352] %v375
                %v377 = vld [vmem:[%s359 + $0x40] sm:%s352]
                %378 = vst [vmem:[%s360 + $0x20] sm:%s352] %v377
                %v379 = vld [vmem:[%s359 + $0x44] sm:%s352]
                %380 = vst [vmem:[%s360 + $0x24] sm:%s352] %v379
                %v381 = vld [vmem:[%s359 + $0x50] sm:%s352]
                %382 = vst [vmem:[%s360 + $0x28] sm:%s352] %v381
                %v383 = vld [vmem:[%s359 + $0x54] sm:%s352]
                %384 = vst [vmem:[%s360 + $0x2c] sm:%s352] %v383
                %v385 = vld [vmem:[%s359 + $0x60] sm:%s352]
                %386 = vst [vmem:[%s360 + $0x30] sm:%s352] %v385
                %v387 = vld [vmem:[%s359 + $0x64] sm:%s352]
                %388 = vst [vmem:[%s360 + $0x34] sm:%s352] %v387
                %v389 = vld [vmem:[%s359 + $0x70] sm:%s352]
                %390 = vst [vmem:[%s360 + $0x38] sm:%s352] %v389
                %v391 = vld [vmem:[%s359 + $0x74] sm:%s352]
                %392 = vst [vmem:[%s360 + $0x3c] sm:%s352] %v391
                %v393 = vld [vmem:[%s359 + $0x80] sm:%s352]
                %394 = vst [vmem:[%s360 + $0x40] sm:%s352] %v393
                %v395 = vld [vmem:[%s359 + $0x84] sm:%s352]
                %396 = vst [vmem:[%s360 + $0x44] sm:%s352] %v395
                %v397 = vld [vmem:[%s359 + $0x90] sm:%s352]
                %398 = vst [vmem:[%s360 + $0x48] sm:%s352] %v397
                %v399 = vld [vmem:[%s359 + $0x94] sm:%s352]
                %400 = vst [vmem:[%s360 + $0x4c] sm:%s352] %v399
                %v401 = vld [vmem:[%s359 + $0xa0] sm:%s352]
                %402 = vst [vmem:[%s360 + $0x50] sm:%s352] %v401
                %v403 = vld [vmem:[%s359 + $0xa4] sm:%s352]
                %404 = vst [vmem:[%s360 + $0x54] sm:%s352] %v403
                %v405 = vld [vmem:[%s359 + $0xb0] sm:%s352]
                %406 = vst [vmem:[%s360 + $0x58] sm:%s352] %v405
                %v407 = vld [vmem:[%s359 + $0xb4] sm:%s352]
                %408 = vst [vmem:[%s360 + $0x5c] sm:%s352] %v407
                %v409 = vld [vmem:[%s359 + $0xc0] sm:%s352]
                %410 = vst [vmem:[%s360 + $0x60] sm:%s352] %v409
                %v411 = vld [vmem:[%s359 + $0xc4] sm:%s352]
                %412 = vst [vmem:[%s360 + $0x64] sm:%s352] %v411
                %v413 = vld [vmem:[%s359 + $0xd0] sm:%s352]
                %414 = vst [vmem:[%s360 + $0x68] sm:%s352] %v413
                %v415 = vld [vmem:[%s359 + $0xd4] sm:%s352]
                %416 = vst [vmem:[%s360 + $0x6c] sm:%s352] %v415
                %v417 = vld [vmem:[%s359 + $0xe0] sm:%s352]
                %418 = vst [vmem:[%s360 + $0x70] sm:%s352] %v417
                %v419 = vld [vmem:[%s359 + $0xe4] sm:%s352]
                %420 = vst [vmem:[%s360 + $0x74] sm:%s352] %v419
                %v421 = vld [vmem:[%s359 + $0xf0] sm:%s352]
                %422 = vst [vmem:[%s360 + $0x78] sm:%s352] %v421
                %v423 = vld [vmem:[%s359 + $0xf4] sm:%s352]
                %424 = vst [vmem:[%s360 + $0x7c] sm:%s352] %v423
              $region65: #{vae_forward.2} parent=59 // loop_footer
                %s358 = sadd.s32 1, %s354
              $region66: #{vae_forward.2} parent=59 // loop_footer_branch
                %353 = sbr.rel target = $region62
              $region67: #{vae_forward.2} parent=59 // loop_exit
                _
            $region60: #{vae_forward.2} parent=51 // pred_fallthru
              _
          $region52: #{vae_forward.2} parent=47 // pred_fallthru
            _
          %509 = vnop
        $region48: #{vae_forward.2} parent=43 // pred_fallthru
          _
        // Predicated region
        $region86: #{vae_forward.2} parent=43 // pred_check
          %p510 = pneg %p169
        $region87: #{vae_forward.2} parent=43 // pred_check_branch
          %512 = sbr.rel (%p510) target = $region89
        $region88: #{vae_forward.2} parent=43 // pred_region
          %s513 = smul.u32 2, %s18
          %p514 = scmp.lt.s32.totalorder %s513, 3
          %s515 = scalar_select %p514, %s513, 3
          %s516 = smul.addr %s515, 8
          %s517 = scalar_lea.vmem %s6, %s516
          %s518 = smul.u32 2, %s18
        $region89: #{vae_forward.2} parent=43 // pred_fallthru
          _
        // Predicated region
        $region90: #{vae_forward.2} parent=43 // pred_check
          %p519 = pneg %p237
        $region91: #{vae_forward.2} parent=43 // pred_check_branch
          %521 = sbr.rel (%p519) target = $region93
        $region92: #{vae_forward.2} parent=43 // pred_region
          %s522 = smul.u32 2, %s18
          %p523 = scmp.lt.s32.totalorder %s522, 3
          %s524 = scalar_select %p523, %s522, 3
          %s525 = smul.addr %s524, 8
          %s526 = scalar_lea.vmem %s9, %s525
          %s527 = smul.u32 2, %s18
        $region93: #{vae_forward.2} parent=43 // pred_fallthru
          _
      $region44: #{vae_forward.2} parent=5 // pred_fallthru
        _
      %p528 = scmp.le.s32.totalorder 1, %s18
      %p529 = scmp.lt.s32.totalorder %s18, 3
      %p530 = pnand %p528, %p529
      %p531 = pneg %p530
      // Predicated region
      $region94: #{vae_forward.2} parent=5 // pred_check
        _
      $region95: #{vae_forward.2} parent=5 // pred_check_branch
        %533 = sbr.rel (%p530) target = $region97
      $region96: #{vae_forward.2} parent=5 // pred_region
        %s534 = ssub.s32 %s18, 1
        %s535 = sand.u32 %s31, 1
        %s536 = sand.u32 %s31, 1
        %s537 = smul.addr %s536, 128
        %s538 = scalar_lea.vmem [#allocation2], %s537
        // Predicated region
        $region98: #{vae_forward.2} parent=96 // pred_check
          %p539 = pneg %p44
        $region99: #{vae_forward.2} parent=96 // pred_check_branch
          %541 = sbr.rel (%p539) target = $region101
        $region100: #{vae_forward.2} parent=96 // pred_region
          _
        $region101: #{vae_forward.2} parent=96 // pred_fallthru
          _
        %s542 = sand.u32 %s31, 1
        %s543 = sand.u32 %s31, 1
        %s544 = smul.addr %s543, 128
        %s545 = scalar_lea.vmem [#allocation2], %s544
        %p546 = pneg %p44
        %p547 = pneg %p41
        %p548 = pneg %p65
        %p549 = pneg %p62
        %p550 = pneg %p86
        %p551 = pneg %p83
        %p552 = pneg %p107
        %p553 = pneg %p104
        %p554 = pneg %p128
        %p555 = pneg %p125
        %p556 = pneg %p149
        %p557 = pneg %p146
        %s558 = smul.u32 2, %s23
        %p559 = scmp.lt.s32.totalorder %s558, 3
        %s560 = scalar_select %p559, %s558, 3
        %s561 = smul.addr %s560, 8
        %s562 = scalar_lea.vmem %s6, %s561
        %p563 = pneg %p175
        %p564 = pneg %p172
        %p565 = pneg %p196
        %p566 = pneg %p193
        %p567 = pneg %p217
        %p568 = pneg %p214
        %s569 = smul.u32 2, %s23
        %p570 = scmp.lt.s32.totalorder %s569, 3
        %s571 = scalar_select %p570, %s569, 3
        %s572 = smul.addr %s571, 8
        %s573 = scalar_lea.vmem %s9, %s572
        %p574 = pneg %p243
        %p575 = pneg %p240
        %p576 = pneg %p269
        %p577 = pneg %p266
        %s578 = smul.u32 2, %s23
        %p579 = scmp.lt.s32.totalorder %s578, 3
        %s580 = scalar_select %p579, %s578, 3
        %s581 = smul.addr %s580, 8
        %s582 = scalar_lea.vmem %s10, %s581
        %p583 = pneg %p295
        %p584 = pneg %p292
        %s585 = smul.u32 2, %s23
        %p586 = scmp.lt.s32.totalorder %s585, 3
        %s587 = scalar_select %p586, %s585, 3
        %s588 = smul.addr %s587, 8
        %s589 = scalar_lea.vmem %s11, %s588
        %s590 = smul.u32 2, %s23
        %s591 = smul.u32 2, %s23
        %p592 = scmp.lt.s32.totalorder %s591, 3
        %s593 = scalar_select %p592, %s591, 3
        %s594 = smul.addr %s593, 8
        %s595 = scalar_lea.vmem %s6, %s594
        %s596 = smul.u32 2, %s23
        %s597 = smul.u32 2, %s23
        %p598 = scmp.lt.s32.totalorder %s597, 3
        %s599 = scalar_select %p598, %s597, 3
        %s600 = smul.addr %s599, 8
        %s601 = scalar_lea.vmem %s9, %s600
        %s602 = smul.u32 2, %s23
        %s603 = smul.u32 2, %s23
        %p604 = scmp.lt.s32.totalorder %s603, 3
        %s605 = scalar_select %p604, %s603, 3
        %s606 = smul.addr %s605, 8
        %s607 = scalar_lea.vmem %s10, %s606
        %s608 = smul.u32 2, %s23
        %s609 = smul.u32 2, %s23
        %p610 = scmp.lt.s32.totalorder %s609, 3
        %s611 = scalar_select %p610, %s609, 3
        %s612 = smul.addr %s611, 8
        %s613 = scalar_lea.vmem %s11, %s612
        %s614 = smul.u32 2, %s23
        %v616 = vld [vmem:[%s1] sm:$0xf]
        %v617 = vld [vmem:[%s1 + $0x4] sm:$0xf]
        %v618 = vld [vmem:[%s1 + $0x8] sm:$0xf]
        %v619 = vld [vmem:[%s1 + $0xc] sm:$0xf]
        %v620 = vld [vmem:[%s1 + $0x10] sm:$0xf]
        %v621 = vld [vmem:[%s1 + $0x14] sm:$0xf]
        %v622 = vld [vmem:[%s1 + $0x18] sm:$0xf]
        %v623 = vld [vmem:[%s1 + $0x1c] sm:$0xf]
        %v624 = vld [vmem:[%s1 + $0x20] sm:$0xf]
        %v625 = vld [vmem:[%s1 + $0x24] sm:$0xf]
        %v626 = vld [vmem:[%s1 + $0x28] sm:$0xf]
        %v627 = vld [vmem:[%s1 + $0x2c] sm:$0xf]
        %v628 = vld [vmem:[%s1 + $0x30] sm:$0xf]
        %v629 = vld [vmem:[%s1 + $0x34] sm:$0xf]
        %v630 = vld [vmem:[%s1 + $0x38] sm:$0xf]
        %v631 = vld [vmem:[%s1 + $0x3c] sm:$0xf]
        %v632 = vld [vmem:[%s2] sm:$0xff]
        %v633 = vld [vmem:[%s2 + $0x8] sm:$0xf]
        %v634 = vld [vmem:[%s2 + $0xc] sm:$0xff]
        %v635 = vld [vmem:[%s2 + $0x14] sm:$0xf]
        %v636 = vld [vmem:[%s2 + $0x18] sm:$0xff]
        %v637 = vld [vmem:[%s2 + $0x20] sm:$0xf]
        %v638 = vld [vmem:[%s2 + $0x24] sm:$0xff]
        %v639 = vld [vmem:[%s2 + $0x2c] sm:$0xf]
        %v640 = vld [vmem:[%s3] sm:$0x7]
        %v642 = vlaneseq
        %v643 = vshrl.u32 %v642, 7
        %v644 = vsub.s32 0, %v643
        %v645 = vrot.slane %v640, %v644
        %v646 = vlaneseq
        %v647 = vshrl.u32 %v646, 7
        %v648 = vsub.s32 1, %v647
        %v649 = vrot.slane %v640, %v648
        %v650 = vlaneseq
        %v651 = vshrl.u32 %v650, 7
        %v652 = vsub.s32 2, %v651
        %v653 = vrot.slane %v640, %v652
        %v673 = vunpack.c.l.b16 %v616
        %v674 = vunpack.c.l.b16 %v617
        %v675 = vunpack.c.l.b16 %v618
        %v676 = vunpack.c.l.b16 %v619
        %v677 = vunpack.c.l.b16 %v620
        %v678 = vunpack.c.l.b16 %v621
        %v679 = vunpack.c.l.b16 %v622
        %v680 = vunpack.c.l.b16 %v623
        %v681 = vunpack.c.l.b16 %v624
        %v682 = vunpack.c.l.b16 %v625
        %v683 = vunpack.c.l.b16 %v626
        %v684 = vunpack.c.l.b16 %v627
        %v685 = vunpack.c.l.b16 %v628
        %v686 = vunpack.c.l.b16 %v629
        %v687 = vunpack.c.l.b16 %v630
        %v688 = vunpack.c.l.b16 %v631
        %v689 = vpack.c.b16 %v674, %v673
        %v690 = vpack.c.b16 %v676, %v675
        %v691 = vpack.c.b16 %v678, %v677
        %v692 = vpack.c.b16 %v680, %v679
        %v693 = vpack.c.b16 %v682, %v681
        %v694 = vpack.c.b16 %v684, %v683
        %v695 = vpack.c.b16 %v686, %v685
        %v696 = vpack.c.b16 %v688, %v687
        %v705 = vunpack.c.l.b16 %v632
        %v706 = vunpack.c.h.b16 %v632
        %v707 = vunpack.c.l.b16 %v633
        %v708 = vunpack.c.l.b16 %v634
        %v709 = vunpack.c.h.b16 %v634
        %v710 = vunpack.c.l.b16 %v635
        %v711 = vunpack.c.l.b16 %v636
        %v712 = vunpack.c.h.b16 %v636
        %v713 = vunpack.c.l.b16 %v637
        %v714 = vunpack.c.l.b16 %v638
        %v715 = vunpack.c.h.b16 %v638
        %v716 = vunpack.c.l.b16 %v639
        %v717 = vpack.c.b16 %v708, %v705
        %v718 = vpack.c.b16 %v709, %v706
        %v719 = vpack.c.b16 %v710, %v707
        %v720 = vpack.c.b16 %v714, %v711
        %v721 = vpack.c.b16 %v715, %v712
        %v722 = vpack.c.b16 %v716, %v713
        %vm729 = vcmask 261120
        %v731 = vsel %vm729, %v689, 0
        %v734 = vsel %vm729, %v690, 0
        %v737 = vsel %vm729, %v691, 0
        %v740 = vsel %vm729, %v692, 0
        %v743 = vsel %vm729, %v693, 0
        %v746 = vsel %vm729, %v694, 0
        %v749 = vsel %vm729, %v695, 0
        %v752 = vsel %vm729, %v696, 0
        %754 = vmatprep.subr.bf16.mxu0 0
        %755 = vmatpush1.bf16.msra.mxu0 0
        %756 = vmatprep.subr.bf16.mxu0 0
        %757 = vmatpush1.bf16.msra.mxu0 0
        %758 = vmatprep.subr.bf16.mxu0 0
        %759 = vmatpush1.bf16.msra.mxu0 0
        %760 = vmatprep.subr.bf16.mxu0 0
        %761 = vmatpush1.bf16.msra.mxu0 0
        %762 = vmatprep.subr.bf16.mxu0 0
        %763 = vmatpush1.bf16.msra.mxu0 0
        %764 = vmatprep.subr.bf16.mxu0 0
        %765 = vmatpush1.bf16.msra.mxu0 0
        %766 = vmatprep.subr.bf16.mxu0 %v721
        %767 = vmatpush1.bf16.msra.mxu0 %v720
        %768 = vmatprep.subr.bf16.mxu0 %v718
        %769 = vmatpush1.bf16.msra.mxu0 %v717
        %770 = vmatprep.subr.bf16.mxu0 0
        %771 = vmatpush2.bf16.msra.mxu0 0
        %772 = vmatprep.subr.bf16.mxu0 0
        %773 = vmatpush2.bf16.msra.mxu0 0
        %774 = vmatprep.subr.bf16.mxu0 0
        %775 = vmatpush2.bf16.msra.mxu0 0
        %776 = vmatprep.subr.bf16.mxu0 0
        %777 = vmatpush2.bf16.msra.mxu0 0
        %778 = vmatprep.subr.bf16.mxu0 0
        %779 = vmatpush2.bf16.msra.mxu0 0
        %780 = vmatprep.subr.bf16.mxu0 0
        %781 = vmatpush2.bf16.msra.mxu0 0
        %782 = vmatprep.subr.bf16.mxu0 0
        %783 = vmatpush2.bf16.msra.mxu0 0
        %784 = vmatprep.subr.bf16.mxu0 0
        %785 = vmatpush2.bf16.msra.mxu0 0
        %786 = vmatprep.mubr.bf16.mxu0 0
        %787 = vmatmul.mubr.bf16.gmra.mxu0 %v731
        %v788 = vpop.f32.mrf.mxu0
        %v789 = vadd.f32 %v645, %v788
        %v790 = vpop.f32.mrf.mxu0
        %v791 = vadd.f32 %v649, %v790
        %v792 = vpop.f32.mrf.mxu0
        %v793 = vadd.f32 %v645, %v792
        %v794 = vpop.f32.mrf.mxu0
        %v795 = vadd.f32 %v649, %v794
        %796 = vmatprep.mubr.bf16.mxu0 0
        %797 = vmatmul.mubr.bf16.gmra.mxu0 %v734
        %v798 = vpop.f32.mrf.mxu0
        %v799 = vadd.f32 %v645, %v798
        %v800 = vpop.f32.mrf.mxu0
        %v801 = vadd.f32 %v649, %v800
        %v802 = vpop.f32.mrf.mxu0
        %v803 = vadd.f32 %v645, %v802
        %v804 = vpop.f32.mrf.mxu0
        %v805 = vadd.f32 %v649, %v804
        %806 = vmatprep.mubr.bf16.mxu0 0
        %807 = vmatmul.mubr.bf16.gmra.mxu0 %v737
        %v808 = vpop.f32.mrf.mxu0
        %v809 = vadd.f32 %v645, %v808
        %v810 = vpop.f32.mrf.mxu0
        %v811 = vadd.f32 %v649, %v810
        %v812 = vpop.f32.mrf.mxu0
        %v813 = vadd.f32 %v645, %v812
        %v814 = vpop.f32.mrf.mxu0
        %v815 = vadd.f32 %v649, %v814
        %816 = vmatprep.mubr.bf16.mxu0 0
        %817 = vmatmul.mubr.bf16.gmra.mxu0 %v740
        %v818 = vpop.f32.mrf.mxu0
        %v819 = vadd.f32 %v645, %v818
        %v820 = vpop.f32.mrf.mxu0
        %v821 = vadd.f32 %v649, %v820
        %v822 = vpop.f32.mrf.mxu0
        %v823 = vadd.f32 %v645, %v822
        %v824 = vpop.f32.mrf.mxu0
        %v825 = vadd.f32 %v649, %v824
        %826 = vmatprep.mubr.bf16.mxu0 0
        %827 = vmatmul.mubr.bf16.gmra.mxu0 %v743
        %v828 = vpop.f32.mrf.mxu0
        %v829 = vadd.f32 %v645, %v828
        %v830 = vpop.f32.mrf.mxu0
        %v831 = vadd.f32 %v649, %v830
        %v832 = vpop.f32.mrf.mxu0
        %v833 = vadd.f32 %v645, %v832
        %v834 = vpop.f32.mrf.mxu0
        %v835 = vadd.f32 %v649, %v834
        %836 = vmatprep.mubr.bf16.mxu0 0
        %837 = vmatmul.mubr.bf16.gmra.mxu0 %v746
        %v838 = vpop.f32.mrf.mxu0
        %v839 = vadd.f32 %v645, %v838
        %v840 = vpop.f32.mrf.mxu0
        %v841 = vadd.f32 %v649, %v840
        %v842 = vpop.f32.mrf.mxu0
        %v843 = vadd.f32 %v645, %v842
        %v844 = vpop.f32.mrf.mxu0
        %v845 = vadd.f32 %v649, %v844
        %846 = vmatprep.mubr.bf16.mxu0 0
        %847 = vmatmul.mubr.bf16.gmra.mxu0 %v749
        %v848 = vpop.f32.mrf.mxu0
        %v849 = vadd.f32 %v645, %v848
        %v850 = vpop.f32.mrf.mxu0
        %v851 = vadd.f32 %v649, %v850
        %v852 = vpop.f32.mrf.mxu0
        %v853 = vadd.f32 %v645, %v852
        %v854 = vpop.f32.mrf.mxu0
        %v855 = vadd.f32 %v649, %v854
        %856 = vmatprep.mubr.bf16.mxu0 0
        %857 = vmatmul.mubr.bf16.gmra.mxu0 %v752
        %v858 = vpop.f32.mrf.mxu0
        %v859 = vadd.f32 %v645, %v858
        %v860 = vpop.f32.mrf.mxu0
        %v861 = vadd.f32 %v649, %v860
        %v862 = vpop.f32.mrf.mxu0
        %v863 = vadd.f32 %v645, %v862
        %v864 = vpop.f32.mrf.mxu0
        %v865 = vadd.f32 %v649, %v864
        %866 = vdwg.mxu0
        %867 = vmatprep.subr.bf16.mxu0 0
        %868 = vmatpush1.bf16.msra.mxu0 0
        %869 = vmatprep.subr.bf16.mxu0 0
        %870 = vmatpush1.bf16.msra.mxu0 0
        %871 = vmatprep.subr.bf16.mxu0 0
        %872 = vmatpush1.bf16.msra.mxu0 0
        %873 = vmatprep.subr.bf16.mxu0 0
        %874 = vmatpush1.bf16.msra.mxu0 0
        %875 = vmatprep.subr.bf16.mxu0 0
        %876 = vmatpush1.bf16.msra.mxu0 0
        %877 = vmatprep.subr.bf16.mxu0 0
        %878 = vmatpush1.bf16.msra.mxu0 0
        %879 = vmatprep.subr.bf16.mxu0 0
        %880 = vmatpush1.bf16.msra.mxu0 %v722
        %881 = vmatprep.subr.bf16.mxu0 0
        %882 = vmatpush1.bf16.msra.mxu0 %v719
        %883 = vmatprep.subr.bf16.mxu0 0
        %884 = vmatpush2.bf16.msra.mxu0 0
        %885 = vmatprep.subr.bf16.mxu0 0
        %886 = vmatpush2.bf16.msra.mxu0 0
        %887 = vmatprep.subr.bf16.mxu0 0
        %888 = vmatpush2.bf16.msra.mxu0 0
        %889 = vmatprep.subr.bf16.mxu0 0
        %890 = vmatpush2.bf16.msra.mxu0 0
        %891 = vmatprep.subr.bf16.mxu0 0
        %892 = vmatpush2.bf16.msra.mxu0 0
        %893 = vmatprep.subr.bf16.mxu0 0
        %894 = vmatpush2.bf16.msra.mxu0 0
        %895 = vmatprep.subr.bf16.mxu0 0
        %896 = vmatpush2.bf16.msra.mxu0 0
        %897 = vmatprep.subr.bf16.mxu0 0
        %898 = vmatpush2.bf16.msra.mxu0 0
        %899 = vmatprep.mubr.bf16.mxu0 0
        %900 = vmatmul.mubr.bf16.gmra.mxu0 %v731
        %v901 = vpop.f32.mrf.mxu0
        %v902 = vadd.f32 %v653, %v901
        %v903 = vpop.f32.mrf.mxu0
        %v904 = vpop.f32.mrf.mxu0
        %v905 = vadd.f32 %v653, %v904
        %v906 = vpop.f32.mrf.mxu0
        %907 = vmatprep.mubr.bf16.mxu0 0
        %908 = vmatmul.mubr.bf16.gmra.mxu0 %v734
        %v909 = vpop.f32.mrf.mxu0
        %v910 = vadd.f32 %v653, %v909
        %v911 = vpop.f32.mrf.mxu0
        %v912 = vpop.f32.mrf.mxu0
        %v913 = vadd.f32 %v653, %v912
        %v914 = vpop.f32.mrf.mxu0
        %915 = vmatprep.mubr.bf16.mxu0 0
        %916 = vmatmul.mubr.bf16.gmra.mxu0 %v737
        %v917 = vpop.f32.mrf.mxu0
        %v918 = vadd.f32 %v653, %v917
        %v919 = vpop.f32.mrf.mxu0
        %v920 = vpop.f32.mrf.mxu0
        %v921 = vadd.f32 %v653, %v920
        %v922 = vpop.f32.mrf.mxu0
        %923 = vmatprep.mubr.bf16.mxu0 0
        %924 = vmatmul.mubr.bf16.gmra.mxu0 %v740
        %v925 = vpop.f32.mrf.mxu0
        %v926 = vadd.f32 %v653, %v925
        %v927 = vpop.f32.mrf.mxu0
        %v928 = vpop.f32.mrf.mxu0
        %v929 = vadd.f32 %v653, %v928
        %v930 = vpop.f32.mrf.mxu0
        %931 = vmatprep.mubr.bf16.mxu0 0
        %932 = vmatmul.mubr.bf16.gmra.mxu0 %v743
        %v933 = vpop.f32.mrf.mxu0
        %v934 = vadd.f32 %v653, %v933
        %v935 = vpop.f32.mrf.mxu0
        %v936 = vpop.f32.mrf.mxu0
        %v937 = vadd.f32 %v653, %v936
        %v938 = vpop.f32.mrf.mxu0
        %939 = vmatprep.mubr.bf16.mxu0 0
        %940 = vmatmul.mubr.bf16.gmra.mxu0 %v746
        %v941 = vpop.f32.mrf.mxu0
        %v942 = vadd.f32 %v653, %v941
        %v943 = vpop.f32.mrf.mxu0
        %v944 = vpop.f32.mrf.mxu0
        %v945 = vadd.f32 %v653, %v944
        %v946 = vpop.f32.mrf.mxu0
        %947 = vmatprep.mubr.bf16.mxu0 0
        %948 = vmatmul.mubr.bf16.gmra.mxu0 %v749
        %v949 = vpop.f32.mrf.mxu0
        %v950 = vadd.f32 %v653, %v949
        %v951 = vpop.f32.mrf.mxu0
        %v952 = vpop.f32.mrf.mxu0
        %v953 = vadd.f32 %v653, %v952
        %v954 = vpop.f32.mrf.mxu0
        %955 = vmatprep.mubr.bf16.mxu0 0
        %956 = vmatmul.mubr.bf16.gmra.mxu0 %v752
        %v957 = vpop.f32.mrf.mxu0
        %v958 = vadd.f32 %v653, %v957
        %v959 = vpop.f32.mrf.mxu0
        %v960 = vpop.f32.mrf.mxu0
        %v961 = vadd.f32 %v653, %v960
        %v962 = vpop.f32.mrf.mxu0
        %963 = vdwg.mxu0
        %v964 = vpack.c.bf16 %v793, %v789
        %v965 = vpack.c.bf16 %v795, %v791
        %v966 = vpack.c.bf16 %v905, %v902
        %v967 = vpack.c.bf16 %v803, %v799
        %v968 = vpack.c.bf16 %v805, %v801
        %v969 = vpack.c.bf16 %v913, %v910
        %v970 = vpack.c.bf16 %v813, %v809
        %v971 = vpack.c.bf16 %v815, %v811
        %v972 = vpack.c.bf16 %v921, %v918
        %v973 = vpack.c.bf16 %v823, %v819
        %v974 = vpack.c.bf16 %v825, %v821
        %v975 = vpack.c.bf16 %v929, %v926
        %v976 = vpack.c.bf16 %v833, %v829
        %v977 = vpack.c.bf16 %v835, %v831
        %v978 = vpack.c.bf16 %v937, %v934
        %v979 = vpack.c.bf16 %v843, %v839
        %v980 = vpack.c.bf16 %v845, %v841
        %v981 = vpack.c.bf16 %v945, %v942
        %v982 = vpack.c.bf16 %v853, %v849
        %v983 = vpack.c.bf16 %v855, %v851
        %v984 = vpack.c.bf16 %v953, %v950
        %v985 = vpack.c.bf16 %v863, %v859
        %v986 = vpack.c.bf16 %v865, %v861
        %v987 = vpack.c.bf16 %v961, %v958
        %v988 = vld [vmem:[%s4] sm:$0xff]
        %v989 = vld [vmem:[%s4 + $0x8] sm:$0xf]
        %v990 = vld [vmem:[%s4 + $0xc] sm:$0xff]
        %v991 = vld [vmem:[%s4 + $0x14] sm:$0xf]
        %v992 = vld [vmem:[%s4 + $0x18] sm:$0xff]
        %v993 = vld [vmem:[%s4 + $0x20] sm:$0xf]
        %v994 = vld [vmem:[%s4 + $0x24] sm:$0xff]
        %v995 = vld [vmem:[%s4 + $0x2c] sm:$0xf]
        %v996 = vld [vmem:[%s4 + $0x30] sm:$0xff]
        %v997 = vld [vmem:[%s4 + $0x38] sm:$0xf]
        %v998 = vld [vmem:[%s4 + $0x3c] sm:$0xff]
        %v999 = vld [vmem:[%s4 + $0x44] sm:$0xf]
        %v1000 = vld [vmem:[%s4 + $0x48] sm:$0xff]
        %v1001 = vld [vmem:[%s4 + $0x50] sm:$0xf]
        %v1002 = vld [vmem:[%s4 + $0x54] sm:$0xff]
        %v1003 = vld [vmem:[%s4 + $0x5c] sm:$0xf]
        %v1004 = vld [vmem:[%s4 + $0x60] sm:$0xff]
        %v1005 = vld [vmem:[%s4 + $0x68] sm:$0xf]
        %v1006 = vld [vmem:[%s4 + $0x6c] sm:$0xff]
        %v1007 = vld [vmem:[%s4 + $0x74] sm:$0xf]
        %v1008 = vld [vmem:[%s4 + $0x78] sm:$0xff]
        %v1009 = vld [vmem:[%s4 + $0x80] sm:$0xf]
        %v1010 = vld [vmem:[%s4 + $0x84] sm:$0xff]
        %v1011 = vld [vmem:[%s4 + $0x8c] sm:$0xf]
        %v1012 = vld [vmem:[%s4 + $0x90] sm:$0xff]
        %v1013 = vld [vmem:[%s4 + $0x98] sm:$0xf]
        %v1014 = vld [vmem:[%s4 + $0x9c] sm:$0xff]
        %v1015 = vld [vmem:[%s4 + $0xa4] sm:$0xf]
        %v1016 = vld [vmem:[%s4 + $0xa8] sm:$0xff]
        %v1017 = vld [vmem:[%s4 + $0xb0] sm:$0xf]
        %v1018 = vld [vmem:[%s4 + $0xb4] sm:$0xff]
        %v1019 = vld [vmem:[%s4 + $0xbc] sm:$0xf]
        %v1020 = vld [vmem:[%s5] sm:$0x7]
        loop: start=0, step=1, limit=16
        $region102: #{vae_forward.2} parent=96 // loop_pre_header
          _
        $region103: #{vae_forward.2} parent=96 // loop_header
          %s1022 = sphi 0, %s1026
          %p1023 = scmp.ge.s32.totalorder %s1022, 16
          %v1027 = vphi 0.0, %v1393
          %v1028 = vphi 0.0, %v1394
        $region104: #{vae_forward.2} parent=96 // loop_header_branch
          %1025 = sbr.rel (%p1023) target = $region108
        $region105: #{vae_forward.2} parent=96 // loop_body
          %s1029 = smul.u32 %s1022, 2
          %s1030 = smul.addr %s1029, 4
          %s1031 = scalar_lea.vmem %s538, %s1030 [#allocation2]
          %v1032 = vld [vmem:[%s1031] sm:$0xf]
          %v1033 = vld [vmem:[%s1031 + $0x4] sm:$0xf]
          %v1036 = vunpack.c.l.b16 %v1032
          %v1037 = vunpack.c.l.b16 %v1033
          %v1038 = vpack.c.b16 %v1037, %v1036
          %1040 = vmatprep.subr.bf16.mxu0 %v986
          %1041 = vmatpush1.bf16.msra.mxu0 %v985
          %1042 = vmatprep.subr.bf16.mxu0 %v983
          %1043 = vmatpush1.bf16.msra.mxu0 %v982
          %1044 = vmatprep.subr.bf16.mxu0 %v980
          %1045 = vmatpush1.bf16.msra.mxu0 %v979
          %1046 = vmatprep.subr.bf16.mxu0 %v977
          %1047 = vmatpush1.bf16.msra.mxu0 %v976
          %1048 = vmatprep.subr.bf16.mxu0 %v974
          %1049 = vmatpush1.bf16.msra.mxu0 %v973
          %1050 = vmatprep.subr.bf16.mxu0 %v971
          %1051 = vmatpush1.bf16.msra.mxu0 %v970
          %1052 = vmatprep.subr.bf16.mxu0 %v968
          %1053 = vmatpush1.bf16.msra.mxu0 %v967
          %1054 = vmatprep.subr.bf16.mxu0 %v965
          %1055 = vmatpush1.bf16.msra.mxu0 %v964
          %1056 = vmatprep.subr.bf16.mxu0 0
          %1057 = vmatpush2.bf16.msra.mxu0 0
          %1058 = vmatprep.subr.bf16.mxu0 0
          %1059 = vmatpush2.bf16.msra.mxu0 0
          %1060 = vmatprep.subr.bf16.mxu0 0
          %1061 = vmatpush2.bf16.msra.mxu0 0
          %1062 = vmatprep.subr.bf16.mxu0 0
          %1063 = vmatpush2.bf16.msra.mxu0 0
          %1064 = vmatprep.subr.bf16.mxu0 0
          %1065 = vmatpush2.bf16.msra.mxu0 0
          %1066 = vmatprep.subr.bf16.mxu0 0
          %1067 = vmatpush2.bf16.msra.mxu0 0
          %1068 = vmatprep.subr.bf16.mxu0 0
          %1069 = vmatpush2.bf16.msra.mxu0 0
          %1070 = vmatprep.subr.bf16.mxu0 0
          %1071 = vmatpush2.bf16.msra.mxu0 0
          %1072 = vmatprep.mubr.bf16.mxu0 0
          %1073 = vmatmul.mubr.bf16.gmra.mxu0 %v1038
          %v1074 = vpop.f32.mrf.mxu0
          %v1075 = vadd.f32 0.0, %v1074
          %v1076 = vpop.f32.mrf.mxu0
          %v1077 = vadd.f32 0.0, %v1076
          %v1078 = vpop.f32.mrf.mxu0
          %v1079 = vadd.f32 0.0, %v1078
          %v1080 = vpop.f32.mrf.mxu0
          %v1081 = vadd.f32 0.0, %v1080
          %1082 = vdwg.mxu0
          %1083 = vmatprep.subr.bf16.mxu0 0
          %1084 = vmatpush1.bf16.msra.mxu0 %v987
          %1085 = vmatprep.subr.bf16.mxu0 0
          %1086 = vmatpush1.bf16.msra.mxu0 %v984
          %1087 = vmatprep.subr.bf16.mxu0 0
          %1088 = vmatpush1.bf16.msra.mxu0 %v981
          %1089 = vmatprep.subr.bf16.mxu0 0
          %1090 = vmatpush1.bf16.msra.mxu0 %v978
          %1091 = vmatprep.subr.bf16.mxu0 0
          %1092 = vmatpush1.bf16.msra.mxu0 %v975
          %1093 = vmatprep.subr.bf16.mxu0 0
          %1094 = vmatpush1.bf16.msra.mxu0 %v972
          %1095 = vmatprep.subr.bf16.mxu0 0
          %1096 = vmatpush1.bf16.msra.mxu0 %v969
          %1097 = vmatprep.subr.bf16.mxu0 0
          %1098 = vmatpush1.bf16.msra.mxu0 %v966
          %1099 = vmatprep.subr.bf16.mxu0 0
          %1100 = vmatpush2.bf16.msra.mxu0 0
          %1101 = vmatprep.subr.bf16.mxu0 0
          %1102 = vmatpush2.bf16.msra.mxu0 0
          %1103 = vmatprep.subr.bf16.mxu0 0
          %1104 = vmatpush2.bf16.msra.mxu0 0
          %1105 = vmatprep.subr.bf16.mxu0 0
          %1106 = vmatpush2.bf16.msra.mxu0 0
          %1107 = vmatprep.subr.bf16.mxu0 0
          %1108 = vmatpush2.bf16.msra.mxu0 0
          %1109 = vmatprep.subr.bf16.mxu0 0
          %1110 = vmatpush2.bf16.msra.mxu0 0
          %1111 = vmatprep.subr.bf16.mxu0 0
          %1112 = vmatpush2.bf16.msra.mxu0 0
          %1113 = vmatprep.subr.bf16.mxu0 0
          %1114 = vmatpush2.bf16.msra.mxu0 0
          %1115 = vmatprep.mubr.bf16.mxu0 0
          %1116 = vmatmul.mubr.bf16.gmra.mxu0 %v1038
          %v1117 = vpop.f32.mrf.mxu0
          %v1118 = vadd.f32 0.0, %v1117
          %v1119 = vpop.f32.mrf.mxu0
          %v1120 = vpop.f32.mrf.mxu0
          %v1121 = vadd.f32 0.0, %v1120
          %v1122 = vpop.f32.mrf.mxu0
          %1123 = vdwg.mxu0
          %v1124 = vpack.c.bf16 %v1028, %v1027
          %v1126 = vlaneseq
          %v1127 = vshrl.u32 %v1126, 7
          %v1128 = vsub.s32 0, %v1127
          %v1129 = vrot.slane %v1020, %v1128
          %v1130 = vlaneseq
          %v1131 = vshrl.u32 %v1130, 7
          %v1132 = vsub.s32 1, %v1131
          %v1133 = vrot.slane %v1020, %v1132
          %v1134 = vlaneseq
          %v1135 = vshrl.u32 %v1134, 7
          %v1136 = vsub.s32 2, %v1135
          %v1137 = vrot.slane %v1020, %v1136
          %v1173 = vunpack.c.l.b16 %v988
          %v1174 = vunpack.c.h.b16 %v988
          %v1175 = vunpack.c.l.b16 %v989
          %v1176 = vunpack.c.l.b16 %v990
          %v1177 = vunpack.c.h.b16 %v990
          %v1178 = vunpack.c.l.b16 %v991
          %v1179 = vunpack.c.l.b16 %v992
          %v1180 = vunpack.c.h.b16 %v992
          %v1181 = vunpack.c.l.b16 %v993
          %v1182 = vunpack.c.l.b16 %v994
          %v1183 = vunpack.c.h.b16 %v994
          %v1184 = vunpack.c.l.b16 %v995
          %v1185 = vunpack.c.l.b16 %v996
          %v1186 = vunpack.c.h.b16 %v996
          %v1187 = vunpack.c.l.b16 %v997
          %v1188 = vunpack.c.l.b16 %v998
          %v1189 = vunpack.c.h.b16 %v998
          %v1190 = vunpack.c.l.b16 %v999
          %v1191 = vunpack.c.l.b16 %v1000
          %v1192 = vunpack.c.h.b16 %v1000
          %v1193 = vunpack.c.l.b16 %v1001
          %v1194 = vunpack.c.l.b16 %v1002
          %v1195 = vunpack.c.h.b16 %v1002
          %v1196 = vunpack.c.l.b16 %v1003
          %v1197 = vunpack.c.l.b16 %v1004
          %v1198 = vunpack.c.h.b16 %v1004
          %v1199 = vunpack.c.l.b16 %v1005
          %v1200 = vunpack.c.l.b16 %v1006
          %v1201 = vunpack.c.h.b16 %v1006
          %v1202 = vunpack.c.l.b16 %v1007
          %v1203 = vunpack.c.l.b16 %v1008
          %v1204 = vunpack.c.h.b16 %v1008
          %v1205 = vunpack.c.l.b16 %v1009
          %v1206 = vunpack.c.l.b16 %v1010
          %v1207 = vunpack.c.h.b16 %v1010
          %v1208 = vunpack.c.l.b16 %v1011
          %v1209 = vunpack.c.l.b16 %v1012
          %v1210 = vunpack.c.h.b16 %v1012
          %v1211 = vunpack.c.l.b16 %v1013
          %v1212 = vunpack.c.l.b16 %v1014
          %v1213 = vunpack.c.h.b16 %v1014
          %v1214 = vunpack.c.l.b16 %v1015
          %v1215 = vunpack.c.l.b16 %v1016
          %v1216 = vunpack.c.h.b16 %v1016
          %v1217 = vunpack.c.l.b16 %v1017
          %v1218 = vunpack.c.l.b16 %v1018
          %v1219 = vunpack.c.h.b16 %v1018
          %v1220 = vunpack.c.l.b16 %v1019
          %v1221 = vpack.c.b16 %v1176, %v1173
          %v1222 = vpack.c.b16 %v1177, %v1174
          %v1223 = vpack.c.b16 %v1178, %v1175
          %v1224 = vpack.c.b16 %v1182, %v1179
          %v1225 = vpack.c.b16 %v1183, %v1180
          %v1226 = vpack.c.b16 %v1184, %v1181
          %v1227 = vpack.c.b16 %v1188, %v1185
          %v1228 = vpack.c.b16 %v1189, %v1186
          %v1229 = vpack.c.b16 %v1190, %v1187
          %v1230 = vpack.c.b16 %v1194, %v1191
          %v1231 = vpack.c.b16 %v1195, %v1192
          %v1232 = vpack.c.b16 %v1196, %v1193
          %v1233 = vpack.c.b16 %v1200, %v1197
          %v1234 = vpack.c.b16 %v1201, %v1198
          %v1235 = vpack.c.b16 %v1202, %v1199
          %v1236 = vpack.c.b16 %v1206, %v1203
          %v1237 = vpack.c.b16 %v1207, %v1204
          %v1238 = vpack.c.b16 %v1208, %v1205
          %v1239 = vpack.c.b16 %v1212, %v1209
          %v1240 = vpack.c.b16 %v1213, %v1210
          %v1241 = vpack.c.b16 %v1214, %v1211
          %v1242 = vpack.c.b16 %v1218, %v1215
          %v1243 = vpack.c.b16 %v1219, %v1216
          %v1244 = vpack.c.b16 %v1220, %v1217
          %1269 = vmatprep.subr.bf16.mxu0 %v1243
          %1270 = vmatpush1.bf16.msra.mxu0 %v1242
          %1271 = vmatprep.subr.bf16.mxu0 %v1240
          %1272 = vmatpush1.bf16.msra.mxu0 %v1239
          %1273 = vmatprep.subr.bf16.mxu0 %v1237
          %1274 = vmatpush1.bf16.msra.mxu0 %v1236
          %1275 = vmatprep.subr.bf16.mxu0 %v1234
          %1276 = vmatpush1.bf16.msra.mxu0 %v1233
          %1277 = vmatprep.subr.bf16.mxu0 %v1231
          %1278 = vmatpush1.bf16.msra.mxu0 %v1230
          %1279 = vmatprep.subr.bf16.mxu0 %v1228
          %1280 = vmatpush1.bf16.msra.mxu0 %v1227
          %1281 = vmatprep.subr.bf16.mxu0 %v1225
          %1282 = vmatpush1.bf16.msra.mxu0 %v1224
          %1283 = vmatprep.subr.bf16.mxu0 %v1222
          %1284 = vmatpush1.bf16.msra.mxu0 %v1221
          %1285 = vmatprep.subr.bf16.mxu0 0
          %1286 = vmatpush2.bf16.msra.mxu0 0
          %1287 = vmatprep.subr.bf16.mxu0 0
          %1288 = vmatpush2.bf16.msra.mxu0 0
          %1289 = vmatprep.subr.bf16.mxu0 0
          %1290 = vmatpush2.bf16.msra.mxu0 0
          %1291 = vmatprep.subr.bf16.mxu0 0
          %1292 = vmatpush2.bf16.msra.mxu0 0
          %1293 = vmatprep.subr.bf16.mxu0 0
          %1294 = vmatpush2.bf16.msra.mxu0 0
          %1295 = vmatprep.subr.bf16.mxu0 0
          %1296 = vmatpush2.bf16.msra.mxu0 0
          %1297 = vmatprep.subr.bf16.mxu0 0
          %1298 = vmatpush2.bf16.msra.mxu0 0
          %1299 = vmatprep.subr.bf16.mxu0 0
          %1300 = vmatpush2.bf16.msra.mxu0 0
          %1301 = vmatprep.mubr.bf16.mxu0 0
          %1302 = vmatmul.mubr.bf16.gmra.mxu0 %v1124
          %v1303 = vpop.f32.mrf.mxu0
          %v1304 = vadd.f32 %v1129, %v1303
          %v1305 = vpop.f32.mrf.mxu0
          %v1306 = vadd.f32 %v1133, %v1305
          %v1307 = vpop.f32.mrf.mxu0
          %v1308 = vadd.f32 %v1129, %v1307
          %v1309 = vpop.f32.mrf.mxu0
          %v1310 = vadd.f32 %v1133, %v1309
          %1311 = vdwg.mxu0
          %1312 = vmatprep.subr.bf16.mxu0 0
          %1313 = vmatpush1.bf16.msra.mxu0 %v1244
          %1314 = vmatprep.subr.bf16.mxu0 0
          %1315 = vmatpush1.bf16.msra.mxu0 %v1241
          %1316 = vmatprep.subr.bf16.mxu0 0
          %1317 = vmatpush1.bf16.msra.mxu0 %v1238
          %1318 = vmatprep.subr.bf16.mxu0 0
          %1319 = vmatpush1.bf16.msra.mxu0 %v1235
          %1320 = vmatprep.subr.bf16.mxu0 0
          %1321 = vmatpush1.bf16.msra.mxu0 %v1232
          %1322 = vmatprep.subr.bf16.mxu0 0
          %1323 = vmatpush1.bf16.msra.mxu0 %v1229
          %1324 = vmatprep.subr.bf16.mxu0 0
          %1325 = vmatpush1.bf16.msra.mxu0 %v1226
          %1326 = vmatprep.subr.bf16.mxu0 0
          %1327 = vmatpush1.bf16.msra.mxu0 %v1223
          %1328 = vmatprep.subr.bf16.mxu0 0
          %1329 = vmatpush2.bf16.msra.mxu0 0
          %1330 = vmatprep.subr.bf16.mxu0 0
          %1331 = vmatpush2.bf16.msra.mxu0 0
          %1332 = vmatprep.subr.bf16.mxu0 0
          %1333 = vmatpush2.bf16.msra.mxu0 0
          %1334 = vmatprep.subr.bf16.mxu0 0
          %1335 = vmatpush2.bf16.msra.mxu0 0
          %1336 = vmatprep.subr.bf16.mxu0 0
          %1337 = vmatpush2.bf16.msra.mxu0 0
          %1338 = vmatprep.subr.bf16.mxu0 0
          %1339 = vmatpush2.bf16.msra.mxu0 0
          %1340 = vmatprep.subr.bf16.mxu0 0
          %1341 = vmatpush2.bf16.msra.mxu0 0
          %1342 = vmatprep.subr.bf16.mxu0 0
          %1343 = vmatpush2.bf16.msra.mxu0 0
          %1344 = vmatprep.mubr.bf16.mxu0 0
          %1345 = vmatmul.mubr.bf16.gmra.mxu0 %v1124
          %v1346 = vpop.f32.mrf.mxu0
          %v1347 = vadd.f32 %v1137, %v1346
          %v1348 = vpop.f32.mrf.mxu0
          %v1349 = vpop.f32.mrf.mxu0
          %v1350 = vadd.f32 %v1137, %v1349
          %v1351 = vpop.f32.mrf.mxu0
          %1352 = vdwg.mxu0
          %v1353 = vadd.f32 %v1075, %v1304
          %v1354 = vadd.f32 %v1077, %v1306
          %v1355 = vadd.f32 %v1079, %v1308
          %v1356 = vadd.f32 %v1081, %v1310
          %v1357 = vxor.u32 %v1353, 2147483648
          %v1358 = vxor.u32 %v1354, 2147483648
          %v1359 = vxor.u32 %v1355, 2147483648
          %v1360 = vxor.u32 %v1356, 2147483648
          %v1361 = vmul.f32 %v1357, 1.442695
          %v1362 = vpow.pop %v1361
          %v1363 = vmul.f32 %v1358, 1.442695
          %v1364 = vpow.pop %v1363
          %v1365 = vmul.f32 %v1359, 1.442695
          %v1366 = vpow.pop %v1365
          %v1367 = vmul.f32 %v1360, 1.442695
          %v1368 = vpow.pop %v1367
          %v1369 = vadd.f32 %v1362, 1.0
          %v1370 = vadd.f32 %v1364, 1.0
          %v1371 = vadd.f32 %v1366, 1.0
          %v1372 = vadd.f32 %v1368, 1.0
          %v1373 = vrcp.pop %v1369
          %v1374 = vmul.f32 1.0, %v1373
          %v1375 = vrcp.pop %v1370
          %v1376 = vmul.f32 1.0, %v1375
          %v1377 = vrcp.pop %v1371
          %v1378 = vmul.f32 1.0, %v1377
          %v1379 = vrcp.pop %v1372
          %v1380 = vmul.f32 1.0, %v1379
          %v1381 = vmul.f32 %v1374, %v1347
          %v1382 = vmul.f32 %v1378, %v1350
          %v1383 = vadd.f32 %v1118, %v1381
          %v1384 = vadd.f32 %v1121, %v1382
          %v1385 = vtanh.pop %v1383
          %v1386 = vtanh.pop %v1384
          %v1387 = vsub.f32 1.0, %v1376
          %v1388 = vsub.f32 1.0, %v1380
          %v1389 = vmul.f32 %v1387, %v1385
          %v1390 = vmul.f32 %v1388, %v1386
          %v1391 = vmul.f32 %v1376, %v1027
          %v1392 = vmul.f32 %v1380, %v1028
          %v1393 = vadd.f32 %v1389, %v1391
          %v1394 = vadd.f32 %v1390, %v1392
        $region106: #{vae_forward.2} parent=96 // loop_footer
          %s1026 = sadd.s32 1, %s1022
        $region107: #{vae_forward.2} parent=96 // loop_footer_branch
          %1021 = sbr.rel target = $region103
        $region108: #{vae_forward.2} parent=96 // loop_exit
          _
        %v1395 = vld [vmem:[%s595] sm:$0xff]
        %v1396 = vld [vmem:[%s595 + $0x8] sm:$0xff]
        %v1397 = vpack.c.bf16 %v1028, %v1027
        %v1398 = vpack.c.bf16 %v1396, %v1395
        %v1399 = vld [vmem:[%s7] sm:$0xf]
        %v1400 = vld [vmem:[%s7 + $0x4] sm:$0xf]
        %v1401 = vld [vmem:[%s7 + $0x8] sm:$0xf]
        %v1402 = vld [vmem:[%s7 + $0xc] sm:$0xf]
        %v1403 = vld [vmem:[%s7 + $0x10] sm:$0xf]
        %v1404 = vld [vmem:[%s7 + $0x14] sm:$0xf]
        %v1405 = vld [vmem:[%s7 + $0x18] sm:$0xf]
        %v1406 = vld [vmem:[%s7 + $0x1c] sm:$0xf]
        %v1407 = vld [vmem:[%s7 + $0x20] sm:$0xf]
        %v1408 = vld [vmem:[%s7 + $0x24] sm:$0xf]
        %v1409 = vld [vmem:[%s7 + $0x28] sm:$0xf]
        %v1410 = vld [vmem:[%s7 + $0x2c] sm:$0xf]
        %v1411 = vld [vmem:[%s7 + $0x30] sm:$0xf]
        %v1412 = vld [vmem:[%s7 + $0x34] sm:$0xf]
        %v1413 = vld [vmem:[%s7 + $0x38] sm:$0xf]
        %v1414 = vld [vmem:[%s7 + $0x3c] sm:$0xf]
        %v1415 = vld [vmem:[%s7 + $0x40] sm:$0xf]
        %v1416 = vld [vmem:[%s7 + $0x44] sm:$0xf]
        %v1417 = vld [vmem:[%s7 + $0x48] sm:$0xf]
        %v1418 = vld [vmem:[%s7 + $0x4c] sm:$0xf]
        %v1419 = vld [vmem:[%s7 + $0x50] sm:$0xf]
        %v1420 = vld [vmem:[%s7 + $0x54] sm:$0xf]
        %v1421 = vld [vmem:[%s7 + $0x58] sm:$0xf]
        %v1422 = vld [vmem:[%s7 + $0x5c] sm:$0xf]
        %v1423 = vld [vmem:[%s7 + $0x60] sm:$0xf]
        %v1424 = vld [vmem:[%s7 + $0x64] sm:$0xf]
        %v1425 = vld [vmem:[%s7 + $0x68] sm:$0xf]
        %v1426 = vld [vmem:[%s7 + $0x6c] sm:$0xf]
        %v1427 = vld [vmem:[%s7 + $0x70] sm:$0xf]
        %v1428 = vld [vmem:[%s7 + $0x74] sm:$0xf]
        %v1429 = vld [vmem:[%s7 + $0x78] sm:$0xf]
        %v1430 = vld [vmem:[%s7 + $0x7c] sm:$0xf]
        %v1431 = vld [vmem:[%s8] sm:$0x1]
        %v1433 = vlaneseq
        %v1434 = vshrl.u32 %v1433, 7
        %v1435 = vsub.s32 0, %v1434
        %v1436 = vrot.slane %v1431, %v1435
        %v1470 = vunpack.c.l.b16 %v1399
        %v1471 = vunpack.c.l.b16 %v1400
        %v1472 = vunpack.c.l.b16 %v1401
        %v1473 = vunpack.c.l.b16 %v1402
        %v1474 = vunpack.c.l.b16 %v1403
        %v1475 = vunpack.c.l.b16 %v1404
        %v1476 = vunpack.c.l.b16 %v1405
        %v1477 = vunpack.c.l.b16 %v1406
        %v1478 = vunpack.c.l.b16 %v1407
        %v1479 = vunpack.c.l.b16 %v1408
        %v1480 = vunpack.c.l.b16 %v1409
        %v1481 = vunpack.c.l.b16 %v1410
        %v1482 = vunpack.c.l.b16 %v1411
        %v1483 = vunpack.c.l.b16 %v1412
        %v1484 = vunpack.c.l.b16 %v1413
        %v1485 = vunpack.c.l.b16 %v1414
        %v1486 = vunpack.c.l.b16 %v1415
        %v1487 = vunpack.c.l.b16 %v1416
        %v1488 = vunpack.c.l.b16 %v1417
        %v1489 = vunpack.c.l.b16 %v1418
        %v1490 = vunpack.c.l.b16 %v1419
        %v1491 = vunpack.c.l.b16 %v1420
        %v1492 = vunpack.c.l.b16 %v1421
        %v1493 = vunpack.c.l.b16 %v1422
        %v1494 = vunpack.c.l.b16 %v1423
        %v1495 = vunpack.c.l.b16 %v1424
        %v1496 = vunpack.c.l.b16 %v1425
        %v1497 = vunpack.c.l.b16 %v1426
        %v1498 = vunpack.c.l.b16 %v1427
        %v1499 = vunpack.c.l.b16 %v1428
        %v1500 = vunpack.c.l.b16 %v1429
        %v1501 = vunpack.c.l.b16 %v1430
        %v1502 = vpack.c.b16 %v1471, %v1470
        %v1503 = vpack.c.b16 %v1473, %v1472
        %v1504 = vpack.c.b16 %v1475, %v1474
        %v1505 = vpack.c.b16 %v1477, %v1476
        %v1506 = vpack.c.b16 %v1479, %v1478
        %v1507 = vpack.c.b16 %v1481, %v1480
        %v1508 = vpack.c.b16 %v1483, %v1482
        %v1509 = vpack.c.b16 %v1485, %v1484
        %v1510 = vpack.c.b16 %v1487, %v1486
        %v1511 = vpack.c.b16 %v1489, %v1488
        %v1512 = vpack.c.b16 %v1491, %v1490
        %v1513 = vpack.c.b16 %v1493, %v1492
        %v1514 = vpack.c.b16 %v1495, %v1494
        %v1515 = vpack.c.b16 %v1497, %v1496
        %v1516 = vpack.c.b16 %v1499, %v1498
        %v1517 = vpack.c.b16 %v1501, %v1500
        %1534 = vmatprep.subr.bf16.mxu0 0
        %1535 = vmatpush1.bf16.msra.mxu0 %v1509
        %1536 = vmatprep.subr.bf16.mxu0 0
        %1537 = vmatpush1.bf16.msra.mxu0 %v1508
        %1538 = vmatprep.subr.bf16.mxu0 0
        %1539 = vmatpush1.bf16.msra.mxu0 %v1507
        %1540 = vmatprep.subr.bf16.mxu0 0
        %1541 = vmatpush1.bf16.msra.mxu0 %v1506
        %1542 = vmatprep.subr.bf16.mxu0 0
        %1543 = vmatpush1.bf16.msra.mxu0 %v1505
        %1544 = vmatprep.subr.bf16.mxu0 0
        %1545 = vmatpush1.bf16.msra.mxu0 %v1504
        %1546 = vmatprep.subr.bf16.mxu0 0
        %1547 = vmatpush1.bf16.msra.mxu0 %v1503
        %1548 = vmatprep.subr.bf16.mxu0 0
        %1549 = vmatpush1.bf16.msra.mxu0 %v1502
        %1550 = vmatprep.subr.bf16.mxu0 0
        %1551 = vmatpush2.bf16.msra.mxu0 %v1517
        %1552 = vmatprep.subr.bf16.mxu0 0
        %1553 = vmatpush2.bf16.msra.mxu0 %v1516
        %1554 = vmatprep.subr.bf16.mxu0 0
        %1555 = vmatpush2.bf16.msra.mxu0 %v1515
        %1556 = vmatprep.subr.bf16.mxu0 0
        %1557 = vmatpush2.bf16.msra.mxu0 %v1514
        %1558 = vmatprep.subr.bf16.mxu0 0
        %1559 = vmatpush2.bf16.msra.mxu0 %v1513
        %1560 = vmatprep.subr.bf16.mxu0 0
        %1561 = vmatpush2.bf16.msra.mxu0 %v1512
        %1562 = vmatprep.subr.bf16.mxu0 0
        %1563 = vmatpush2.bf16.msra.mxu0 %v1511
        %1564 = vmatprep.subr.bf16.mxu0 0
        %1565 = vmatpush2.bf16.msra.mxu0 %v1510
        %1566 = vmatprep.mubr.bf16.mxu0 %v1398
        %1567 = vmatmul.mubr.bf16.gmra.mxu0 %v1397
        %v1568 = vpop.f32.mrf.mxu0
        %v1569 = vadd.f32 %v1436, %v1568
        %v1570 = vpop.f32.mrf.mxu0
        %v1571 = vpop.f32.mrf.mxu0
        %v1572 = vadd.f32 %v1436, %v1571
        %v1573 = vpop.f32.mrf.mxu0
        %1574 = vdwg.mxu0
        %v1575 = vmul.f32 %v1569, 0.5
        %v1576 = vmul.f32 %v1572, 0.5
        %v1577 = vmul.f32 %v1575, 1.442695
        %v1578 = vpow.pop %v1577
        %v1579 = vmul.f32 %v1576, 1.442695
        %v1580 = vpow.pop %v1579
        %v1581 = vld [vmem:[%s601] sm:$0xff]
        %v1582 = vld [vmem:[%s601 + $0x8] sm:$0xff]
        %1585 = vrot.lane.b32.xlu0 %v1581, 32
        %v1586 = vpop.permute.xlu0 %1585
        %1587 = vrot.lane.b32.xlu0 %v1582, 32
        %v1588 = vpop.permute.xlu0 %1587
        %v1591 = vmul.f32 %v1578, %v1586
        %v1592 = vmul.f32 %v1580, %v1588
        %1595 = vrot.lane.b32.xlu0 %v1591, 96
        %v1596 = vpop.permute.xlu0 %1595
        %1597 = vrot.lane.b32.xlu0 %v1592, 96
        %v1598 = vpop.permute.xlu0 %1597
        %v1601 = vadd.f32 %v1569, %v1596
        %v1602 = vadd.f32 %v1572, %v1598
        %1603 = vst.msk [vmem:[%s607] sm:$0xff] %vm729, %v1601
        %1604 = vst.msk [vmem:[%s607 + $0x8] sm:$0xff] %vm729, %v1602
        %v1605 = vmul.f32 %v1569, 1.442695
        %v1606 = vpow.pop %v1605
        %v1607 = vmul.f32 %v1572, 1.442695
        %v1608 = vpow.pop %v1607
        %v1609 = vmul.f32 %v1569, %v1569
        %v1610 = vmul.f32 %v1572, %v1572
        %1613 = vrot.lane.b32.xlu0 %v1609, 32
        %v1614 = vpop.permute.xlu0 %1613
        %1615 = vrot.lane.b32.xlu0 %v1610, 32
        %v1616 = vpop.permute.xlu0 %1615
        %v1619 = vadd.f32 %v1606, %v1614
        %v1620 = vadd.f32 %v1608, %v1616
        %v1621 = vsub.f32 %v1619, 1.0
        %v1622 = vsub.f32 %v1620, 1.0
        %v1623 = vsub.f32 %v1621, %v1569
        %v1624 = vsub.f32 %v1622, %v1572
        %1627 = vrot.lane.b32.xlu0 %v1623, 96
        %v1628 = vpop.permute.xlu0 %1627
        %1629 = vrot.lane.b32.xlu0 %v1624, 96
        %v1630 = vpop.permute.xlu0 %1629
        %v1633 = vsel %vm729, %v1628, 0.0
        %1634 = vadd.xlane.f32.xlu0 %v1633
        %v1635 = vpop.xlane.xlu0 %1634
        %v1636 = vsel %vm729, %v1630, 0.0
        %1637 = vadd.xlane.f32.xlu0 %v1636
        %v1638 = vpop.xlane.xlu0 %1637
        %v1639 = vmul.f32 %v1635, 0.5
        %v1640 = vmul.f32 %v1638, 0.5
        %vm1641 = vcmask 7168
        %1642 = vst.msk [vmem:[%s613] sm:$0xff] %vm1641, %v1639
        %1643 = vst.msk [vmem:[%s613 + $0x8] sm:$0xff] %vm1641, %v1640
        %s1644 = smul.u32 2, %s23
        %p1645 = scmp.lt.s32.totalorder %s1644, 3
        %s1646 = scalar_select %p1645, %s1644, 3
        %s1647 = smul.addr %s1646, 8
        %s1648 = scalar_lea.vmem %s10, %s1647
        %s1649 = smul.u32 2, %s23
        %p1650 = scmp.lt.s32.totalorder %s1649, 3
        %s1651 = scalar_select %p1650, %s1649, 3
        %s1652 = smul.addr %s1651, 8
        %s1653 = scalar_lea.vmem %s11, %s1652
        // Predicated region
        $region109: #{vae_forward.2} parent=96 // pred_check
          %p1654 = pneg %p266
        $region110: #{vae_forward.2} parent=96 // pred_check_branch
          %1656 = sbr.rel (%p1654) target = $region112
        $region111: #{vae_forward.2} parent=96 // pred_region
          %s1657 = smul.u32 2, %s23
        $region112: #{vae_forward.2} parent=96 // pred_fallthru
          _
        // Predicated region
        $region113: #{vae_forward.2} parent=96 // pred_check
          %p1658 = pneg %p292
        $region114: #{vae_forward.2} parent=96 // pred_check_branch
          %1660 = sbr.rel (%p1658) target = $region116
        $region115: #{vae_forward.2} parent=96 // pred_region
          %s1661 = smul.u32 2, %s23
        $region116: #{vae_forward.2} parent=96 // pred_fallthru
          _
      $region97: #{vae_forward.2} parent=5 // pred_fallthru
        _
      %p1662 = scmp.le.s32.totalorder 2, %s18
      // Predicated region
      $region117: #{vae_forward.2} parent=5 // pred_check
        %p1663 = pneg %p1662
      $region118: #{vae_forward.2} parent=5 // pred_check_branch
        %1665 = sbr.rel (%p1663) target = $region120
      $region119: #{vae_forward.2} parent=5 // pred_region
        %s1666 = ssub.s32 %s18, 2
        // Predicated region
        $region121: #{vae_forward.2} parent=119 // pred_check
          %p1667 = pneg %p272
        $region122: #{vae_forward.2} parent=119 // pred_check_branch
          %1669 = sbr.rel (%p1667) target = $region124
        $region123: #{vae_forward.2} parent=119 // pred_region
          %s1670 = smul.u32 2, %s24
          %p1671 = scmp.lt.s32.totalorder %s1670, 3
          %s1672 = scalar_select %p1671, %s1670, 3
          %s1673 = smul.addr %s1672, 8
          %s1674 = scalar_lea.vmem %s10, %s1673
        $region124: #{vae_forward.2} parent=119 // pred_fallthru
          _
        // Predicated region
        $region125: #{vae_forward.2} parent=119 // pred_check
          %p1675 = pneg %p298
        $region126: #{vae_forward.2} parent=119 // pred_check_branch
          %1677 = sbr.rel (%p1675) target = $region128
        $region127: #{vae_forward.2} parent=119 // pred_region
          %s1678 = smul.u32 2, %s24
          %p1679 = scmp.lt.s32.totalorder %s1678, 3
          %s1680 = scalar_select %p1679, %s1678, 3
          %s1681 = smul.addr %s1680, 8
          %s1682 = scalar_lea.vmem %s11, %s1681
        $region128: #{vae_forward.2} parent=119 // pred_fallthru
          _
      $region120: #{vae_forward.2} parent=5 // pred_fallthru
        _
    $region6: #{vae_forward.2} parent=1 // loop_footer
      %s22 = sadd.s32 1, %s18
    $region7: #{vae_forward.2} parent=1 // loop_footer_branch
      %17 = sbr.rel target = $region3
    $region8: #{vae_forward.2} parent=1 // loop_exit
      _

</llo_original>
